<compile_context>
chip_gen: v7x
topology: tpu7x:2x2x1
jax: 0.10.0
libtpu: 0.0.40
codegen_flags: <defaults>
</compile_context>

<pallas_src>
import numpy as np
import jax
import jax.numpy as jnp
from jax.experimental import pallas as pl
from jax.experimental.pallas import tpu as pltpu

INPUT_DIM = 3
HIDDEN_DIM = 32
LATENT_DIM = 16
N_LAYERS = 4
K1_PAD = 128          # lane-dense padding of the layer-1 patch K dim (9*Cin -> 128)


def _pad8(n):
    return max(8, ((n + 7) // 8) * 8)


def _out_hw(h):
    # k=3, stride=2, pad=1
    return (h - 1) // 2 + 1


# ---------------------------------------------------------------------------
# Fused Pallas kernel: conv1 -> conv2 -> conv3 -> conv4, resident in VMEM/vregs.
# ---------------------------------------------------------------------------
def _encoder_kernel(p_ref, t2_ref, t3_ref, t4_ref,
                    w1_ref, w2_ref, w3_ref, w4_ref,
                    b1_ref, b2_ref, b3_ref, b4_ref, o_ref):
    # p_ref : (M1, 128)       bf16  layer-1 im2col patches (lanes = 9*Cin, zero-padded)
    # tN_ref: (9, Mn, Mn-1)   bf16  per-tap 0/1 row-selection matrices (per image)
    # w1_ref: (128, Chid)     bf16  layer-1 weights with taps folded into K
    # wN_ref: (9, Cin, Cout)  bf16  per-tap channel-contraction weights (dense)
    # bN_ref: (1, Cout)       f32   biases
    # o_ref : (M4, latent)    f32   final activation (row 0 per image is real)

    # Layer 1: one matmul, K = 9*Cin (im2col done in the wrapper).
    x = jnp.dot(p_ref[...], w1_ref[...], preferred_element_type=jnp.float32)
    x = (x + b1_ref[...]).astype(jnp.bfloat16)

    # Layers 2-4: per-tap exact 0/1 gather matmul + channel contraction,
    # accumulated in f32 (acc initialized from tap 0's product).
    layers = ((t2_ref, w2_ref, b2_ref),
              (t3_ref, w3_ref, b3_ref),
              (t4_ref, w4_ref, b4_ref))
    for i, (t_ref, w_ref, b_ref) in enumerate(layers):
        acc = None
        for k in range(9):
            g = jnp.dot(t_ref[k], x, preferred_element_type=jnp.float32)
            part = jnp.dot(g.astype(jnp.bfloat16), w_ref[k],
                           preferred_element_type=jnp.float32)
            acc = part if acc is None else acc + part
        # NOTE (documented invariant): the bias is also added to zero-padded
        # rows; those rows are never selected by the next layer's T matrix and
        # the wrapper slices them away from the final output.
        acc = acc + b_ref[...]
        if i + 1 < len(layers):
            x = acc.astype(jnp.bfloat16)
    o_ref[...] = acc


# ---------------------------------------------------------------------------
# Constant prep (hoisted out of the forward path).
# ---------------------------------------------------------------------------
def _selection_matrix(h_in, w_in, h_out, w_out):
    """Per-image (9, M_out_pad, M_in_pad) 0/1 gather matrices for k=3,s=2,p=1."""
    m_in, m_out = _pad8(h_in * w_in), _pad8(h_out * w_out)
    t = np.zeros((9, m_out, m_in), np.float32)
    for k in range(9):
        kh, kw = divmod(k, 3)
        for ho in range(h_out):
            hi = 2 * ho + kh - 1
            if not 0 <= hi < h_in:
                continue
            for wo in range(w_out):
                wi = 2 * wo + kw - 1
                if not 0 <= wi < w_in:
                    continue
                t[k, ho * w_out + wo, hi * w_in + wi] = 1.0
    return jnp.asarray(t, jnp.bfloat16)


def _prep_weights(params):
    """Repack weights: layer 1 -> (K1_PAD, Cout) with taps folded into K;
    layers 2-4 -> dense (9, Cin, Cout); biases -> (1, Cout) f32."""
    (w1, b1), (w2, b2), (w3, b3), (w4, b4) = params
    cin, cout1 = w1.shape[1], w1.shape[0]
    w1f = jnp.transpose(w1, (2, 3, 1, 0)).reshape(9 * cin, cout1)      # (k*Cin+ci, co)
    w1p = jnp.zeros((K1_PAD, cout1), jnp.float32).at[:9 * cin, :].set(w1f)

    def per_tap(w):
        co, ci, _, _ = w.shape
        return jnp.transpose(w, (2, 3, 1, 0)).reshape(9, ci, co).astype(jnp.bfloat16)

    ws = (w1p.astype(jnp.bfloat16), per_tap(w2), per_tap(w3), per_tap(w4))
    bs = tuple(b.reshape(1, -1).astype(jnp.float32) for b in (b1, b2, b3, b4))
    return ws, bs


def build_encoder(params, batch, height, width):
    """Precompute constants once and return a jitted forward(x_nchw) that issues
    a single fused pallas_call over a per-image 'parallel' grid."""
    cin = params[0][0].shape[1]
    hid = params[0][0].shape[0]
    latent = params[-1][0].shape[0]

    hws = [(height, width)]
    for _ in range(N_LAYERS):
        h, w = hws[-1]
        hws.append((_out_hw(h), _out_hw(w)))
    (h1, w1d), (h2, w2d), (h3, w3d), (h4, w4d) = hws[1:]
    m1, m2, m3, m4 = (_pad8(h * w) for (h, w) in hws[1:])

    t2 = _selection_matrix(h1, w1d, h2, w2d)
    t3 = _selection_matrix(h2, w2d, h3, w3d)
    t4 = _selection_matrix(h3, w3d, h4, w4d)
    (w1p, w2p, w3p, w4p), (b1p, b2p, b3p, b4p) = _prep_weights(params)

    # Advisory cost estimate for XLA scheduling around the custom call.
    flops = 2 * m1 * K1_PAD * hid
    for (mo, mi, ci, co) in ((m2, m1, hid, hid), (m3, m2, hid, hid),
                             (m4, m3, hid, latent)):
        flops += 9 * (2 * mo * mi * ci + 2 * mo * ci * co)
    flops *= batch
    consts = (t2, t3, t4, w1p, w2p, w3p, w4p, b1p, b2p, b3p, b4p)
    bytes_accessed = (batch * m1 * K1_PAD * 2 + batch * m4 * latent * 4
                      + sum(int(np.prod(c.shape)) * c.dtype.itemsize for c in consts))

    def _const_spec(arr):
        nd = arr.ndim
        return pl.BlockSpec(arr.shape, lambda b, _nd=nd: (0,) * _nd)

    fused = pl.pallas_call(
        _encoder_kernel,
        out_shape=jax.ShapeDtypeStruct((batch * m4, latent), jnp.float32),
        grid=(batch,),
        in_specs=[
            pl.BlockSpec((m1, K1_PAD), lambda b: (b, 0)),
            _const_spec(t2), _const_spec(t3), _const_spec(t4),
            _const_spec(w1p), _const_spec(w2p), _const_spec(w3p), _const_spec(w4p),
            _const_spec(b1p), _const_spec(b2p), _const_spec(b3p), _const_spec(b4p),
        ],
        out_specs=pl.BlockSpec((m4, latent), lambda b: (b, 0)),
        compiler_params=pltpu.CompilerParams(
            dimension_semantics=("parallel",),
            vmem_limit_bytes=16 * 1024 * 1024,
        ),
        cost_estimate=pl.CostEstimate(flops=flops, transcendentals=0,
                                      bytes_accessed=bytes_accessed),
    )

    @jax.jit
    def forward(x_nchw):
        b, c, h, w = x_nchw.shape
        # Layer-1 im2col (k=3, s=2, p=1) with static strided slices (XLA ops);
        # lane order inside a patch row is (kh, kw, cin), matching W1's K rows.
        xh = jnp.transpose(x_nchw, (0, 2, 3, 1)).astype(jnp.bfloat16)
        xp = jnp.pad(xh, ((0, 0), (1, 1), (1, 1), (0, 0)))
        taps = [xp[:, kh:kh + 2 * h1:2, kw:kw + 2 * w1d:2, :]
                for kh in range(3) for kw in range(3)]
        pat = jnp.stack(taps, axis=-2).reshape(b, h1 * w1d, 9 * c)
        slab = jnp.zeros((b, m1, K1_PAD), jnp.bfloat16)
        slab = slab.at[:, :h1 * w1d, :9 * c].set(pat).reshape(b * m1, K1_PAD)

        out = fused(slab, t2, t3, t4, w1p, w2p, w3p, w4p, b1p, b2p, b3p, b4p)
        y = out.reshape(b, m4, latent)[:, :h4 * w4d, :]
        return jnp.transpose(y.reshape(b, h4, w4d, latent), (0, 3, 1, 2))

    return forward


# ---------------------------------------------------------------------------
# Deterministic parameter init (shapes from Encoder.__init__).
# ---------------------------------------------------------------------------
def init_params(key, input_dim=INPUT_DIM, hidden_dim=HIDDEN_DIM, latent_dim=LATENT_DIM):
    layer_dims = [
        (hidden_dim, input_dim),
        (hidden_dim, hidden_dim),
        (hidden_dim, hidden_dim),
        (latent_dim, hidden_dim),
    ]
    params = []
    for i, (cout, cin) in enumerate(layer_dims):
        kw, kb = jax.random.split(jax.random.fold_in(key, i))
        fan_in = cin * 9
        bound = 1.0 / (fan_in ** 0.5)
        w = jax.random.uniform(kw, (cout, cin, 3, 3), jnp.float32, -bound, bound)
        b = jax.random.uniform(kb, (cout,), jnp.float32, -bound, bound)
        params.append((w, b))
    return params


# Pure-JAX f32 reference for correctness verification.
def reference_forward(x_nchw, params):
    x = x_nchw
    for w, b in params:
        x = jax.lax.conv_general_dilated(
            x, w, window_strides=(2, 2), padding=((1, 1), (1, 1)),
            dimension_numbers=("NCHW", "OIHW", "NCHW"),
        )
        x = x + b.reshape(1, -1, 1, 1)
    return x


if __name__ == "__main__":
    key = jax.random.PRNGKey(0)
    x = jax.random.normal(jax.random.fold_in(key, 100), (2, INPUT_DIM, 16, 16), jnp.float32)
    params = init_params(key)

    forward = build_encoder(params, batch=2, height=16, width=16)
    out = jax.block_until_ready(forward(x))
    assert out.shape == (2, LATENT_DIM, 1, 1), out.shape

    ref = reference_forward(x, params)
    max_err = float(jnp.max(jnp.abs(out - ref)))
    # bf16 matmul inputs with f32 accumulation -> bf16-level tolerance.
    assert jnp.allclose(out, ref, atol=1e-2, rtol=2e-2), max_err

    print("KERNEL_OK")
</pallas_src>

<mosaic_0001>
module attributes {stable_mosaic.version = 11 : i64} {
  func.func @_encoder_kernel(%arg0: i32, %arg1: memref<64x128xbf16, #tpu.memory_space<vmem>>, %arg2: memref<9x16x64xbf16, #tpu.memory_space<vmem>>, %arg3: memref<9x8x16xbf16, #tpu.memory_space<vmem>>, %arg4: memref<9x8x8xbf16, #tpu.memory_space<vmem>>, %arg5: memref<128x32xbf16, #tpu.memory_space<vmem>>, %arg6: memref<9x32x32xbf16, #tpu.memory_space<vmem>>, %arg7: memref<9x32x32xbf16, #tpu.memory_space<vmem>>, %arg8: memref<9x32x16xbf16, #tpu.memory_space<vmem>>, %arg9: memref<1x32xf32, #tpu.memory_space<vmem>>, %arg10: memref<1x32xf32, #tpu.memory_space<vmem>>, %arg11: memref<1x32xf32, #tpu.memory_space<vmem>>, %arg12: memref<1x16xf32, #tpu.memory_space<vmem>>, %arg13: memref<8x16xf32, #tpu.memory_space<vmem>>) attributes {dimension_semantics = [#tpu.dimension_semantics<parallel>], iteration_bounds = array<i64: 2>, scalar_prefetch = 0 : i64, scratch_operands = 0 : i64, tpu.core_type = #tpu.core_type<tc>, window_params = [{transform_indices = @transform_0, window_bounds = array<i64: 64, 128>}, {pipeline_mode = #tpu.pipeline_mode<synchronous>, transform_indices = @transform_1, window_bounds = array<i64: 9, 16, 64>}, {pipeline_mode = #tpu.pipeline_mode<synchronous>, transform_indices = @transform_2, window_bounds = array<i64: 9, 8, 16>}, {pipeline_mode = #tpu.pipeline_mode<synchronous>, transform_indices = @transform_3, window_bounds = array<i64: 9, 8, 8>}, {pipeline_mode = #tpu.pipeline_mode<synchronous>, transform_indices = @transform_4, window_bounds = array<i64: 128, 32>}, {pipeline_mode = #tpu.pipeline_mode<synchronous>, transform_indices = @transform_5, window_bounds = array<i64: 9, 32, 32>}, {pipeline_mode = #tpu.pipeline_mode<synchronous>, transform_indices = @transform_6, window_bounds = array<i64: 9, 32, 32>}, {pipeline_mode = #tpu.pipeline_mode<synchronous>, transform_indices = @transform_7, window_bounds = array<i64: 9, 32, 16>}, {pipeline_mode = #tpu.pipeline_mode<synchronous>, transform_indices = @transform_8, window_bounds = array<i64: 1, 32>}, {pipeline_mode = #tpu.pipeline_mode<synchronous>, transform_indices = @transform_9, window_bounds = array<i64: 1, 32>}, {pipeline_mode = #tpu.pipeline_mode<synchronous>, transform_indices = @transform_10, window_bounds = array<i64: 1, 32>}, {pipeline_mode = #tpu.pipeline_mode<synchronous>, transform_indices = @transform_11, window_bounds = array<i64: 1, 16>}, {transform_indices = @transform_12, window_bounds = array<i64: 8, 16>}]} {
    %c0 = arith.constant 0 : index
    %c0_0 = arith.constant 0 : index
    %0 = vector.load %arg1[%c0, %c0_0] : memref<64x128xbf16, #tpu.memory_space<vmem>>, vector<64x128xbf16>
    %c0_1 = arith.constant 0 : index
    %c0_2 = arith.constant 0 : index
    %1 = vector.load %arg5[%c0_1, %c0_2] : memref<128x32xbf16, #tpu.memory_space<vmem>>, vector<128x32xbf16>
    %cst = arith.constant dense<0.000000e+00> : vector<64x32xf32>
    %2 = tpu.matmul %0, %1, %cst {dimension_numbers = #tpu.dot_dimension_numbers<[1], [0], [0], [1], [0, 0, 1, 1], [], []>} : vector<64x128xbf16>, vector<128x32xbf16>, vector<64x32xf32> -> vector<64x32xf32>
    %c0_3 = arith.constant 0 : index
    %c0_4 = arith.constant 0 : index
    %3 = vector.load %arg9[%c0_3, %c0_4] : memref<1x32xf32, #tpu.memory_space<vmem>>, vector<1x32xf32>
    %4 = vector.broadcast %3 : vector<1x32xf32> to vector<64x32xf32>
    %5 = arith.addf %2, %4 : vector<64x32xf32>
    %6 = arith.truncf %5 : vector<64x32xf32> to vector<64x32xbf16>
    %c0_5 = arith.constant 0 : index
    %c0_6 = arith.constant 0 : index
    %c0_7 = arith.constant 0 : index
    %7 = vector.load %arg2[%c0_5, %c0_6, %c0_7] : memref<9x16x64xbf16, #tpu.memory_space<vmem>>, vector<1x16x64xbf16>
    %8 = vector.shape_cast %7 : vector<1x16x64xbf16> to vector<16x64xbf16>
    %cst_8 = arith.constant dense<0.000000e+00> : vector<16x32xf32>
    %9 = tpu.matmul %8, %6, %cst_8 {dimension_numbers = #tpu.dot_dimension_numbers<[1], [0], [0], [1], [0, 0, 1, 1], [], []>} : vector<16x64xbf16>, vector<64x32xbf16>, vector<16x32xf32> -> vector<16x32xf32>
    %10 = arith.truncf %9 : vector<16x32xf32> to vector<16x32xbf16>
    %c0_9 = arith.constant 0 : index
    %c0_10 = arith.constant 0 : index
    %c0_11 = arith.constant 0 : index
    %11 = vector.load %arg6[%c0_9, %c0_10, %c0_11] : memref<9x32x32xbf16, #tpu.memory_space<vmem>>, vector<1x32x32xbf16>
    %12 = vector.shape_cast %11 : vector<1x32x32xbf16> to vector<32x32xbf16>
    %cst_12 = arith.constant dense<0.000000e+00> : vector<16x32xf32>
    %13 = tpu.matmul %10, %12, %cst_12 {dimension_numbers = #tpu.dot_dimension_numbers<[1], [0], [0], [1], [0, 0, 1, 1], [], []>} : vector<16x32xbf16>, vector<32x32xbf16>, vector<16x32xf32> -> vector<16x32xf32>
    %c1 = arith.constant 1 : index
    %c0_13 = arith.constant 0 : index
    %c0_14 = arith.constant 0 : index
    %14 = vector.load %arg2[%c1, %c0_13, %c0_14] : memref<9x16x64xbf16, #tpu.memory_space<vmem>>, vector<1x16x64xbf16>
    %15 = vector.shape_cast %14 : vector<1x16x64xbf16> to vector<16x64xbf16>
    %cst_15 = arith.constant dense<0.000000e+00> : vector<16x32xf32>
    %16 = tpu.matmul %15, %6, %cst_15 {dimension_numbers = #tpu.dot_dimension_numbers<[1], [0], [0], [1], [0, 0, 1, 1], [], []>} : vector<16x64xbf16>, vector<64x32xbf16>, vector<16x32xf32> -> vector<16x32xf32>
    %17 = arith.truncf %16 : vector<16x32xf32> to vector<16x32xbf16>
    %c1_16 = arith.constant 1 : index
    %c0_17 = arith.constant 0 : index
    %c0_18 = arith.constant 0 : index
    %18 = vector.load %arg6[%c1_16, %c0_17, %c0_18] : memref<9x32x32xbf16, #tpu.memory_space<vmem>>, vector<1x32x32xbf16>
    %19 = vector.shape_cast %18 : vector<1x32x32xbf16> to vector<32x32xbf16>
    %cst_19 = arith.constant dense<0.000000e+00> : vector<16x32xf32>
    %20 = tpu.matmul %17, %19, %cst_19 {dimension_numbers = #tpu.dot_dimension_numbers<[1], [0], [0], [1], [0, 0, 1, 1], [], []>} : vector<16x32xbf16>, vector<32x32xbf16>, vector<16x32xf32> -> vector<16x32xf32>
    %21 = arith.addf %13, %20 : vector<16x32xf32>
    %c2 = arith.constant 2 : index
    %c0_20 = arith.constant 0 : index
    %c0_21 = arith.constant 0 : index
    %22 = vector.load %arg2[%c2, %c0_20, %c0_21] : memref<9x16x64xbf16, #tpu.memory_space<vmem>>, vector<1x16x64xbf16>
    %23 = vector.shape_cast %22 : vector<1x16x64xbf16> to vector<16x64xbf16>
    %cst_22 = arith.constant dense<0.000000e+00> : vector<16x32xf32>
    %24 = tpu.matmul %23, %6, %cst_22 {dimension_numbers = #tpu.dot_dimension_numbers<[1], [0], [0], [1], [0, 0, 1, 1], [], []>} : vector<16x64xbf16>, vector<64x32xbf16>, vector<16x32xf32> -> vector<16x32xf32>
    %25 = arith.truncf %24 : vector<16x32xf32> to vector<16x32xbf16>
    %c2_23 = arith.constant 2 : index
    %c0_24 = arith.constant 0 : index
    %c0_25 = arith.constant 0 : index
    %26 = vector.load %arg6[%c2_23, %c0_24, %c0_25] : memref<9x32x32xbf16, #tpu.memory_space<vmem>>, vector<1x32x32xbf16>
    %27 = vector.shape_cast %26 : vector<1x32x32xbf16> to vector<32x32xbf16>
    %cst_26 = arith.constant dense<0.000000e+00> : vector<16x32xf32>
    %28 = tpu.matmul %25, %27, %cst_26 {dimension_numbers = #tpu.dot_dimension_numbers<[1], [0], [0], [1], [0, 0, 1, 1], [], []>} : vector<16x32xbf16>, vector<32x32xbf16>, vector<16x32xf32> -> vector<16x32xf32>
    %29 = arith.addf %21, %28 : vector<16x32xf32>
    %c3 = arith.constant 3 : index
    %c0_27 = arith.constant 0 : index
    %c0_28 = arith.constant 0 : index
    %30 = vector.load %arg2[%c3, %c0_27, %c0_28] : memref<9x16x64xbf16, #tpu.memory_space<vmem>>, vector<1x16x64xbf16>
    %31 = vector.shape_cast %30 : vector<1x16x64xbf16> to vector<16x64xbf16>
    %cst_29 = arith.constant dense<0.000000e+00> : vector<16x32xf32>
    %32 = tpu.matmul %31, %6, %cst_29 {dimension_numbers = #tpu.dot_dimension_numbers<[1], [0], [0], [1], [0, 0, 1, 1], [], []>} : vector<16x64xbf16>, vector<64x32xbf16>, vector<16x32xf32> -> vector<16x32xf32>
    %33 = arith.truncf %32 : vector<16x32xf32> to vector<16x32xbf16>
    %c3_30 = arith.constant 3 : index
    %c0_31 = arith.constant 0 : index
    %c0_32 = arith.constant 0 : index
    %34 = vector.load %arg6[%c3_30, %c0_31, %c0_32] : memref<9x32x32xbf16, #tpu.memory_space<vmem>>, vector<1x32x32xbf16>
    %35 = vector.shape_cast %34 : vector<1x32x32xbf16> to vector<32x32xbf16>
    %cst_33 = arith.constant dense<0.000000e+00> : vector<16x32xf32>
    %36 = tpu.matmul %33, %35, %cst_33 {dimension_numbers = #tpu.dot_dimension_numbers<[1], [0], [0], [1], [0, 0, 1, 1], [], []>} : vector<16x32xbf16>, vector<32x32xbf16>, vector<16x32xf32> -> vector<16x32xf32>
    %37 = arith.addf %29, %36 : vector<16x32xf32>
    %c4 = arith.constant 4 : index
    %c0_34 = arith.constant 0 : index
    %c0_35 = arith.constant 0 : index
    %38 = vector.load %arg2[%c4, %c0_34, %c0_35] : memref<9x16x64xbf16, #tpu.memory_space<vmem>>, vector<1x16x64xbf16>
    %39 = vector.shape_cast %38 : vector<1x16x64xbf16> to vector<16x64xbf16>
    %cst_36 = arith.constant dense<0.000000e+00> : vector<16x32xf32>
    %40 = tpu.matmul %39, %6, %cst_36 {dimension_numbers = #tpu.dot_dimension_numbers<[1], [0], [0], [1], [0, 0, 1, 1], [], []>} : vector<16x64xbf16>, vector<64x32xbf16>, vector<16x32xf32> -> vector<16x32xf32>
    %41 = arith.truncf %40 : vector<16x32xf32> to vector<16x32xbf16>
    %c4_37 = arith.constant 4 : index
    %c0_38 = arith.constant 0 : index
    %c0_39 = arith.constant 0 : index
    %42 = vector.load %arg6[%c4_37, %c0_38, %c0_39] : memref<9x32x32xbf16, #tpu.memory_space<vmem>>, vector<1x32x32xbf16>
    %43 = vector.shape_cast %42 : vector<1x32x32xbf16> to vector<32x32xbf16>
    %cst_40 = arith.constant dense<0.000000e+00> : vector<16x32xf32>
    %44 = tpu.matmul %41, %43, %cst_40 {dimension_numbers = #tpu.dot_dimension_numbers<[1], [0], [0], [1], [0, 0, 1, 1], [], []>} : vector<16x32xbf16>, vector<32x32xbf16>, vector<16x32xf32> -> vector<16x32xf32>
    %45 = arith.addf %37, %44 : vector<16x32xf32>
    %c5 = arith.constant 5 : index
    %c0_41 = arith.constant 0 : index
    %c0_42 = arith.constant 0 : index
    %46 = vector.load %arg2[%c5, %c0_41, %c0_42] : memref<9x16x64xbf16, #tpu.memory_space<vmem>>, vector<1x16x64xbf16>
    %47 = vector.shape_cast %46 : vector<1x16x64xbf16> to vector<16x64xbf16>
    %cst_43 = arith.constant dense<0.000000e+00> : vector<16x32xf32>
    %48 = tpu.matmul %47, %6, %cst_43 {dimension_numbers = #tpu.dot_dimension_numbers<[1], [0], [0], [1], [0, 0, 1, 1], [], []>} : vector<16x64xbf16>, vector<64x32xbf16>, vector<16x32xf32> -> vector<16x32xf32>
    %49 = arith.truncf %48 : vector<16x32xf32> to vector<16x32xbf16>
    %c5_44 = arith.constant 5 : index
    %c0_45 = arith.constant 0 : index
    %c0_46 = arith.constant 0 : index
    %50 = vector.load %arg6[%c5_44, %c0_45, %c0_46] : memref<9x32x32xbf16, #tpu.memory_space<vmem>>, vector<1x32x32xbf16>
    %51 = vector.shape_cast %50 : vector<1x32x32xbf16> to vector<32x32xbf16>
    %cst_47 = arith.constant dense<0.000000e+00> : vector<16x32xf32>
    %52 = tpu.matmul %49, %51, %cst_47 {dimension_numbers = #tpu.dot_dimension_numbers<[1], [0], [0], [1], [0, 0, 1, 1], [], []>} : vector<16x32xbf16>, vector<32x32xbf16>, vector<16x32xf32> -> vector<16x32xf32>
    %53 = arith.addf %45, %52 : vector<16x32xf32>
    %c6 = arith.constant 6 : index
    %c0_48 = arith.constant 0 : index
    %c0_49 = arith.constant 0 : index
    %54 = vector.load %arg2[%c6, %c0_48, %c0_49] : memref<9x16x64xbf16, #tpu.memory_space<vmem>>, vector<1x16x64xbf16>
    %55 = vector.shape_cast %54 : vector<1x16x64xbf16> to vector<16x64xbf16>
    %cst_50 = arith.constant dense<0.000000e+00> : vector<16x32xf32>
    %56 = tpu.matmul %55, %6, %cst_50 {dimension_numbers = #tpu.dot_dimension_numbers<[1], [0], [0], [1], [0, 0, 1, 1], [], []>} : vector<16x64xbf16>, vector<64x32xbf16>, vector<16x32xf32> -> vector<16x32xf32>
    %57 = arith.truncf %56 : vector<16x32xf32> to vector<16x32xbf16>
    %c6_51 = arith.constant 6 : index
    %c0_52 = arith.constant 0 : index
    %c0_53 = arith.constant 0 : index
    %58 = vector.load %arg6[%c6_51, %c0_52, %c0_53] : memref<9x32x32xbf16, #tpu.memory_space<vmem>>, vector<1x32x32xbf16>
    %59 = vector.shape_cast %58 : vector<1x32x32xbf16> to vector<32x32xbf16>
    %cst_54 = arith.constant dense<0.000000e+00> : vector<16x32xf32>
    %60 = tpu.matmul %57, %59, %cst_54 {dimension_numbers = #tpu.dot_dimension_numbers<[1], [0], [0], [1], [0, 0, 1, 1], [], []>} : vector<16x32xbf16>, vector<32x32xbf16>, vector<16x32xf32> -> vector<16x32xf32>
    %61 = arith.addf %53, %60 : vector<16x32xf32>
    %c7 = arith.constant 7 : index
    %c0_55 = arith.constant 0 : index
    %c0_56 = arith.constant 0 : index
    %62 = vector.load %arg2[%c7, %c0_55, %c0_56] : memref<9x16x64xbf16, #tpu.memory_space<vmem>>, vector<1x16x64xbf16>
    %63 = vector.shape_cast %62 : vector<1x16x64xbf16> to vector<16x64xbf16>
    %cst_57 = arith.constant dense<0.000000e+00> : vector<16x32xf32>
    %64 = tpu.matmul %63, %6, %cst_57 {dimension_numbers = #tpu.dot_dimension_numbers<[1], [0], [0], [1], [0, 0, 1, 1], [], []>} : vector<16x64xbf16>, vector<64x32xbf16>, vector<16x32xf32> -> vector<16x32xf32>
    %65 = arith.truncf %64 : vector<16x32xf32> to vector<16x32xbf16>
    %c7_58 = arith.constant 7 : index
    %c0_59 = arith.constant 0 : index
    %c0_60 = arith.constant 0 : index
    %66 = vector.load %arg6[%c7_58, %c0_59, %c0_60] : memref<9x32x32xbf16, #tpu.memory_space<vmem>>, vector<1x32x32xbf16>
    %67 = vector.shape_cast %66 : vector<1x32x32xbf16> to vector<32x32xbf16>
    %cst_61 = arith.constant dense<0.000000e+00> : vector<16x32xf32>
    %68 = tpu.matmul %65, %67, %cst_61 {dimension_numbers = #tpu.dot_dimension_numbers<[1], [0], [0], [1], [0, 0, 1, 1], [], []>} : vector<16x32xbf16>, vector<32x32xbf16>, vector<16x32xf32> -> vector<16x32xf32>
    %69 = arith.addf %61, %68 : vector<16x32xf32>
    %c8 = arith.constant 8 : index
    %c0_62 = arith.constant 0 : index
    %c0_63 = arith.constant 0 : index
    %70 = vector.load %arg2[%c8, %c0_62, %c0_63] : memref<9x16x64xbf16, #tpu.memory_space<vmem>>, vector<1x16x64xbf16>
    %71 = vector.shape_cast %70 : vector<1x16x64xbf16> to vector<16x64xbf16>
    %cst_64 = arith.constant dense<0.000000e+00> : vector<16x32xf32>
    %72 = tpu.matmul %71, %6, %cst_64 {dimension_numbers = #tpu.dot_dimension_numbers<[1], [0], [0], [1], [0, 0, 1, 1], [], []>} : vector<16x64xbf16>, vector<64x32xbf16>, vector<16x32xf32> -> vector<16x32xf32>
    %73 = arith.truncf %72 : vector<16x32xf32> to vector<16x32xbf16>
    %c8_65 = arith.constant 8 : index
    %c0_66 = arith.constant 0 : index
    %c0_67 = arith.constant 0 : index
    %74 = vector.load %arg6[%c8_65, %c0_66, %c0_67] : memref<9x32x32xbf16, #tpu.memory_space<vmem>>, vector<1x32x32xbf16>
    %75 = vector.shape_cast %74 : vector<1x32x32xbf16> to vector<32x32xbf16>
    %cst_68 = arith.constant dense<0.000000e+00> : vector<16x32xf32>
    %76 = tpu.matmul %73, %75, %cst_68 {dimension_numbers = #tpu.dot_dimension_numbers<[1], [0], [0], [1], [0, 0, 1, 1], [], []>} : vector<16x32xbf16>, vector<32x32xbf16>, vector<16x32xf32> -> vector<16x32xf32>
    %77 = arith.addf %69, %76 : vector<16x32xf32>
    %c0_69 = arith.constant 0 : index
    %c0_70 = arith.constant 0 : index
    %78 = vector.load %arg10[%c0_69, %c0_70] : memref<1x32xf32, #tpu.memory_space<vmem>>, vector<1x32xf32>
    %79 = vector.broadcast %78 : vector<1x32xf32> to vector<16x32xf32>
    %80 = arith.addf %77, %79 : vector<16x32xf32>
    %81 = arith.truncf %80 : vector<16x32xf32> to vector<16x32xbf16>
    %c0_71 = arith.constant 0 : index
    %c0_72 = arith.constant 0 : index
    %c0_73 = arith.constant 0 : index
    %82 = vector.load %arg3[%c0_71, %c0_72, %c0_73] : memref<9x8x16xbf16, #tpu.memory_space<vmem>>, vector<1x8x16xbf16>
    %83 = vector.shape_cast %82 : vector<1x8x16xbf16> to vector<8x16xbf16>
    %cst_74 = arith.constant dense<0.000000e+00> : vector<8x32xf32>
    %84 = tpu.matmul %83, %81, %cst_74 {dimension_numbers = #tpu.dot_dimension_numbers<[1], [0], [0], [1], [0, 0, 1, 1], [], []>} : vector<8x16xbf16>, vector<16x32xbf16>, vector<8x32xf32> -> vector<8x32xf32>
    %85 = arith.truncf %84 : vector<8x32xf32> to vector<8x32xbf16>
    %c0_75 = arith.constant 0 : index
    %c0_76 = arith.constant 0 : index
    %c0_77 = arith.constant 0 : index
    %86 = vector.load %arg7[%c0_75, %c0_76, %c0_77] : memref<9x32x32xbf16, #tpu.memory_space<vmem>>, vector<1x32x32xbf16>
    %87 = vector.shape_cast %86 : vector<1x32x32xbf16> to vector<32x32xbf16>
    %cst_78 = arith.constant dense<0.000000e+00> : vector<8x32xf32>
    %88 = tpu.matmul %85, %87, %cst_78 {dimension_numbers = #tpu.dot_dimension_numbers<[1], [0], [0], [1], [0, 0, 1, 1], [], []>} : vector<8x32xbf16>, vector<32x32xbf16>, vector<8x32xf32> -> vector<8x32xf32>
    %c1_79 = arith.constant 1 : index
    %c0_80 = arith.constant 0 : index
    %c0_81 = arith.constant 0 : index
    %89 = vector.load %arg3[%c1_79, %c0_80, %c0_81] : memref<9x8x16xbf16, #tpu.memory_space<vmem>>, vector<1x8x16xbf16>
    %90 = vector.shape_cast %89 : vector<1x8x16xbf16> to vector<8x16xbf16>
    %cst_82 = arith.constant dense<0.000000e+00> : vector<8x32xf32>
    %91 = tpu.matmul %90, %81, %cst_82 {dimension_numbers = #tpu.dot_dimension_numbers<[1], [0], [0], [1], [0, 0, 1, 1], [], []>} : vector<8x16xbf16>, vector<16x32xbf16>, vector<8x32xf32> -> vector<8x32xf32>
    %92 = arith.truncf %91 : vector<8x32xf32> to vector<8x32xbf16>
    %c1_83 = arith.constant 1 : index
    %c0_84 = arith.constant 0 : index
    %c0_85 = arith.constant 0 : index
    %93 = vector.load %arg7[%c1_83, %c0_84, %c0_85] : memref<9x32x32xbf16, #tpu.memory_space<vmem>>, vector<1x32x32xbf16>
    %94 = vector.shape_cast %93 : vector<1x32x32xbf16> to vector<32x32xbf16>
    %cst_86 = arith.constant dense<0.000000e+00> : vector<8x32xf32>
    %95 = tpu.matmul %92, %94, %cst_86 {dimension_numbers = #tpu.dot_dimension_numbers<[1], [0], [0], [1], [0, 0, 1, 1], [], []>} : vector<8x32xbf16>, vector<32x32xbf16>, vector<8x32xf32> -> vector<8x32xf32>
    %96 = arith.addf %88, %95 : vector<8x32xf32>
    %c2_87 = arith.constant 2 : index
    %c0_88 = arith.constant 0 : index
    %c0_89 = arith.constant 0 : index
    %97 = vector.load %arg3[%c2_87, %c0_88, %c0_89] : memref<9x8x16xbf16, #tpu.memory_space<vmem>>, vector<1x8x16xbf16>
    %98 = vector.shape_cast %97 : vector<1x8x16xbf16> to vector<8x16xbf16>
    %cst_90 = arith.constant dense<0.000000e+00> : vector<8x32xf32>
    %99 = tpu.matmul %98, %81, %cst_90 {dimension_numbers = #tpu.dot_dimension_numbers<[1], [0], [0], [1], [0, 0, 1, 1], [], []>} : vector<8x16xbf16>, vector<16x32xbf16>, vector<8x32xf32> -> vector<8x32xf32>
    %100 = arith.truncf %99 : vector<8x32xf32> to vector<8x32xbf16>
    %c2_91 = arith.constant 2 : index
    %c0_92 = arith.constant 0 : index
    %c0_93 = arith.constant 0 : index
    %101 = vector.load %arg7[%c2_91, %c0_92, %c0_93] : memref<9x32x32xbf16, #tpu.memory_space<vmem>>, vector<1x32x32xbf16>
    %102 = vector.shape_cast %101 : vector<1x32x32xbf16> to vector<32x32xbf16>
    %cst_94 = arith.constant dense<0.000000e+00> : vector<8x32xf32>
    %103 = tpu.matmul %100, %102, %cst_94 {dimension_numbers = #tpu.dot_dimension_numbers<[1], [0], [0], [1], [0, 0, 1, 1], [], []>} : vector<8x32xbf16>, vector<32x32xbf16>, vector<8x32xf32> -> vector<8x32xf32>
    %104 = arith.addf %96, %103 : vector<8x32xf32>
    %c3_95 = arith.constant 3 : index
    %c0_96 = arith.constant 0 : index
    %c0_97 = arith.constant 0 : index
    %105 = vector.load %arg3[%c3_95, %c0_96, %c0_97] : memref<9x8x16xbf16, #tpu.memory_space<vmem>>, vector<1x8x16xbf16>
    %106 = vector.shape_cast %105 : vector<1x8x16xbf16> to vector<8x16xbf16>
    %cst_98 = arith.constant dense<0.000000e+00> : vector<8x32xf32>
    %107 = tpu.matmul %106, %81, %cst_98 {dimension_numbers = #tpu.dot_dimension_numbers<[1], [0], [0], [1], [0, 0, 1, 1], [], []>} : vector<8x16xbf16>, vector<16x32xbf16>, vector<8x32xf32> -> vector<8x32xf32>
    %108 = arith.truncf %107 : vector<8x32xf32> to vector<8x32xbf16>
    %c3_99 = arith.constant 3 : index
    %c0_100 = arith.constant 0 : index
    %c0_101 = arith.constant 0 : index
    %109 = vector.load %arg7[%c3_99, %c0_100, %c0_101] : memref<9x32x32xbf16, #tpu.memory_space<vmem>>, vector<1x32x32xbf16>
    %110 = vector.shape_cast %109 : vector<1x32x32xbf16> to vector<32x32xbf16>
    %cst_102 = arith.constant dense<0.000000e+00> : vector<8x32xf32>
    %111 = tpu.matmul %108, %110, %cst_102 {dimension_numbers = #tpu.dot_dimension_numbers<[1], [0], [0], [1], [0, 0, 1, 1], [], []>} : vector<8x32xbf16>, vector<32x32xbf16>, vector<8x32xf32> -> vector<8x32xf32>
    %112 = arith.addf %104, %111 : vector<8x32xf32>
    %c4_103 = arith.constant 4 : index
    %c0_104 = arith.constant 0 : index
    %c0_105 = arith.constant 0 : index
    %113 = vector.load %arg3[%c4_103, %c0_104, %c0_105] : memref<9x8x16xbf16, #tpu.memory_space<vmem>>, vector<1x8x16xbf16>
    %114 = vector.shape_cast %113 : vector<1x8x16xbf16> to vector<8x16xbf16>
    %cst_106 = arith.constant dense<0.000000e+00> : vector<8x32xf32>
    %115 = tpu.matmul %114, %81, %cst_106 {dimension_numbers = #tpu.dot_dimension_numbers<[1], [0], [0], [1], [0, 0, 1, 1], [], []>} : vector<8x16xbf16>, vector<16x32xbf16>, vector<8x32xf32> -> vector<8x32xf32>
    %116 = arith.truncf %115 : vector<8x32xf32> to vector<8x32xbf16>
    %c4_107 = arith.constant 4 : index
    %c0_108 = arith.constant 0 : index
    %c0_109 = arith.constant 0 : index
    %117 = vector.load %arg7[%c4_107, %c0_108, %c0_109] : memref<9x32x32xbf16, #tpu.memory_space<vmem>>, vector<1x32x32xbf16>
    %118 = vector.shape_cast %117 : vector<1x32x32xbf16> to vector<32x32xbf16>
    %cst_110 = arith.constant dense<0.000000e+00> : vector<8x32xf32>
    %119 = tpu.matmul %116, %118, %cst_110 {dimension_numbers = #tpu.dot_dimension_numbers<[1], [0], [0], [1], [0, 0, 1, 1], [], []>} : vector<8x32xbf16>, vector<32x32xbf16>, vector<8x32xf32> -> vector<8x32xf32>
    %120 = arith.addf %112, %119 : vector<8x32xf32>
    %c5_111 = arith.constant 5 : index
    %c0_112 = arith.constant 0 : index
    %c0_113 = arith.constant 0 : index
    %121 = vector.load %arg3[%c5_111, %c0_112, %c0_113] : memref<9x8x16xbf16, #tpu.memory_space<vmem>>, vector<1x8x16xbf16>
    %122 = vector.shape_cast %121 : vector<1x8x16xbf16> to vector<8x16xbf16>
    %cst_114 = arith.constant dense<0.000000e+00> : vector<8x32xf32>
    %123 = tpu.matmul %122, %81, %cst_114 {dimension_numbers = #tpu.dot_dimension_numbers<[1], [0], [0], [1], [0, 0, 1, 1], [], []>} : vector<8x16xbf16>, vector<16x32xbf16>, vector<8x32xf32> -> vector<8x32xf32>
    %124 = arith.truncf %123 : vector<8x32xf32> to vector<8x32xbf16>
    %c5_115 = arith.constant 5 : index
    %c0_116 = arith.constant 0 : index
    %c0_117 = arith.constant 0 : index
    %125 = vector.load %arg7[%c5_115, %c0_116, %c0_117] : memref<9x32x32xbf16, #tpu.memory_space<vmem>>, vector<1x32x32xbf16>
    %126 = vector.shape_cast %125 : vector<1x32x32xbf16> to vector<32x32xbf16>
    %cst_118 = arith.constant dense<0.000000e+00> : vector<8x32xf32>
    %127 = tpu.matmul %124, %126, %cst_118 {dimension_numbers = #tpu.dot_dimension_numbers<[1], [0], [0], [1], [0, 0, 1, 1], [], []>} : vector<8x32xbf16>, vector<32x32xbf16>, vector<8x32xf32> -> vector<8x32xf32>
    %128 = arith.addf %120, %127 : vector<8x32xf32>
    %c6_119 = arith.constant 6 : index
    %c0_120 = arith.constant 0 : index
    %c0_121 = arith.constant 0 : index
    %129 = vector.load %arg3[%c6_119, %c0_120, %c0_121] : memref<9x8x16xbf16, #tpu.memory_space<vmem>>, vector<1x8x16xbf16>
    %130 = vector.shape_cast %129 : vector<1x8x16xbf16> to vector<8x16xbf16>
    %cst_122 = arith.constant dense<0.000000e+00> : vector<8x32xf32>
    %131 = tpu.matmul %130, %81, %cst_122 {dimension_numbers = #tpu.dot_dimension_numbers<[1], [0], [0], [1], [0, 0, 1, 1], [], []>} : vector<8x16xbf16>, vector<16x32xbf16>, vector<8x32xf32> -> vector<8x32xf32>
    %132 = arith.truncf %131 : vector<8x32xf32> to vector<8x32xbf16>
    %c6_123 = arith.constant 6 : index
    %c0_124 = arith.constant 0 : index
    %c0_125 = arith.constant 0 : index
    %133 = vector.load %arg7[%c6_123, %c0_124, %c0_125] : memref<9x32x32xbf16, #tpu.memory_space<vmem>>, vector<1x32x32xbf16>
    %134 = vector.shape_cast %133 : vector<1x32x32xbf16> to vector<32x32xbf16>
    %cst_126 = arith.constant dense<0.000000e+00> : vector<8x32xf32>
    %135 = tpu.matmul %132, %134, %cst_126 {dimension_numbers = #tpu.dot_dimension_numbers<[1], [0], [0], [1], [0, 0, 1, 1], [], []>} : vector<8x32xbf16>, vector<32x32xbf16>, vector<8x32xf32> -> vector<8x32xf32>
    %136 = arith.addf %128, %135 : vector<8x32xf32>
    %c7_127 = arith.constant 7 : index
    %c0_128 = arith.constant 0 : index
    %c0_129 = arith.constant 0 : index
    %137 = vector.load %arg3[%c7_127, %c0_128, %c0_129] : memref<9x8x16xbf16, #tpu.memory_space<vmem>>, vector<1x8x16xbf16>
    %138 = vector.shape_cast %137 : vector<1x8x16xbf16> to vector<8x16xbf16>
    %cst_130 = arith.constant dense<0.000000e+00> : vector<8x32xf32>
    %139 = tpu.matmul %138, %81, %cst_130 {dimension_numbers = #tpu.dot_dimension_numbers<[1], [0], [0], [1], [0, 0, 1, 1], [], []>} : vector<8x16xbf16>, vector<16x32xbf16>, vector<8x32xf32> -> vector<8x32xf32>
    %140 = arith.truncf %139 : vector<8x32xf32> to vector<8x32xbf16>
    %c7_131 = arith.constant 7 : index
    %c0_132 = arith.constant 0 : index
    %c0_133 = arith.constant 0 : index
    %141 = vector.load %arg7[%c7_131, %c0_132, %c0_133] : memref<9x32x32xbf16, #tpu.memory_space<vmem>>, vector<1x32x32xbf16>
    %142 = vector.shape_cast %141 : vector<1x32x32xbf16> to vector<32x32xbf16>
    %cst_134 = arith.constant dense<0.000000e+00> : vector<8x32xf32>
    %143 = tpu.matmul %140, %142, %cst_134 {dimension_numbers = #tpu.dot_dimension_numbers<[1], [0], [0], [1], [0, 0, 1, 1], [], []>} : vector<8x32xbf16>, vector<32x32xbf16>, vector<8x32xf32> -> vector<8x32xf32>
    %144 = arith.addf %136, %143 : vector<8x32xf32>
    %c8_135 = arith.constant 8 : index
    %c0_136 = arith.constant 0 : index
    %c0_137 = arith.constant 0 : index
    %145 = vector.load %arg3[%c8_135, %c0_136, %c0_137] : memref<9x8x16xbf16, #tpu.memory_space<vmem>>, vector<1x8x16xbf16>
    %146 = vector.shape_cast %145 : vector<1x8x16xbf16> to vector<8x16xbf16>
    %cst_138 = arith.constant dense<0.000000e+00> : vector<8x32xf32>
    %147 = tpu.matmul %146, %81, %cst_138 {dimension_numbers = #tpu.dot_dimension_numbers<[1], [0], [0], [1], [0, 0, 1, 1], [], []>} : vector<8x16xbf16>, vector<16x32xbf16>, vector<8x32xf32> -> vector<8x32xf32>
    %148 = arith.truncf %147 : vector<8x32xf32> to vector<8x32xbf16>
    %c8_139 = arith.constant 8 : index
    %c0_140 = arith.constant 0 : index
    %c0_141 = arith.constant 0 : index
    %149 = vector.load %arg7[%c8_139, %c0_140, %c0_141] : memref<9x32x32xbf16, #tpu.memory_space<vmem>>, vector<1x32x32xbf16>
    %150 = vector.shape_cast %149 : vector<1x32x32xbf16> to vector<32x32xbf16>
    %cst_142 = arith.constant dense<0.000000e+00> : vector<8x32xf32>
    %151 = tpu.matmul %148, %150, %cst_142 {dimension_numbers = #tpu.dot_dimension_numbers<[1], [0], [0], [1], [0, 0, 1, 1], [], []>} : vector<8x32xbf16>, vector<32x32xbf16>, vector<8x32xf32> -> vector<8x32xf32>
    %152 = arith.addf %144, %151 : vector<8x32xf32>
    %c0_143 = arith.constant 0 : index
    %c0_144 = arith.constant 0 : index
    %153 = vector.load %arg11[%c0_143, %c0_144] : memref<1x32xf32, #tpu.memory_space<vmem>>, vector<1x32xf32>
    %154 = vector.broadcast %153 : vector<1x32xf32> to vector<8x32xf32>
    %155 = arith.addf %152, %154 : vector<8x32xf32>
    %156 = arith.truncf %155 : vector<8x32xf32> to vector<8x32xbf16>
    %c0_145 = arith.constant 0 : index
    %c0_146 = arith.constant 0 : index
    %c0_147 = arith.constant 0 : index
    %157 = vector.load %arg4[%c0_145, %c0_146, %c0_147] : memref<9x8x8xbf16, #tpu.memory_space<vmem>>, vector<1x8x8xbf16>
    %158 = vector.shape_cast %157 : vector<1x8x8xbf16> to vector<8x8xbf16>
    %cst_148 = arith.constant dense<0.000000e+00> : vector<8x32xf32>
    %159 = tpu.matmul %158, %156, %cst_148 {dimension_numbers = #tpu.dot_dimension_numbers<[1], [0], [0], [1], [0, 0, 1, 1], [], []>} : vector<8x8xbf16>, vector<8x32xbf16>, vector<8x32xf32> -> vector<8x32xf32>
    %160 = arith.truncf %159 : vector<8x32xf32> to vector<8x32xbf16>
    %c0_149 = arith.constant 0 : index
    %c0_150 = arith.constant 0 : index
    %c0_151 = arith.constant 0 : index
    %161 = vector.load %arg8[%c0_149, %c0_150, %c0_151] : memref<9x32x16xbf16, #tpu.memory_space<vmem>>, vector<1x32x16xbf16>
    %162 = vector.shape_cast %161 : vector<1x32x16xbf16> to vector<32x16xbf16>
    %cst_152 = arith.constant dense<0.000000e+00> : vector<8x16xf32>
    %163 = tpu.matmul %160, %162, %cst_152 {dimension_numbers = #tpu.dot_dimension_numbers<[1], [0], [0], [1], [0, 0, 1, 1], [], []>} : vector<8x32xbf16>, vector<32x16xbf16>, vector<8x16xf32> -> vector<8x16xf32>
    %c1_153 = arith.constant 1 : index
    %c0_154 = arith.constant 0 : index
    %c0_155 = arith.constant 0 : index
    %164 = vector.load %arg4[%c1_153, %c0_154, %c0_155] : memref<9x8x8xbf16, #tpu.memory_space<vmem>>, vector<1x8x8xbf16>
    %165 = vector.shape_cast %164 : vector<1x8x8xbf16> to vector<8x8xbf16>
    %cst_156 = arith.constant dense<0.000000e+00> : vector<8x32xf32>
    %166 = tpu.matmul %165, %156, %cst_156 {dimension_numbers = #tpu.dot_dimension_numbers<[1], [0], [0], [1], [0, 0, 1, 1], [], []>} : vector<8x8xbf16>, vector<8x32xbf16>, vector<8x32xf32> -> vector<8x32xf32>
    %167 = arith.truncf %166 : vector<8x32xf32> to vector<8x32xbf16>
    %c1_157 = arith.constant 1 : index
    %c0_158 = arith.constant 0 : index
    %c0_159 = arith.constant 0 : index
    %168 = vector.load %arg8[%c1_157, %c0_158, %c0_159] : memref<9x32x16xbf16, #tpu.memory_space<vmem>>, vector<1x32x16xbf16>
    %169 = vector.shape_cast %168 : vector<1x32x16xbf16> to vector<32x16xbf16>
    %cst_160 = arith.constant dense<0.000000e+00> : vector<8x16xf32>
    %170 = tpu.matmul %167, %169, %cst_160 {dimension_numbers = #tpu.dot_dimension_numbers<[1], [0], [0], [1], [0, 0, 1, 1], [], []>} : vector<8x32xbf16>, vector<32x16xbf16>, vector<8x16xf32> -> vector<8x16xf32>
    %171 = arith.addf %163, %170 : vector<8x16xf32>
    %c2_161 = arith.constant 2 : index
    %c0_162 = arith.constant 0 : index
    %c0_163 = arith.constant 0 : index
    %172 = vector.load %arg4[%c2_161, %c0_162, %c0_163] : memref<9x8x8xbf16, #tpu.memory_space<vmem>>, vector<1x8x8xbf16>
    %173 = vector.shape_cast %172 : vector<1x8x8xbf16> to vector<8x8xbf16>
    %cst_164 = arith.constant dense<0.000000e+00> : vector<8x32xf32>
    %174 = tpu.matmul %173, %156, %cst_164 {dimension_numbers = #tpu.dot_dimension_numbers<[1], [0], [0], [1], [0, 0, 1, 1], [], []>} : vector<8x8xbf16>, vector<8x32xbf16>, vector<8x32xf32> -> vector<8x32xf32>
    %175 = arith.truncf %174 : vector<8x32xf32> to vector<8x32xbf16>
    %c2_165 = arith.constant 2 : index
    %c0_166 = arith.constant 0 : index
    %c0_167 = arith.constant 0 : index
    %176 = vector.load %arg8[%c2_165, %c0_166, %c0_167] : memref<9x32x16xbf16, #tpu.memory_space<vmem>>, vector<1x32x16xbf16>
    %177 = vector.shape_cast %176 : vector<1x32x16xbf16> to vector<32x16xbf16>
    %cst_168 = arith.constant dense<0.000000e+00> : vector<8x16xf32>
    %178 = tpu.matmul %175, %177, %cst_168 {dimension_numbers = #tpu.dot_dimension_numbers<[1], [0], [0], [1], [0, 0, 1, 1], [], []>} : vector<8x32xbf16>, vector<32x16xbf16>, vector<8x16xf32> -> vector<8x16xf32>
    %179 = arith.addf %171, %178 : vector<8x16xf32>
    %c3_169 = arith.constant 3 : index
    %c0_170 = arith.constant 0 : index
    %c0_171 = arith.constant 0 : index
    %180 = vector.load %arg4[%c3_169, %c0_170, %c0_171] : memref<9x8x8xbf16, #tpu.memory_space<vmem>>, vector<1x8x8xbf16>
    %181 = vector.shape_cast %180 : vector<1x8x8xbf16> to vector<8x8xbf16>
    %cst_172 = arith.constant dense<0.000000e+00> : vector<8x32xf32>
    %182 = tpu.matmul %181, %156, %cst_172 {dimension_numbers = #tpu.dot_dimension_numbers<[1], [0], [0], [1], [0, 0, 1, 1], [], []>} : vector<8x8xbf16>, vector<8x32xbf16>, vector<8x32xf32> -> vector<8x32xf32>
    %183 = arith.truncf %182 : vector<8x32xf32> to vector<8x32xbf16>
    %c3_173 = arith.constant 3 : index
    %c0_174 = arith.constant 0 : index
    %c0_175 = arith.constant 0 : index
    %184 = vector.load %arg8[%c3_173, %c0_174, %c0_175] : memref<9x32x16xbf16, #tpu.memory_space<vmem>>, vector<1x32x16xbf16>
    %185 = vector.shape_cast %184 : vector<1x32x16xbf16> to vector<32x16xbf16>
    %cst_176 = arith.constant dense<0.000000e+00> : vector<8x16xf32>
    %186 = tpu.matmul %183, %185, %cst_176 {dimension_numbers = #tpu.dot_dimension_numbers<[1], [0], [0], [1], [0, 0, 1, 1], [], []>} : vector<8x32xbf16>, vector<32x16xbf16>, vector<8x16xf32> -> vector<8x16xf32>
    %187 = arith.addf %179, %186 : vector<8x16xf32>
    %c4_177 = arith.constant 4 : index
    %c0_178 = arith.constant 0 : index
    %c0_179 = arith.constant 0 : index
    %188 = vector.load %arg4[%c4_177, %c0_178, %c0_179] : memref<9x8x8xbf16, #tpu.memory_space<vmem>>, vector<1x8x8xbf16>
    %189 = vector.shape_cast %188 : vector<1x8x8xbf16> to vector<8x8xbf16>
    %cst_180 = arith.constant dense<0.000000e+00> : vector<8x32xf32>
    %190 = tpu.matmul %189, %156, %cst_180 {dimension_numbers = #tpu.dot_dimension_numbers<[1], [0], [0], [1], [0, 0, 1, 1], [], []>} : vector<8x8xbf16>, vector<8x32xbf16>, vector<8x32xf32> -> vector<8x32xf32>
    %191 = arith.truncf %190 : vector<8x32xf32> to vector<8x32xbf16>
    %c4_181 = arith.constant 4 : index
    %c0_182 = arith.constant 0 : index
    %c0_183 = arith.constant 0 : index
    %192 = vector.load %arg8[%c4_181, %c0_182, %c0_183] : memref<9x32x16xbf16, #tpu.memory_space<vmem>>, vector<1x32x16xbf16>
    %193 = vector.shape_cast %192 : vector<1x32x16xbf16> to vector<32x16xbf16>
    %cst_184 = arith.constant dense<0.000000e+00> : vector<8x16xf32>
    %194 = tpu.matmul %191, %193, %cst_184 {dimension_numbers = #tpu.dot_dimension_numbers<[1], [0], [0], [1], [0, 0, 1, 1], [], []>} : vector<8x32xbf16>, vector<32x16xbf16>, vector<8x16xf32> -> vector<8x16xf32>
    %195 = arith.addf %187, %194 : vector<8x16xf32>
    %c5_185 = arith.constant 5 : index
    %c0_186 = arith.constant 0 : index
    %c0_187 = arith.constant 0 : index
    %196 = vector.load %arg4[%c5_185, %c0_186, %c0_187] : memref<9x8x8xbf16, #tpu.memory_space<vmem>>, vector<1x8x8xbf16>
    %197 = vector.shape_cast %196 : vector<1x8x8xbf16> to vector<8x8xbf16>
    %cst_188 = arith.constant dense<0.000000e+00> : vector<8x32xf32>
    %198 = tpu.matmul %197, %156, %cst_188 {dimension_numbers = #tpu.dot_dimension_numbers<[1], [0], [0], [1], [0, 0, 1, 1], [], []>} : vector<8x8xbf16>, vector<8x32xbf16>, vector<8x32xf32> -> vector<8x32xf32>
    %199 = arith.truncf %198 : vector<8x32xf32> to vector<8x32xbf16>
    %c5_189 = arith.constant 5 : index
    %c0_190 = arith.constant 0 : index
    %c0_191 = arith.constant 0 : index
    %200 = vector.load %arg8[%c5_189, %c0_190, %c0_191] : memref<9x32x16xbf16, #tpu.memory_space<vmem>>, vector<1x32x16xbf16>
    %201 = vector.shape_cast %200 : vector<1x32x16xbf16> to vector<32x16xbf16>
    %cst_192 = arith.constant dense<0.000000e+00> : vector<8x16xf32>
    %202 = tpu.matmul %199, %201, %cst_192 {dimension_numbers = #tpu.dot_dimension_numbers<[1], [0], [0], [1], [0, 0, 1, 1], [], []>} : vector<8x32xbf16>, vector<32x16xbf16>, vector<8x16xf32> -> vector<8x16xf32>
    %203 = arith.addf %195, %202 : vector<8x16xf32>
    %c6_193 = arith.constant 6 : index
    %c0_194 = arith.constant 0 : index
    %c0_195 = arith.constant 0 : index
    %204 = vector.load %arg4[%c6_193, %c0_194, %c0_195] : memref<9x8x8xbf16, #tpu.memory_space<vmem>>, vector<1x8x8xbf16>
    %205 = vector.shape_cast %204 : vector<1x8x8xbf16> to vector<8x8xbf16>
    %cst_196 = arith.constant dense<0.000000e+00> : vector<8x32xf32>
    %206 = tpu.matmul %205, %156, %cst_196 {dimension_numbers = #tpu.dot_dimension_numbers<[1], [0], [0], [1], [0, 0, 1, 1], [], []>} : vector<8x8xbf16>, vector<8x32xbf16>, vector<8x32xf32> -> vector<8x32xf32>
    %207 = arith.truncf %206 : vector<8x32xf32> to vector<8x32xbf16>
    %c6_197 = arith.constant 6 : index
    %c0_198 = arith.constant 0 : index
    %c0_199 = arith.constant 0 : index
    %208 = vector.load %arg8[%c6_197, %c0_198, %c0_199] : memref<9x32x16xbf16, #tpu.memory_space<vmem>>, vector<1x32x16xbf16>
    %209 = vector.shape_cast %208 : vector<1x32x16xbf16> to vector<32x16xbf16>
    %cst_200 = arith.constant dense<0.000000e+00> : vector<8x16xf32>
    %210 = tpu.matmul %207, %209, %cst_200 {dimension_numbers = #tpu.dot_dimension_numbers<[1], [0], [0], [1], [0, 0, 1, 1], [], []>} : vector<8x32xbf16>, vector<32x16xbf16>, vector<8x16xf32> -> vector<8x16xf32>
    %211 = arith.addf %203, %210 : vector<8x16xf32>
    %c7_201 = arith.constant 7 : index
    %c0_202 = arith.constant 0 : index
    %c0_203 = arith.constant 0 : index
    %212 = vector.load %arg4[%c7_201, %c0_202, %c0_203] : memref<9x8x8xbf16, #tpu.memory_space<vmem>>, vector<1x8x8xbf16>
    %213 = vector.shape_cast %212 : vector<1x8x8xbf16> to vector<8x8xbf16>
    %cst_204 = arith.constant dense<0.000000e+00> : vector<8x32xf32>
    %214 = tpu.matmul %213, %156, %cst_204 {dimension_numbers = #tpu.dot_dimension_numbers<[1], [0], [0], [1], [0, 0, 1, 1], [], []>} : vector<8x8xbf16>, vector<8x32xbf16>, vector<8x32xf32> -> vector<8x32xf32>
    %215 = arith.truncf %214 : vector<8x32xf32> to vector<8x32xbf16>
    %c7_205 = arith.constant 7 : index
    %c0_206 = arith.constant 0 : index
    %c0_207 = arith.constant 0 : index
    %216 = vector.load %arg8[%c7_205, %c0_206, %c0_207] : memref<9x32x16xbf16, #tpu.memory_space<vmem>>, vector<1x32x16xbf16>
    %217 = vector.shape_cast %216 : vector<1x32x16xbf16> to vector<32x16xbf16>
    %cst_208 = arith.constant dense<0.000000e+00> : vector<8x16xf32>
    %218 = tpu.matmul %215, %217, %cst_208 {dimension_numbers = #tpu.dot_dimension_numbers<[1], [0], [0], [1], [0, 0, 1, 1], [], []>} : vector<8x32xbf16>, vector<32x16xbf16>, vector<8x16xf32> -> vector<8x16xf32>
    %219 = arith.addf %211, %218 : vector<8x16xf32>
    %c8_209 = arith.constant 8 : index
    %c0_210 = arith.constant 0 : index
    %c0_211 = arith.constant 0 : index
    %220 = vector.load %arg4[%c8_209, %c0_210, %c0_211] : memref<9x8x8xbf16, #tpu.memory_space<vmem>>, vector<1x8x8xbf16>
    %221 = vector.shape_cast %220 : vector<1x8x8xbf16> to vector<8x8xbf16>
    %cst_212 = arith.constant dense<0.000000e+00> : vector<8x32xf32>
    %222 = tpu.matmul %221, %156, %cst_212 {dimension_numbers = #tpu.dot_dimension_numbers<[1], [0], [0], [1], [0, 0, 1, 1], [], []>} : vector<8x8xbf16>, vector<8x32xbf16>, vector<8x32xf32> -> vector<8x32xf32>
    %223 = arith.truncf %222 : vector<8x32xf32> to vector<8x32xbf16>
    %c8_213 = arith.constant 8 : index
    %c0_214 = arith.constant 0 : index
    %c0_215 = arith.constant 0 : index
    %224 = vector.load %arg8[%c8_213, %c0_214, %c0_215] : memref<9x32x16xbf16, #tpu.memory_space<vmem>>, vector<1x32x16xbf16>
    %225 = vector.shape_cast %224 : vector<1x32x16xbf16> to vector<32x16xbf16>
    %cst_216 = arith.constant dense<0.000000e+00> : vector<8x16xf32>
    %226 = tpu.matmul %223, %225, %cst_216 {dimension_numbers = #tpu.dot_dimension_numbers<[1], [0], [0], [1], [0, 0, 1, 1], [], []>} : vector<8x32xbf16>, vector<32x16xbf16>, vector<8x16xf32> -> vector<8x16xf32>
    %227 = arith.addf %219, %226 : vector<8x16xf32>
    %c0_217 = arith.constant 0 : index
    %c0_218 = arith.constant 0 : index
    %228 = vector.load %arg12[%c0_217, %c0_218] : memref<1x16xf32, #tpu.memory_space<vmem>>, vector<1x16xf32>
    %229 = vector.broadcast %228 : vector<1x16xf32> to vector<8x16xf32>
    %230 = arith.addf %227, %229 : vector<8x16xf32>
    %c0_219 = arith.constant 0 : index
    %c0_220 = arith.constant 0 : index
    %231 = vector.load %arg13[%c0_219, %c0_220] : memref<8x16xf32, #tpu.memory_space<vmem>>, vector<8x16xf32>
    tpu.vector_store %arg13[%c0_219, %c0_220], %230 {strides = array<i32>} : memref<8x16xf32, #tpu.memory_space<vmem>>, vector<8x16xf32>,
    return
  }
  func.func @transform_0(%arg0: i32) -> (i32, i32) {
    %c0_i32 = arith.constant 0 : i32
    %c0_i32_0 = arith.constant 0 : i32
    return %arg0, %c0_i32 : i32, i32
  }
  func.func @transform_1(%arg0: i32) -> (i32, i32, i32) {
    %c0_i32 = arith.constant 0 : i32
    %c0_i32_0 = arith.constant 0 : i32
    %c0_i32_1 = arith.constant 0 : i32
    %c0_i32_2 = arith.constant 0 : i32
    return %c0_i32, %c0_i32_0, %c0_i32_1 : i32, i32, i32
  }
  func.func @transform_2(%arg0: i32) -> (i32, i32, i32) {
    %c0_i32 = arith.constant 0 : i32
    %c0_i32_0 = arith.constant 0 : i32
    %c0_i32_1 = arith.constant 0 : i32
    %c0_i32_2 = arith.constant 0 : i32
    return %c0_i32, %c0_i32_0, %c0_i32_1 : i32, i32, i32
  }
  func.func @transform_3(%arg0: i32) -> (i32, i32, i32) {
    %c0_i32 = arith.constant 0 : i32
    %c0_i32_0 = arith.constant 0 : i32
    %c0_i32_1 = arith.constant 0 : i32
    %c0_i32_2 = arith.constant 0 : i32
    return %c0_i32, %c0_i32_0, %c0_i32_1 : i32, i32, i32
  }
  func.func @transform_4(%arg0: i32) -> (i32, i32) {
    %c0_i32 = arith.constant 0 : i32
    %c0_i32_0 = arith.constant 0 : i32
    %c0_i32_1 = arith.constant 0 : i32
    return %c0_i32, %c0_i32_0 : i32, i32
  }
  func.func @transform_5(%arg0: i32) -> (i32, i32, i32) {
    %c0_i32 = arith.constant 0 : i32
    %c0_i32_0 = arith.constant 0 : i32
    %c0_i32_1 = arith.constant 0 : i32
    %c0_i32_2 = arith.constant 0 : i32
    return %c0_i32, %c0_i32_0, %c0_i32_1 : i32, i32, i32
  }
  func.func @transform_6(%arg0: i32) -> (i32, i32, i32) {
    %c0_i32 = arith.constant 0 : i32
    %c0_i32_0 = arith.constant 0 : i32
    %c0_i32_1 = arith.constant 0 : i32
    %c0_i32_2 = arith.constant 0 : i32
    return %c0_i32, %c0_i32_0, %c0_i32_1 : i32, i32, i32
  }
  func.func @transform_7(%arg0: i32) -> (i32, i32, i32) {
    %c0_i32 = arith.constant 0 : i32
    %c0_i32_0 = arith.constant 0 : i32
    %c0_i32_1 = arith.constant 0 : i32
    %c0_i32_2 = arith.constant 0 : i32
    return %c0_i32, %c0_i32_0, %c0_i32_1 : i32, i32, i32
  }
  func.func @transform_8(%arg0: i32) -> (i32, i32) {
    %c0_i32 = arith.constant 0 : i32
    %c0_i32_0 = arith.constant 0 : i32
    %c0_i32_1 = arith.constant 0 : i32
    return %c0_i32, %c0_i32_0 : i32, i32
  }
  func.func @transform_9(%arg0: i32) -> (i32, i32) {
    %c0_i32 = arith.constant 0 : i32
    %c0_i32_0 = arith.constant 0 : i32
    %c0_i32_1 = arith.constant 0 : i32
    return %c0_i32, %c0_i32_0 : i32, i32
  }
  func.func @transform_10(%arg0: i32) -> (i32, i32) {
    %c0_i32 = arith.constant 0 : i32
    %c0_i32_0 = arith.constant 0 : i32
    %c0_i32_1 = arith.constant 0 : i32
    return %c0_i32, %c0_i32_0 : i32, i32
  }
  func.func @transform_11(%arg0: i32) -> (i32, i32) {
    %c0_i32 = arith.constant 0 : i32
    %c0_i32_0 = arith.constant 0 : i32
    %c0_i32_1 = arith.constant 0 : i32
    return %c0_i32, %c0_i32_0 : i32, i32
  }
  func.func @transform_12(%arg0: i32) -> (i32, i32) {
    %c0_i32 = arith.constant 0 : i32
    %c0_i32_0 = arith.constant 0 : i32
    return %arg0, %c0_i32 : i32, i32
  }
}

</mosaic_0001>

<llo_original>
// kernel: forward.1
$region0: #{forward.1}
  #allocation0 [shape = 'u32[]', space=smem, size = 0x4, offset = 0x4, fixed_abs, tag = 'smem constant byte address 0x4 - core index']
  #allocation1 [shape = 'u32[144,128]{1,0:T(1,128)}', space=vmem, size = 0x12000, scoped, tag = 'internal scratch']
  %s0 = inlined_call_operand.vmem [shape: bf16[128,128], index: 0, kind: input, shape index: {}]
  %s1 = inlined_call_operand.vmem [shape: bf16[9,16,64], index: 1, kind: input, shape index: {}]
  %s2 = inlined_call_operand.vmem [shape: bf16[9,8,16], index: 2, kind: input, shape index: {}]
  %s3 = inlined_call_operand.vmem [shape: bf16[9,8,8], index: 3, kind: input, shape index: {}]
  %s4 = inlined_call_operand.vmem [shape: bf16[128,32], index: 4, kind: input, shape index: {}]
  %s5 = inlined_call_operand.vmem [shape: bf16[9,32,32], index: 5, kind: input, shape index: {}]
  %s6 = inlined_call_operand.vmem [shape: bf16[9,32,32], index: 6, kind: input, shape index: {}]
  %s7 = inlined_call_operand.vmem [shape: bf16[9,32,16], index: 7, kind: input, shape index: {}]
  %s8 = inlined_call_operand.vmem [shape: f32[1,32], index: 8, kind: input, shape index: {}]
  %s9 = inlined_call_operand.vmem [shape: f32[1,32], index: 9, kind: input, shape index: {}]
  %s10 = inlined_call_operand.vmem [shape: f32[1,32], index: 10, kind: input, shape index: {}]
  %s11 = inlined_call_operand.vmem [shape: f32[1,16], index: 11, kind: input, shape index: {}]
  %s12 = inlined_call_operand.vmem [shape: f32[16,16], index: 12, kind: output, shape index: {}]
  %s13 = sld [smem:[#allocation0]]
  $region81: #{forward.1} parent=0
    _
  %s15 = ssub.s32 1, %s13
  %s16 = scalar_select 0, %s15, %s13
  loop: start=0, step=1, limit=4
  $region2: #{forward.1} parent=0 // loop_pre_header
    _
  $region3: #{forward.1} parent=0 // loop_header
    %s18 = sphi 0, %s22
    %p19 = scmp.ge.s32.totalorder %s18, 4
    %s28 = sphi 0, %s30
    %s31 = sphi 0, %s28
    %s32 = sphi 0, %s31
    %s48 = sphi 0, %s32
    %s52 = sphi 0, %s52
    %s54 = sphi 0, %s52
    %s55 = sphi 0, %s54
    %s69 = sphi 0, %s55
    %s73 = sphi 0, %s73
    %s75 = sphi 0, %s73
    %s76 = sphi 0, %s75
    %s90 = sphi 0, %s76
    %s94 = sphi 0, %s94
    %s96 = sphi 0, %s94
    %s97 = sphi 0, %s96
    %s111 = sphi 0, %s97
    %s115 = sphi 0, %s115
    %s117 = sphi 0, %s115
    %s118 = sphi 0, %s117
    %s132 = sphi 0, %s118
    %s136 = sphi 0, %s136
    %s138 = sphi 0, %s136
    %s139 = sphi 0, %s138
    %s153 = sphi 0, %s139
    %s157 = sphi 0, %s157
    %s159 = sphi 0, %s157
    %s160 = sphi 0, %s159
    %s174 = sphi 0, %s160
    %s178 = sphi 0, %s178
    %s180 = sphi 0, %s178
    %s181 = sphi 0, %s180
    %s195 = sphi 0, %s181
    %s199 = sphi 0, %s199
    %s201 = sphi 0, %s199
    %s202 = sphi 0, %s201
    %s216 = sphi 0, %s202
    %s220 = sphi 0, %s220
    %s222 = sphi 0, %s220
    %s223 = sphi 0, %s222
    %s237 = sphi 0, %s223
    %s241 = sphi 0, %s241
    %s243 = sphi 0, %s241
    %s244 = sphi 0, %s243
    %s258 = sphi 0, %s244
    %s262 = sphi 0, %s262
    %s264 = sphi 0, %s262
    %s265 = sphi 0, %s264
    %s279 = sphi 0, %s265
    %s285 = sphi 0, %s287
    %s288 = sphi 0, %s285
    %s289 = sphi 0, %s288
    %s305 = sphi 0, %s289
  $region4: #{forward.1} parent=0 // loop_header_branch
    %21 = sbr.rel (%p19) target = $region8
  $region5: #{forward.1} parent=0 // loop_body
    %s23 = ssub.s32 %s18, 1
    %s24 = ssub.s32 %s18, 2
    %s25 = sadd.s32 %s18, 1
    %s26 = ssub.s32 %s18, %s25
    %p27 = scmp.eq.s32.totalorder %s26, 0
    %s29 = sadd.s32 %s28, 1
    %s30 = scalar_select %p27, %s28, %s29
    %p33 = pneg %p27
    %p34 = scmp.eq.s32.totalorder %s18, 1
    %p35 = por %p33, %p34
    %p36 = scmp.ne.s32.totalorder %s28, %s31
    %p37 = scmp.eq.s32.totalorder %s18, 0
    %p38 = por %p36, %p37
    %p39 = scmp.ne.s32.totalorder %s28, %s31
    %p40 = scmp.eq.s32.totalorder %s23, 1
    %p41 = por %p39, %p40
    %p42 = scmp.ne.s32.totalorder %s31, %s32
    %p43 = scmp.eq.s32.totalorder %s23, 0
    %p44 = por %p42, %p43
    %p45 = scmp.ne.s32.totalorder %s31, %s32
    %p46 = scmp.eq.s32.totalorder %s24, 1
    %p47 = por %p45, %p46
    %p49 = scmp.ne.s32.totalorder %s32, %s48
    %p50 = scmp.eq.s32.totalorder %s24, 0
    %p51 = por %p49, %p50
    %s53 = sadd.s32 %s52, 1
    %p56 = scmp.eq.s32.totalorder %s18, 1
    %p57 = scmp.ne.s32.totalorder %s52, %s54
    %p58 = scmp.eq.s32.totalorder %s18, 0
    %p59 = por %p57, %p58
    %p60 = scmp.ne.s32.totalorder %s52, %s54
    %p61 = scmp.eq.s32.totalorder %s23, 1
    %p62 = por %p60, %p61
    %p63 = scmp.ne.s32.totalorder %s54, %s55
    %p64 = scmp.eq.s32.totalorder %s23, 0
    %p65 = por %p63, %p64
    %p66 = scmp.ne.s32.totalorder %s54, %s55
    %p67 = scmp.eq.s32.totalorder %s24, 1
    %p68 = por %p66, %p67
    %p70 = scmp.ne.s32.totalorder %s55, %s69
    %p71 = scmp.eq.s32.totalorder %s24, 0
    %p72 = por %p70, %p71
    %s74 = sadd.s32 %s73, 1
    %p77 = scmp.eq.s32.totalorder %s18, 1
    %p78 = scmp.ne.s32.totalorder %s73, %s75
    %p79 = scmp.eq.s32.totalorder %s18, 0
    %p80 = por %p78, %p79
    %p81 = scmp.ne.s32.totalorder %s73, %s75
    %p82 = scmp.eq.s32.totalorder %s23, 1
    %p83 = por %p81, %p82
    %p84 = scmp.ne.s32.totalorder %s75, %s76
    %p85 = scmp.eq.s32.totalorder %s23, 0
    %p86 = por %p84, %p85
    %p87 = scmp.ne.s32.totalorder %s75, %s76
    %p88 = scmp.eq.s32.totalorder %s24, 1
    %p89 = por %p87, %p88
    %p91 = scmp.ne.s32.totalorder %s76, %s90
    %p92 = scmp.eq.s32.totalorder %s24, 0
    %p93 = por %p91, %p92
    %s95 = sadd.s32 %s94, 1
    %p98 = scmp.eq.s32.totalorder %s18, 1
    %p99 = scmp.ne.s32.totalorder %s94, %s96
    %p100 = scmp.eq.s32.totalorder %s18, 0
    %p101 = por %p99, %p100
    %p102 = scmp.ne.s32.totalorder %s94, %s96
    %p103 = scmp.eq.s32.totalorder %s23, 1
    %p104 = por %p102, %p103
    %p105 = scmp.ne.s32.totalorder %s96, %s97
    %p106 = scmp.eq.s32.totalorder %s23, 0
    %p107 = por %p105, %p106
    %p108 = scmp.ne.s32.totalorder %s96, %s97
    %p109 = scmp.eq.s32.totalorder %s24, 1
    %p110 = por %p108, %p109
    %p112 = scmp.ne.s32.totalorder %s97, %s111
    %p113 = scmp.eq.s32.totalorder %s24, 0
    %p114 = por %p112, %p113
    %s116 = sadd.s32 %s115, 1
    %p119 = scmp.eq.s32.totalorder %s18, 1
    %p120 = scmp.ne.s32.totalorder %s115, %s117
    %p121 = scmp.eq.s32.totalorder %s18, 0
    %p122 = por %p120, %p121
    %p123 = scmp.ne.s32.totalorder %s115, %s117
    %p124 = scmp.eq.s32.totalorder %s23, 1
    %p125 = por %p123, %p124
    %p126 = scmp.ne.s32.totalorder %s117, %s118
    %p127 = scmp.eq.s32.totalorder %s23, 0
    %p128 = por %p126, %p127
    %p129 = scmp.ne.s32.totalorder %s117, %s118
    %p130 = scmp.eq.s32.totalorder %s24, 1
    %p131 = por %p129, %p130
    %p133 = scmp.ne.s32.totalorder %s118, %s132
    %p134 = scmp.eq.s32.totalorder %s24, 0
    %p135 = por %p133, %p134
    %s137 = sadd.s32 %s136, 1
    %p140 = scmp.eq.s32.totalorder %s18, 1
    %p141 = scmp.ne.s32.totalorder %s136, %s138
    %p142 = scmp.eq.s32.totalorder %s18, 0
    %p143 = por %p141, %p142
    %p144 = scmp.ne.s32.totalorder %s136, %s138
    %p145 = scmp.eq.s32.totalorder %s23, 1
    %p146 = por %p144, %p145
    %p147 = scmp.ne.s32.totalorder %s138, %s139
    %p148 = scmp.eq.s32.totalorder %s23, 0
    %p149 = por %p147, %p148
    %p150 = scmp.ne.s32.totalorder %s138, %s139
    %p151 = scmp.eq.s32.totalorder %s24, 1
    %p152 = por %p150, %p151
    %p154 = scmp.ne.s32.totalorder %s139, %s153
    %p155 = scmp.eq.s32.totalorder %s24, 0
    %p156 = por %p154, %p155
    %s158 = sadd.s32 %s157, 1
    %p161 = scmp.eq.s32.totalorder %s18, 1
    %p162 = scmp.ne.s32.totalorder %s157, %s159
    %p163 = scmp.eq.s32.totalorder %s18, 0
    %p164 = por %p162, %p163
    %p165 = scmp.ne.s32.totalorder %s157, %s159
    %p166 = scmp.eq.s32.totalorder %s23, 1
    %p167 = por %p165, %p166
    %p168 = scmp.ne.s32.totalorder %s159, %s160
    %p169 = scmp.eq.s32.totalorder %s23, 0
    %p170 = por %p168, %p169
    %p171 = scmp.ne.s32.totalorder %s159, %s160
    %p172 = scmp.eq.s32.totalorder %s24, 1
    %p173 = por %p171, %p172
    %p175 = scmp.ne.s32.totalorder %s160, %s174
    %p176 = scmp.eq.s32.totalorder %s24, 0
    %p177 = por %p175, %p176
    %s179 = sadd.s32 %s178, 1
    %p182 = scmp.eq.s32.totalorder %s18, 1
    %p183 = scmp.ne.s32.totalorder %s178, %s180
    %p184 = scmp.eq.s32.totalorder %s18, 0
    %p185 = por %p183, %p184
    %p186 = scmp.ne.s32.totalorder %s178, %s180
    %p187 = scmp.eq.s32.totalorder %s23, 1
    %p188 = por %p186, %p187
    %p189 = scmp.ne.s32.totalorder %s180, %s181
    %p190 = scmp.eq.s32.totalorder %s23, 0
    %p191 = por %p189, %p190
    %p192 = scmp.ne.s32.totalorder %s180, %s181
    %p193 = scmp.eq.s32.totalorder %s24, 1
    %p194 = por %p192, %p193
    %p196 = scmp.ne.s32.totalorder %s181, %s195
    %p197 = scmp.eq.s32.totalorder %s24, 0
    %p198 = por %p196, %p197
    %s200 = sadd.s32 %s199, 1
    %p203 = scmp.eq.s32.totalorder %s18, 1
    %p204 = scmp.ne.s32.totalorder %s199, %s201
    %p205 = scmp.eq.s32.totalorder %s18, 0
    %p206 = por %p204, %p205
    %p207 = scmp.ne.s32.totalorder %s199, %s201
    %p208 = scmp.eq.s32.totalorder %s23, 1
    %p209 = por %p207, %p208
    %p210 = scmp.ne.s32.totalorder %s201, %s202
    %p211 = scmp.eq.s32.totalorder %s23, 0
    %p212 = por %p210, %p211
    %p213 = scmp.ne.s32.totalorder %s201, %s202
    %p214 = scmp.eq.s32.totalorder %s24, 1
    %p215 = por %p213, %p214
    %p217 = scmp.ne.s32.totalorder %s202, %s216
    %p218 = scmp.eq.s32.totalorder %s24, 0
    %p219 = por %p217, %p218
    %s221 = sadd.s32 %s220, 1
    %p224 = scmp.eq.s32.totalorder %s18, 1
    %p225 = scmp.ne.s32.totalorder %s220, %s222
    %p226 = scmp.eq.s32.totalorder %s18, 0
    %p227 = por %p225, %p226
    %p228 = scmp.ne.s32.totalorder %s220, %s222
    %p229 = scmp.eq.s32.totalorder %s23, 1
    %p230 = por %p228, %p229
    %p231 = scmp.ne.s32.totalorder %s222, %s223
    %p232 = scmp.eq.s32.totalorder %s23, 0
    %p233 = por %p231, %p232
    %p234 = scmp.ne.s32.totalorder %s222, %s223
    %p235 = scmp.eq.s32.totalorder %s24, 1
    %p236 = por %p234, %p235
    %p238 = scmp.ne.s32.totalorder %s223, %s237
    %p239 = scmp.eq.s32.totalorder %s24, 0
    %p240 = por %p238, %p239
    %s242 = sadd.s32 %s241, 1
    %p245 = scmp.eq.s32.totalorder %s18, 1
    %p246 = scmp.ne.s32.totalorder %s241, %s243
    %p247 = scmp.eq.s32.totalorder %s18, 0
    %p248 = por %p246, %p247
    %p249 = scmp.ne.s32.totalorder %s241, %s243
    %p250 = scmp.eq.s32.totalorder %s23, 1
    %p251 = por %p249, %p250
    %p252 = scmp.ne.s32.totalorder %s243, %s244
    %p253 = scmp.eq.s32.totalorder %s23, 0
    %p254 = por %p252, %p253
    %p255 = scmp.ne.s32.totalorder %s243, %s244
    %p256 = scmp.eq.s32.totalorder %s24, 1
    %p257 = por %p255, %p256
    %p259 = scmp.ne.s32.totalorder %s244, %s258
    %p260 = scmp.eq.s32.totalorder %s24, 0
    %p261 = por %p259, %p260
    %s263 = sadd.s32 %s262, 1
    %p266 = scmp.eq.s32.totalorder %s18, 1
    %p267 = scmp.ne.s32.totalorder %s262, %s264
    %p268 = scmp.eq.s32.totalorder %s18, 0
    %p269 = por %p267, %p268
    %p270 = scmp.ne.s32.totalorder %s262, %s264
    %p271 = scmp.eq.s32.totalorder %s23, 1
    %p272 = por %p270, %p271
    %p273 = scmp.ne.s32.totalorder %s264, %s265
    %p274 = scmp.eq.s32.totalorder %s23, 0
    %p275 = por %p273, %p274
    %p276 = scmp.ne.s32.totalorder %s264, %s265
    %p277 = scmp.eq.s32.totalorder %s24, 1
    %p278 = por %p276, %p277
    %p280 = scmp.ne.s32.totalorder %s265, %s279
    %p281 = scmp.eq.s32.totalorder %s24, 0
    %p282 = por %p280, %p281
    %s283 = ssub.s32 %s18, %s25
    %p284 = scmp.eq.s32.totalorder %s283, 0
    %s286 = sadd.s32 %s285, 1
    %s287 = scalar_select %p284, %s285, %s286
    %p290 = pneg %p284
    %p291 = scmp.eq.s32.totalorder %s18, 1
    %p292 = por %p290, %p291
    %p293 = scmp.ne.s32.totalorder %s285, %s288
    %p294 = scmp.eq.s32.totalorder %s18, 0
    %p295 = por %p293, %p294
    %p296 = scmp.ne.s32.totalorder %s285, %s288
    %p297 = scmp.eq.s32.totalorder %s23, 1
    %p298 = por %p296, %p297
    %p299 = scmp.ne.s32.totalorder %s288, %s289
    %p300 = scmp.eq.s32.totalorder %s23, 0
    %p301 = por %p299, %p300
    %p302 = scmp.ne.s32.totalorder %s288, %s289
    %p303 = scmp.eq.s32.totalorder %s24, 1
    %p304 = por %p302, %p303
    %p306 = scmp.ne.s32.totalorder %s289, %s305
    %p307 = scmp.eq.s32.totalorder %s24, 0
    %p308 = por %p306, %p307
    %p309 = scmp.le.s32.totalorder 1, %s18
    %p310 = scmp.lt.s32.totalorder %s18, 3
    %p311 = pnand %p309, %p310
    %p312 = pneg %p311
    // Predicated region
    $region9: #{forward.1} parent=5 // pred_check
      _
    $region10: #{forward.1} parent=5 // pred_check_branch
      %314 = sbr.rel (%p311) target = $region12
    $region11: #{forward.1} parent=5 // pred_region
      %s315 = ssub.s32 %s18, 1
      // Predicated region
      $region13: #{forward.1} parent=11 // pred_check
        %p316 = pneg %p65
      $region14: #{forward.1} parent=11 // pred_check_branch
        %318 = sbr.rel (%p316) target = $region16
      $region15: #{forward.1} parent=11 // pred_region
        _
      $region16: #{forward.1} parent=11 // pred_fallthru
        _
      // Predicated region
      $region17: #{forward.1} parent=11 // pred_check
        %p319 = pneg %p86
      $region18: #{forward.1} parent=11 // pred_check_branch
        %321 = sbr.rel (%p319) target = $region20
      $region19: #{forward.1} parent=11 // pred_region
        _
      $region20: #{forward.1} parent=11 // pred_fallthru
        _
      // Predicated region
      $region21: #{forward.1} parent=11 // pred_check
        %p322 = pneg %p107
      $region22: #{forward.1} parent=11 // pred_check_branch
        %324 = sbr.rel (%p322) target = $region24
      $region23: #{forward.1} parent=11 // pred_region
        _
      $region24: #{forward.1} parent=11 // pred_fallthru
        _
      // Predicated region
      $region25: #{forward.1} parent=11 // pred_check
        %p325 = pneg %p128
      $region26: #{forward.1} parent=11 // pred_check_branch
        %327 = sbr.rel (%p325) target = $region28
      $region27: #{forward.1} parent=11 // pred_region
        _
      $region28: #{forward.1} parent=11 // pred_fallthru
        _
      // Predicated region
      $region29: #{forward.1} parent=11 // pred_check
        %p328 = pneg %p149
      $region30: #{forward.1} parent=11 // pred_check_branch
        %330 = sbr.rel (%p328) target = $region32
      $region31: #{forward.1} parent=11 // pred_region
        _
      $region32: #{forward.1} parent=11 // pred_fallthru
        _
      // Predicated region
      $region33: #{forward.1} parent=11 // pred_check
        %p331 = pneg %p170
      $region34: #{forward.1} parent=11 // pred_check_branch
        %333 = sbr.rel (%p331) target = $region36
      $region35: #{forward.1} parent=11 // pred_region
        _
      $region36: #{forward.1} parent=11 // pred_fallthru
        _
      // Predicated region
      $region37: #{forward.1} parent=11 // pred_check
        %p334 = pneg %p191
      $region38: #{forward.1} parent=11 // pred_check_branch
        %336 = sbr.rel (%p334) target = $region40
      $region39: #{forward.1} parent=11 // pred_region
        _
      $region40: #{forward.1} parent=11 // pred_fallthru
        _
      // Predicated region
      $region41: #{forward.1} parent=11 // pred_check
        %p337 = pneg %p212
      $region42: #{forward.1} parent=11 // pred_check_branch
        %339 = sbr.rel (%p337) target = $region44
      $region43: #{forward.1} parent=11 // pred_region
        _
      $region44: #{forward.1} parent=11 // pred_fallthru
        _
      // Predicated region
      $region45: #{forward.1} parent=11 // pred_check
        %p340 = pneg %p233
      $region46: #{forward.1} parent=11 // pred_check_branch
        %342 = sbr.rel (%p340) target = $region48
      $region47: #{forward.1} parent=11 // pred_region
        _
      $region48: #{forward.1} parent=11 // pred_fallthru
        _
      // Predicated region
      $region49: #{forward.1} parent=11 // pred_check
        %p343 = pneg %p254
      $region50: #{forward.1} parent=11 // pred_check_branch
        %345 = sbr.rel (%p343) target = $region52
      $region51: #{forward.1} parent=11 // pred_region
        _
      $region52: #{forward.1} parent=11 // pred_fallthru
        _
      // Predicated region
      $region53: #{forward.1} parent=11 // pred_check
        %p346 = pneg %p275
      $region54: #{forward.1} parent=11 // pred_check_branch
        %348 = sbr.rel (%p346) target = $region56
      $region55: #{forward.1} parent=11 // pred_region
        _
      $region56: #{forward.1} parent=11 // pred_fallthru
        _
    $region12: #{forward.1} parent=5 // pred_fallthru
      _
    %p349 = scmp.lt.s32.totalorder %s18, 2
    // Predicated region
    $region57: #{forward.1} parent=5 // pred_check
      %p350 = pneg %p349
    $region58: #{forward.1} parent=5 // pred_check_branch
      %352 = sbr.rel (%p350) target = $region60
    $region59: #{forward.1} parent=5 // pred_region
      // Predicated region
      $region61: #{forward.1} parent=59 // pred_check
        %p353 = pneg %p38
      $region62: #{forward.1} parent=59 // pred_check_branch
        %355 = sbr.rel (%p353) target = $region64
      $region63: #{forward.1} parent=59 // pred_region
        %s356 = smul.u32 8, %s18
        %p357 = scmp.lt.s32.totalorder %s356, 15
        %s358 = scalar_select %p357, %s356, 15
        %s359 = smul.addr %s358, 4
        %s360 = scalar_lea.vmem %s0, %s359
        %s361 = smul.u32 8, %s18
      $region64: #{forward.1} parent=59 // pred_fallthru
        _
    $region60: #{forward.1} parent=5 // pred_fallthru
      _
    %p362 = scmp.le.s32.totalorder 1, %s18
    %p363 = scmp.lt.s32.totalorder %s18, 3
    %p364 = pnand %p362, %p363
    %p365 = pneg %p364
    // Predicated region
    $region65: #{forward.1} parent=5 // pred_check
      _
    $region66: #{forward.1} parent=5 // pred_check_branch
      %367 = sbr.rel (%p364) target = $region68
    $region67: #{forward.1} parent=5 // pred_region
      %s368 = ssub.s32 %s18, 1
      %s369 = smul.u32 8, %s23
      %p370 = scmp.lt.s32.totalorder %s369, 15
      %s371 = scalar_select %p370, %s369, 15
      %s372 = smul.addr %s371, 4
      %s373 = scalar_lea.vmem %s0, %s372
      %p374 = pneg %p44
      %p375 = pneg %p41
      %p376 = pneg %p65
      %p377 = pneg %p62
      %p378 = pneg %p86
      %p379 = pneg %p83
      %p380 = pneg %p107
      %p381 = pneg %p104
      %p382 = pneg %p128
      %p383 = pneg %p125
      %p384 = pneg %p149
      %p385 = pneg %p146
      %p386 = pneg %p170
      %p387 = pneg %p167
      %p388 = pneg %p191
      %p389 = pneg %p188
      %p390 = pneg %p212
      %p391 = pneg %p209
      %p392 = pneg %p233
      %p393 = pneg %p230
      %p394 = pneg %p254
      %p395 = pneg %p251
      %p396 = pneg %p275
      %p397 = pneg %p272
      %p398 = pneg %p301
      %p399 = pneg %p298
      %p400 = scmp.lt.s32.totalorder %s23, 1
      %s401 = scalar_select %p400, %s23, 1
      %s402 = smul.addr %s401, 8
      %s403 = scalar_lea.vmem %s12, %s402
      %s404 = smul.u32 8, %s23
      %p405 = scmp.lt.s32.totalorder %s404, 15
      %s406 = scalar_select %p405, %s404, 15
      %s407 = smul.addr %s406, 4
      %s408 = scalar_lea.vmem %s0, %s407
      %s409 = smul.u32 8, %s23
      %p410 = scmp.lt.s32.totalorder %s23, 1
      %s411 = scalar_select %p410, %s23, 1
      %s412 = smul.addr %s411, 8
      %s413 = scalar_lea.vmem %s12, %s412
      %v415 = vld [vmem:[%s408] sm:$0xf]
      %v416 = vld [vmem:[%s408 + $0x4] sm:$0xf]
      %v417 = vld [vmem:[%s408 + $0x8] sm:$0xf]
      %v418 = vld [vmem:[%s408 + $0xc] sm:$0xf]
      %v419 = vld [vmem:[%s408 + $0x10] sm:$0xf]
      %v420 = vld [vmem:[%s408 + $0x14] sm:$0xf]
      %v421 = vld [vmem:[%s408 + $0x18] sm:$0xf]
      %v422 = vld [vmem:[%s408 + $0x1c] sm:$0xf]
      %v423 = vld [vmem:[%s4] sm:$0xf]
      %v424 = vld [vmem:[%s4 + $0x4] sm:$0xf]
      %v425 = vld [vmem:[%s4 + $0x8] sm:$0xf]
      %v426 = vld [vmem:[%s4 + $0xc] sm:$0xf]
      %v427 = vld [vmem:[%s4 + $0x10] sm:$0xf]
      %v428 = vld [vmem:[%s4 + $0x14] sm:$0xf]
      %v429 = vld [vmem:[%s4 + $0x18] sm:$0xf]
      %v430 = vld [vmem:[%s4 + $0x1c] sm:$0xf]
      %v431 = vld [vmem:[%s4 + $0x20] sm:$0xf]
      %v432 = vld [vmem:[%s4 + $0x24] sm:$0xf]
      %v433 = vld [vmem:[%s4 + $0x28] sm:$0xf]
      %v434 = vld [vmem:[%s4 + $0x2c] sm:$0xf]
      %v435 = vld [vmem:[%s4 + $0x30] sm:$0xf]
      %v436 = vld [vmem:[%s4 + $0x34] sm:$0xf]
      %v437 = vld [vmem:[%s4 + $0x38] sm:$0xf]
      %v438 = vld [vmem:[%s4 + $0x3c] sm:$0xf]
      %v439 = vld [vmem:[%s8] sm:$0x1]
      %v441 = vlaneseq
      %v442 = vshrl.u32 %v441, 7
      %v443 = vsub.s32 0, %v442
      %v444 = vrot.slane %v439, %v443
      %v454 = vunpack.c.l.b16 %v415
      %v455 = vunpack.c.l.b16 %v416
      %v456 = vunpack.c.l.b16 %v417
      %v457 = vunpack.c.l.b16 %v418
      %v458 = vunpack.c.l.b16 %v419
      %v459 = vunpack.c.l.b16 %v420
      %v460 = vunpack.c.l.b16 %v421
      %v461 = vunpack.c.l.b16 %v422
      %v462 = vpack.c.b16 %v455, %v454
      %v463 = vpack.c.b16 %v457, %v456
      %v464 = vpack.c.b16 %v459, %v458
      %v465 = vpack.c.b16 %v461, %v460
      %v486 = vunpack.c.l.b16 %v423
      %v487 = vunpack.c.l.b16 %v424
      %v488 = vunpack.c.l.b16 %v425
      %v489 = vunpack.c.l.b16 %v426
      %v490 = vunpack.c.l.b16 %v427
      %v491 = vunpack.c.l.b16 %v428
      %v492 = vunpack.c.l.b16 %v429
      %v493 = vunpack.c.l.b16 %v430
      %v494 = vunpack.c.l.b16 %v431
      %v495 = vunpack.c.l.b16 %v432
      %v496 = vunpack.c.l.b16 %v433
      %v497 = vunpack.c.l.b16 %v434
      %v498 = vunpack.c.l.b16 %v435
      %v499 = vunpack.c.l.b16 %v436
      %v500 = vunpack.c.l.b16 %v437
      %v501 = vunpack.c.l.b16 %v438
      %v502 = vpack.c.b16 %v487, %v486
      %v503 = vpack.c.b16 %v489, %v488
      %v504 = vpack.c.b16 %v491, %v490
      %v505 = vpack.c.b16 %v493, %v492
      %v506 = vpack.c.b16 %v495, %v494
      %v507 = vpack.c.b16 %v497, %v496
      %v508 = vpack.c.b16 %v499, %v498
      %v509 = vpack.c.b16 %v501, %v500
      %518 = vmatprep.subr.bf16.mxu0 0
      %519 = vmatpush1.bf16.msra.mxu0 %v502
      %520 = vmatprep.subr.bf16.mxu0 0
      %521 = vmatpush1.bf16.msra.mxu0 %v503
      %522 = vmatprep.subr.bf16.mxu0 0
      %523 = vmatpush1.bf16.msra.mxu0 %v504
      %524 = vmatprep.subr.bf16.mxu0 0
      %525 = vmatpush1.bf16.msra.mxu0 %v505
      %526 = vmatprep.subr.bf16.mxu0 0
      %527 = vmatpush1.bf16.msra.mxu0 %v506
      %528 = vmatprep.subr.bf16.mxu0 0
      %529 = vmatpush1.bf16.msra.mxu0 %v507
      %530 = vmatprep.subr.bf16.mxu0 0
      %531 = vmatpush1.bf16.msra.mxu0 %v508
      %532 = vmatprep.subr.bf16.mxu0 0
      %533 = vmatpush1.bf16.msra.mxu0 %v509
      %534 = vmatprep.subr.bf16.mxu0 0
      %535 = vmatpush1.bf16.msra.mxu0 0
      %536 = vmatprep.subr.bf16.mxu0 0
      %537 = vmatpush1.bf16.msra.mxu0 0
      %538 = vmatprep.subr.bf16.mxu0 0
      %539 = vmatpush1.bf16.msra.mxu0 0
      %540 = vmatprep.subr.bf16.mxu0 0
      %541 = vmatpush1.bf16.msra.mxu0 0
      %542 = vmatprep.subr.bf16.mxu0 0
      %543 = vmatpush1.bf16.msra.mxu0 0
      %544 = vmatprep.subr.bf16.mxu0 0
      %545 = vmatpush1.bf16.msra.mxu0 0
      %546 = vmatprep.subr.bf16.mxu0 0
      %547 = vmatpush1.bf16.msra.mxu0 0
      %548 = vmatprep.subr.bf16.mxu0 0
      %549 = vmatpush1.bf16.msra.mxu0 0
      %550 = vmatprep.mubr.bf16.mxu0 0
      %551 = vmatmul.mubr.bf16.gmra.mrb[0].mxu0 %v462
      %v552 = vpop.f32.mrb[0].mxu0
      %v553 = vadd.f32 %v444, %v552
      %v554 = vpop.f32.mrb[0].mxu0
      %v555 = vpop.f32.mrb[0].mxu0
      %v556 = vadd.f32 %v444, %v555
      %v557 = vpop.f32.mrb[0].mxu0
      %558 = vmatprep.mubr.bf16.mxu0 0
      %559 = vmatmul.mubr.bf16.gmra.mrb[0].mxu0 %v463
      %v560 = vpop.f32.mrb[0].mxu0
      %v561 = vadd.f32 %v444, %v560
      %v562 = vpop.f32.mrb[0].mxu0
      %v563 = vpop.f32.mrb[0].mxu0
      %v564 = vadd.f32 %v444, %v563
      %v565 = vpop.f32.mrb[0].mxu0
      %566 = vmatprep.mubr.bf16.mxu0 0
      %567 = vmatmul.mubr.bf16.gmra.mrb[0].mxu0 %v464
      %v568 = vpop.f32.mrb[0].mxu0
      %v569 = vadd.f32 %v444, %v568
      %v570 = vpop.f32.mrb[0].mxu0
      %v571 = vpop.f32.mrb[0].mxu0
      %v572 = vadd.f32 %v444, %v571
      %v573 = vpop.f32.mrb[0].mxu0
      %574 = vmatprep.mubr.bf16.mxu0 0
      %575 = vmatmul.mubr.bf16.gmra.mrb[0].mxu0 %v465
      %v576 = vpop.f32.mrb[0].mxu0
      %v577 = vadd.f32 %v444, %v576
      %v578 = vpop.f32.mrb[0].mxu0
      %v579 = vpop.f32.mrb[0].mxu0
      %v580 = vadd.f32 %v444, %v579
      %v581 = vpop.f32.mrb[0].mxu0
      %582 = vdwg.mxu0
      %v583 = vpack.c.bf16 %v556, %v553
      %v584 = vpack.c.bf16 %v564, %v561
      %v585 = vpack.c.bf16 %v572, %v569
      %v586 = vpack.c.bf16 %v580, %v577
      %v587 = vld [vmem:[%s1] sm:$0xf]
      %v588 = vld [vmem:[%s1 + $0x4] sm:$0xf]
      %v591 = vunpack.c.l.b16 %v587
      %v592 = vunpack.c.l.b16 %v588
      %v593 = vpack.c.b16 %v592, %v591
      %vm594 = vcmask 523264
      %v596 = vsel %vm594, %v593, 0
      %598 = vmatprep.subr.bf16.mxu0 0
      %599 = vmatpush1.bf16.msra.mxu0 %v583
      %600 = vmatprep.subr.bf16.mxu0 0
      %601 = vmatpush1.bf16.msra.mxu0 %v584
      %602 = vmatprep.subr.bf16.mxu0 0
      %603 = vmatpush1.bf16.msra.mxu0 %v585
      %604 = vmatprep.subr.bf16.mxu0 0
      %605 = vmatpush1.bf16.msra.mxu0 %v586
      %606 = vmatprep.subr.bf16.mxu0 0
      %607 = vmatpush1.bf16.msra.mxu0 0
      %608 = vmatprep.subr.bf16.mxu0 0
      %609 = vmatpush1.bf16.msra.mxu0 0
      %610 = vmatprep.subr.bf16.mxu0 0
      %611 = vmatpush1.bf16.msra.mxu0 0
      %612 = vmatprep.subr.bf16.mxu0 0
      %613 = vmatpush1.bf16.msra.mxu0 0
      %614 = vmatprep.subr.bf16.mxu0 0
      %615 = vmatpush1.bf16.msra.mxu0 0
      %616 = vmatprep.subr.bf16.mxu0 0
      %617 = vmatpush1.bf16.msra.mxu0 0
      %618 = vmatprep.subr.bf16.mxu0 0
      %619 = vmatpush1.bf16.msra.mxu0 0
      %620 = vmatprep.subr.bf16.mxu0 0
      %621 = vmatpush1.bf16.msra.mxu0 0
      %622 = vmatprep.subr.bf16.mxu0 0
      %623 = vmatpush1.bf16.msra.mxu0 0
      %624 = vmatprep.subr.bf16.mxu0 0
      %625 = vmatpush1.bf16.msra.mxu0 0
      %626 = vmatprep.subr.bf16.mxu0 0
      %627 = vmatpush1.bf16.msra.mxu0 0
      %628 = vmatprep.subr.bf16.mxu0 0
      %629 = vmatpush1.bf16.msra.mxu0 0
      %630 = vmatprep.mubr.bf16.mxu0 0
      %631 = vmatmul.mubr.bf16.gmra.mrb[0].mxu0 %v596
      %v632 = vpop.f32.mrb[0].mxu0
      %v633 = vadd.f32 0.0, %v632
      %v634 = vpop.f32.mrb[0].mxu0
      %v635 = vpop.f32.mrb[0].mxu0
      %v636 = vadd.f32 0.0, %v635
      %v637 = vpop.f32.mrb[0].mxu0
      %638 = vdwg.mxu0
      %v639 = vpack.c.bf16 %v636, %v633
      %v640 = vld [vmem:[%s5] sm:$0xf]
      %v641 = vld [vmem:[%s5 + $0x4] sm:$0xf]
      %v642 = vld [vmem:[%s5 + $0x8] sm:$0xf]
      %v643 = vld [vmem:[%s5 + $0xc] sm:$0xf]
      %s644 = scalar_lea.vmem %s1, 8
      %v645 = vld [vmem:[%s644] sm:$0xf]
      %v646 = vld [vmem:[%s644 + $0x4] sm:$0xf]
      %v649 = vunpack.c.l.b16 %v645
      %v650 = vunpack.c.l.b16 %v646
      %v651 = vpack.c.b16 %v650, %v649
      %v653 = vsel %vm594, %v651, 0
      %655 = vmatprep.subr.bf16.mxu0 0
      %656 = vmatpush1.bf16.msra.mxu0 %v583
      %657 = vmatprep.subr.bf16.mxu0 0
      %658 = vmatpush1.bf16.msra.mxu0 %v584
      %659 = vmatprep.subr.bf16.mxu0 0
      %660 = vmatpush1.bf16.msra.mxu0 %v585
      %661 = vmatprep.subr.bf16.mxu0 0
      %662 = vmatpush1.bf16.msra.mxu0 %v586
      %663 = vmatprep.subr.bf16.mxu0 0
      %664 = vmatpush1.bf16.msra.mxu0 0
      %665 = vmatprep.subr.bf16.mxu0 0
      %666 = vmatpush1.bf16.msra.mxu0 0
      %667 = vmatprep.subr.bf16.mxu0 0
      %668 = vmatpush1.bf16.msra.mxu0 0
      %669 = vmatprep.subr.bf16.mxu0 0
      %670 = vmatpush1.bf16.msra.mxu0 0
      %671 = vmatprep.subr.bf16.mxu0 0
      %672 = vmatpush1.bf16.msra.mxu0 0
      %673 = vmatprep.subr.bf16.mxu0 0
      %674 = vmatpush1.bf16.msra.mxu0 0
      %675 = vmatprep.subr.bf16.mxu0 0
      %676 = vmatpush1.bf16.msra.mxu0 0
      %677 = vmatprep.subr.bf16.mxu0 0
      %678 = vmatpush1.bf16.msra.mxu0 0
      %679 = vmatprep.subr.bf16.mxu0 0
      %680 = vmatpush1.bf16.msra.mxu0 0
      %681 = vmatprep.subr.bf16.mxu0 0
      %682 = vmatpush1.bf16.msra.mxu0 0
      %683 = vmatprep.subr.bf16.mxu0 0
      %684 = vmatpush1.bf16.msra.mxu0 0
      %685 = vmatprep.subr.bf16.mxu0 0
      %686 = vmatpush1.bf16.msra.mxu0 0
      %687 = vmatprep.mubr.bf16.mxu0 0
      %688 = vmatmul.mubr.bf16.gmra.mrb[0].mxu0 %v653
      %v689 = vpop.f32.mrb[0].mxu0
      %v690 = vadd.f32 0.0, %v689
      %v691 = vpop.f32.mrb[0].mxu0
      %v692 = vpop.f32.mrb[0].mxu0
      %v693 = vadd.f32 0.0, %v692
      %v694 = vpop.f32.mrb[0].mxu0
      %695 = vdwg.mxu0
      %v696 = vpack.c.bf16 %v693, %v690
      %s697 = scalar_lea.vmem %s5, 16
      %v698 = vld [vmem:[%s697] sm:$0xf]
      %v699 = vld [vmem:[%s697 + $0x4] sm:$0xf]
      %v700 = vld [vmem:[%s697 + $0x8] sm:$0xf]
      %v701 = vld [vmem:[%s697 + $0xc] sm:$0xf]
      %v706 = vunpack.c.l.b16 %v698
      %v707 = vunpack.c.l.b16 %v699
      %v708 = vunpack.c.l.b16 %v700
      %v709 = vunpack.c.l.b16 %v701
      %v710 = vpack.c.b16 %v707, %v706
      %v711 = vpack.c.b16 %v709, %v708
      %vm714 = vcmask 261120
      %v716 = vsel %vm714, %v696, 0
      %718 = vmatprep.subr.bf16.mxu0 0
      %719 = vmatpush1.bf16.msra.mxu0 %v710
      %720 = vmatprep.subr.bf16.mxu0 0
      %721 = vmatpush1.bf16.msra.mxu0 %v711
      %722 = vmatprep.subr.bf16.mxu0 0
      %723 = vmatpush1.bf16.msra.mxu0 0
      %724 = vmatprep.subr.bf16.mxu0 0
      %725 = vmatpush1.bf16.msra.mxu0 0
      %726 = vmatprep.subr.bf16.mxu0 0
      %727 = vmatpush1.bf16.msra.mxu0 0
      %728 = vmatprep.subr.bf16.mxu0 0
      %729 = vmatpush1.bf16.msra.mxu0 0
      %730 = vmatprep.subr.bf16.mxu0 0
      %731 = vmatpush1.bf16.msra.mxu0 0
      %732 = vmatprep.subr.bf16.mxu0 0
      %733 = vmatpush1.bf16.msra.mxu0 0
      %734 = vmatprep.subr.bf16.mxu0 0
      %735 = vmatpush1.bf16.msra.mxu0 0
      %736 = vmatprep.subr.bf16.mxu0 0
      %737 = vmatpush1.bf16.msra.mxu0 0
      %738 = vmatprep.subr.bf16.mxu0 0
      %739 = vmatpush1.bf16.msra.mxu0 0
      %740 = vmatprep.subr.bf16.mxu0 0
      %741 = vmatpush1.bf16.msra.mxu0 0
      %742 = vmatprep.subr.bf16.mxu0 0
      %743 = vmatpush1.bf16.msra.mxu0 0
      %744 = vmatprep.subr.bf16.mxu0 0
      %745 = vmatpush1.bf16.msra.mxu0 0
      %746 = vmatprep.subr.bf16.mxu0 0
      %747 = vmatpush1.bf16.msra.mxu0 0
      %748 = vmatprep.subr.bf16.mxu0 0
      %749 = vmatpush1.bf16.msra.mxu0 0
      %750 = vmatprep.mubr.bf16.mxu0 0
      %751 = vmatmul.mubr.bf16.gmra.mrb[0].mxu0 %v716
      %v752 = vpop.f32.mrb[0].mxu0
      %v753 = vadd.f32 0.0, %v752
      %v754 = vpop.f32.mrb[0].mxu0
      %v755 = vpop.f32.mrb[0].mxu0
      %v756 = vadd.f32 0.0, %v755
      %v757 = vpop.f32.mrb[0].mxu0
      %758 = vdwg.mxu0
      %v763 = vunpack.c.l.b16 %v640
      %v764 = vunpack.c.l.b16 %v641
      %v765 = vunpack.c.l.b16 %v642
      %v766 = vunpack.c.l.b16 %v643
      %v767 = vpack.c.b16 %v764, %v763
      %v768 = vpack.c.b16 %v766, %v765
      %v772 = vsel %vm714, %v639, 0
      %774 = vmatprep.subr.bf16.mxu0 0
      %775 = vmatpush1.bf16.msra.mxu0 %v767
      %776 = vmatprep.subr.bf16.mxu0 0
      %777 = vmatpush1.bf16.msra.mxu0 %v768
      %778 = vmatprep.subr.bf16.mxu0 0
      %779 = vmatpush1.bf16.msra.mxu0 0
      %780 = vmatprep.subr.bf16.mxu0 0
      %781 = vmatpush1.bf16.msra.mxu0 0
      %782 = vmatprep.subr.bf16.mxu0 0
      %783 = vmatpush1.bf16.msra.mxu0 0
      %784 = vmatprep.subr.bf16.mxu0 0
      %785 = vmatpush1.bf16.msra.mxu0 0
      %786 = vmatprep.subr.bf16.mxu0 0
      %787 = vmatpush1.bf16.msra.mxu0 0
      %788 = vmatprep.subr.bf16.mxu0 0
      %789 = vmatpush1.bf16.msra.mxu0 0
      %790 = vmatprep.subr.bf16.mxu0 0
      %791 = vmatpush1.bf16.msra.mxu0 0
      %792 = vmatprep.subr.bf16.mxu0 0
      %793 = vmatpush1.bf16.msra.mxu0 0
      %794 = vmatprep.subr.bf16.mxu0 0
      %795 = vmatpush1.bf16.msra.mxu0 0
      %796 = vmatprep.subr.bf16.mxu0 0
      %797 = vmatpush1.bf16.msra.mxu0 0
      %798 = vmatprep.subr.bf16.mxu0 0
      %799 = vmatpush1.bf16.msra.mxu0 0
      %800 = vmatprep.subr.bf16.mxu0 0
      %801 = vmatpush1.bf16.msra.mxu0 0
      %802 = vmatprep.subr.bf16.mxu0 0
      %803 = vmatpush1.bf16.msra.mxu0 0
      %804 = vmatprep.subr.bf16.mxu0 0
      %805 = vmatpush1.bf16.msra.mxu0 0
      %806 = vmatprep.mubr.bf16.mxu0 0
      %807 = vmatmul.mubr.bf16.gmra.mrb[0].mxu0 %v772
      %v808 = vpop.f32.mrb[0].mxu0
      %v809 = vadd.f32 %v753, %v808
      %v810 = vpop.f32.mrb[0].mxu0
      %v811 = vpop.f32.mrb[0].mxu0
      %v812 = vadd.f32 %v756, %v811
      %v813 = vpop.f32.mrb[0].mxu0
      %814 = vdwg.mxu0
      %s815 = scalar_lea.vmem %s1, 16
      %v816 = vld [vmem:[%s815] sm:$0xf]
      %v817 = vld [vmem:[%s815 + $0x4] sm:$0xf]
      %v820 = vunpack.c.l.b16 %v816
      %v821 = vunpack.c.l.b16 %v817
      %v822 = vpack.c.b16 %v821, %v820
      %v824 = vsel %vm594, %v822, 0
      %826 = vmatprep.subr.bf16.mxu0 0
      %827 = vmatpush1.bf16.msra.mxu0 %v583
      %828 = vmatprep.subr.bf16.mxu0 0
      %829 = vmatpush1.bf16.msra.mxu0 %v584
      %830 = vmatprep.subr.bf16.mxu0 0
      %831 = vmatpush1.bf16.msra.mxu0 %v585
      %832 = vmatprep.subr.bf16.mxu0 0
      %833 = vmatpush1.bf16.msra.mxu0 %v586
      %834 = vmatprep.subr.bf16.mxu0 0
      %835 = vmatpush1.bf16.msra.mxu0 0
      %836 = vmatprep.subr.bf16.mxu0 0
      %837 = vmatpush1.bf16.msra.mxu0 0
      %838 = vmatprep.subr.bf16.mxu0 0
      %839 = vmatpush1.bf16.msra.mxu0 0
      %840 = vmatprep.subr.bf16.mxu0 0
      %841 = vmatpush1.bf16.msra.mxu0 0
      %842 = vmatprep.subr.bf16.mxu0 0
      %843 = vmatpush1.bf16.msra.mxu0 0
      %844 = vmatprep.subr.bf16.mxu0 0
      %845 = vmatpush1.bf16.msra.mxu0 0
      %846 = vmatprep.subr.bf16.mxu0 0
      %847 = vmatpush1.bf16.msra.mxu0 0
      %848 = vmatprep.subr.bf16.mxu0 0
      %849 = vmatpush1.bf16.msra.mxu0 0
      %850 = vmatprep.subr.bf16.mxu0 0
      %851 = vmatpush1.bf16.msra.mxu0 0
      %852 = vmatprep.subr.bf16.mxu0 0
      %853 = vmatpush1.bf16.msra.mxu0 0
      %854 = vmatprep.subr.bf16.mxu0 0
      %855 = vmatpush1.bf16.msra.mxu0 0
      %856 = vmatprep.subr.bf16.mxu0 0
      %857 = vmatpush1.bf16.msra.mxu0 0
      %858 = vmatprep.mubr.bf16.mxu0 0
      %859 = vmatmul.mubr.bf16.gmra.mrb[0].mxu0 %v824
      %v860 = vpop.f32.mrb[0].mxu0
      %v861 = vadd.f32 0.0, %v860
      %v862 = vpop.f32.mrb[0].mxu0
      %v863 = vpop.f32.mrb[0].mxu0
      %v864 = vadd.f32 0.0, %v863
      %v865 = vpop.f32.mrb[0].mxu0
      %866 = vdwg.mxu0
      %v867 = vpack.c.bf16 %v864, %v861
      %s868 = scalar_lea.vmem %s5, 32
      %v869 = vld [vmem:[%s868] sm:$0xf]
      %v870 = vld [vmem:[%s868 + $0x4] sm:$0xf]
      %v871 = vld [vmem:[%s868 + $0x8] sm:$0xf]
      %v872 = vld [vmem:[%s868 + $0xc] sm:$0xf]
      %v877 = vunpack.c.l.b16 %v869
      %v878 = vunpack.c.l.b16 %v870
      %v879 = vunpack.c.l.b16 %v871
      %v880 = vunpack.c.l.b16 %v872
      %v881 = vpack.c.b16 %v878, %v877
      %v882 = vpack.c.b16 %v880, %v879
      %v886 = vsel %vm714, %v867, 0
      %888 = vmatprep.subr.bf16.mxu0 0
      %889 = vmatpush1.bf16.msra.mxu0 %v881
      %890 = vmatprep.subr.bf16.mxu0 0
      %891 = vmatpush1.bf16.msra.mxu0 %v882
      %892 = vmatprep.subr.bf16.mxu0 0
      %893 = vmatpush1.bf16.msra.mxu0 0
      %894 = vmatprep.subr.bf16.mxu0 0
      %895 = vmatpush1.bf16.msra.mxu0 0
      %896 = vmatprep.subr.bf16.mxu0 0
      %897 = vmatpush1.bf16.msra.mxu0 0
      %898 = vmatprep.subr.bf16.mxu0 0
      %899 = vmatpush1.bf16.msra.mxu0 0
      %900 = vmatprep.subr.bf16.mxu0 0
      %901 = vmatpush1.bf16.msra.mxu0 0
      %902 = vmatprep.subr.bf16.mxu0 0
      %903 = vmatpush1.bf16.msra.mxu0 0
      %904 = vmatprep.subr.bf16.mxu0 0
      %905 = vmatpush1.bf16.msra.mxu0 0
      %906 = vmatprep.subr.bf16.mxu0 0
      %907 = vmatpush1.bf16.msra.mxu0 0
      %908 = vmatprep.subr.bf16.mxu0 0
      %909 = vmatpush1.bf16.msra.mxu0 0
      %910 = vmatprep.subr.bf16.mxu0 0
      %911 = vmatpush1.bf16.msra.mxu0 0
      %912 = vmatprep.subr.bf16.mxu0 0
      %913 = vmatpush1.bf16.msra.mxu0 0
      %914 = vmatprep.subr.bf16.mxu0 0
      %915 = vmatpush1.bf16.msra.mxu0 0
      %916 = vmatprep.subr.bf16.mxu0 0
      %917 = vmatpush1.bf16.msra.mxu0 0
      %918 = vmatprep.subr.bf16.mxu0 0
      %919 = vmatpush1.bf16.msra.mxu0 0
      %920 = vmatprep.mubr.bf16.mxu0 0
      %921 = vmatmul.mubr.bf16.gmra.mrb[0].mxu0 %v886
      %v922 = vpop.f32.mrb[0].mxu0
      %v923 = vadd.f32 0.0, %v922
      %v924 = vpop.f32.mrb[0].mxu0
      %v925 = vpop.f32.mrb[0].mxu0
      %v926 = vadd.f32 0.0, %v925
      %v927 = vpop.f32.mrb[0].mxu0
      %928 = vdwg.mxu0
      %v929 = vadd.f32 %v809, %v923
      %v930 = vadd.f32 %v812, %v926
      %s931 = scalar_lea.vmem %s1, 24
      %v932 = vld [vmem:[%s931] sm:$0xf]
      %v933 = vld [vmem:[%s931 + $0x4] sm:$0xf]
      %v936 = vunpack.c.l.b16 %v932
      %v937 = vunpack.c.l.b16 %v933
      %v938 = vpack.c.b16 %v937, %v936
      %v940 = vsel %vm594, %v938, 0
      %942 = vmatprep.subr.bf16.mxu0 0
      %943 = vmatpush1.bf16.msra.mxu0 %v583
      %944 = vmatprep.subr.bf16.mxu0 0
      %945 = vmatpush1.bf16.msra.mxu0 %v584
      %946 = vmatprep.subr.bf16.mxu0 0
      %947 = vmatpush1.bf16.msra.mxu0 %v585
      %948 = vmatprep.subr.bf16.mxu0 0
      %949 = vmatpush1.bf16.msra.mxu0 %v586
      %950 = vmatprep.subr.bf16.mxu0 0
      %951 = vmatpush1.bf16.msra.mxu0 0
      %952 = vmatprep.subr.bf16.mxu0 0
      %953 = vmatpush1.bf16.msra.mxu0 0
      %954 = vmatprep.subr.bf16.mxu0 0
      %955 = vmatpush1.bf16.msra.mxu0 0
      %956 = vmatprep.subr.bf16.mxu0 0
      %957 = vmatpush1.bf16.msra.mxu0 0
      %958 = vmatprep.subr.bf16.mxu0 0
      %959 = vmatpush1.bf16.msra.mxu0 0
      %960 = vmatprep.subr.bf16.mxu0 0
      %961 = vmatpush1.bf16.msra.mxu0 0
      %962 = vmatprep.subr.bf16.mxu0 0
      %963 = vmatpush1.bf16.msra.mxu0 0
      %964 = vmatprep.subr.bf16.mxu0 0
      %965 = vmatpush1.bf16.msra.mxu0 0
      %966 = vmatprep.subr.bf16.mxu0 0
      %967 = vmatpush1.bf16.msra.mxu0 0
      %968 = vmatprep.subr.bf16.mxu0 0
      %969 = vmatpush1.bf16.msra.mxu0 0
      %970 = vmatprep.subr.bf16.mxu0 0
      %971 = vmatpush1.bf16.msra.mxu0 0
      %972 = vmatprep.subr.bf16.mxu0 0
      %973 = vmatpush1.bf16.msra.mxu0 0
      %974 = vmatprep.mubr.bf16.mxu0 0
      %975 = vmatmul.mubr.bf16.gmra.mrb[0].mxu0 %v940
      %v976 = vpop.f32.mrb[0].mxu0
      %v977 = vadd.f32 0.0, %v976
      %v978 = vpop.f32.mrb[0].mxu0
      %v979 = vpop.f32.mrb[0].mxu0
      %v980 = vadd.f32 0.0, %v979
      %v981 = vpop.f32.mrb[0].mxu0
      %982 = vdwg.mxu0
      %v983 = vpack.c.bf16 %v980, %v977
      %s984 = scalar_lea.vmem %s5, 48
      %v985 = vld [vmem:[%s984] sm:$0xf]
      %v986 = vld [vmem:[%s984 + $0x4] sm:$0xf]
      %v987 = vld [vmem:[%s984 + $0x8] sm:$0xf]
      %v988 = vld [vmem:[%s984 + $0xc] sm:$0xf]
      %v993 = vunpack.c.l.b16 %v985
      %v994 = vunpack.c.l.b16 %v986
      %v995 = vunpack.c.l.b16 %v987
      %v996 = vunpack.c.l.b16 %v988
      %v997 = vpack.c.b16 %v994, %v993
      %v998 = vpack.c.b16 %v996, %v995
      %v1002 = vsel %vm714, %v983, 0
      %1004 = vmatprep.subr.bf16.mxu0 0
      %1005 = vmatpush1.bf16.msra.mxu0 %v997
      %1006 = vmatprep.subr.bf16.mxu0 0
      %1007 = vmatpush1.bf16.msra.mxu0 %v998
      %1008 = vmatprep.subr.bf16.mxu0 0
      %1009 = vmatpush1.bf16.msra.mxu0 0
      %1010 = vmatprep.subr.bf16.mxu0 0
      %1011 = vmatpush1.bf16.msra.mxu0 0
      %1012 = vmatprep.subr.bf16.mxu0 0
      %1013 = vmatpush1.bf16.msra.mxu0 0
      %1014 = vmatprep.subr.bf16.mxu0 0
      %1015 = vmatpush1.bf16.msra.mxu0 0
      %1016 = vmatprep.subr.bf16.mxu0 0
      %1017 = vmatpush1.bf16.msra.mxu0 0
      %1018 = vmatprep.subr.bf16.mxu0 0
      %1019 = vmatpush1.bf16.msra.mxu0 0
      %1020 = vmatprep.subr.bf16.mxu0 0
      %1021 = vmatpush1.bf16.msra.mxu0 0
      %1022 = vmatprep.subr.bf16.mxu0 0
      %1023 = vmatpush1.bf16.msra.mxu0 0
      %1024 = vmatprep.subr.bf16.mxu0 0
      %1025 = vmatpush1.bf16.msra.mxu0 0
      %1026 = vmatprep.subr.bf16.mxu0 0
      %1027 = vmatpush1.bf16.msra.mxu0 0
      %1028 = vmatprep.subr.bf16.mxu0 0
      %1029 = vmatpush1.bf16.msra.mxu0 0
      %1030 = vmatprep.subr.bf16.mxu0 0
      %1031 = vmatpush1.bf16.msra.mxu0 0
      %1032 = vmatprep.subr.bf16.mxu0 0
      %1033 = vmatpush1.bf16.msra.mxu0 0
      %1034 = vmatprep.subr.bf16.mxu0 0
      %1035 = vmatpush1.bf16.msra.mxu0 0
      %1036 = vmatprep.mubr.bf16.mxu0 0
      %1037 = vmatmul.mubr.bf16.gmra.mrb[0].mxu0 %v1002
      %v1038 = vpop.f32.mrb[0].mxu0
      %v1039 = vadd.f32 0.0, %v1038
      %v1040 = vpop.f32.mrb[0].mxu0
      %v1041 = vpop.f32.mrb[0].mxu0
      %v1042 = vadd.f32 0.0, %v1041
      %v1043 = vpop.f32.mrb[0].mxu0
      %1044 = vdwg.mxu0
      %v1045 = vadd.f32 %v929, %v1039
      %v1046 = vadd.f32 %v930, %v1042
      %s1047 = scalar_lea.vmem %s1, 32
      %v1048 = vld [vmem:[%s1047] sm:$0xf]
      %v1049 = vld [vmem:[%s1047 + $0x4] sm:$0xf]
      %v1052 = vunpack.c.l.b16 %v1048
      %v1053 = vunpack.c.l.b16 %v1049
      %v1054 = vpack.c.b16 %v1053, %v1052
      %v1056 = vsel %vm594, %v1054, 0
      %1058 = vmatprep.subr.bf16.mxu0 0
      %1059 = vmatpush1.bf16.msra.mxu0 %v583
      %1060 = vmatprep.subr.bf16.mxu0 0
      %1061 = vmatpush1.bf16.msra.mxu0 %v584
      %1062 = vmatprep.subr.bf16.mxu0 0
      %1063 = vmatpush1.bf16.msra.mxu0 %v585
      %1064 = vmatprep.subr.bf16.mxu0 0
      %1065 = vmatpush1.bf16.msra.mxu0 %v586
      %1066 = vmatprep.subr.bf16.mxu0 0
      %1067 = vmatpush1.bf16.msra.mxu0 0
      %1068 = vmatprep.subr.bf16.mxu0 0
      %1069 = vmatpush1.bf16.msra.mxu0 0
      %1070 = vmatprep.subr.bf16.mxu0 0
      %1071 = vmatpush1.bf16.msra.mxu0 0
      %1072 = vmatprep.subr.bf16.mxu0 0
      %1073 = vmatpush1.bf16.msra.mxu0 0
      %1074 = vmatprep.subr.bf16.mxu0 0
      %1075 = vmatpush1.bf16.msra.mxu0 0
      %1076 = vmatprep.subr.bf16.mxu0 0
      %1077 = vmatpush1.bf16.msra.mxu0 0
      %1078 = vmatprep.subr.bf16.mxu0 0
      %1079 = vmatpush1.bf16.msra.mxu0 0
      %1080 = vmatprep.subr.bf16.mxu0 0
      %1081 = vmatpush1.bf16.msra.mxu0 0
      %1082 = vmatprep.subr.bf16.mxu0 0
      %1083 = vmatpush1.bf16.msra.mxu0 0
      %1084 = vmatprep.subr.bf16.mxu0 0
      %1085 = vmatpush1.bf16.msra.mxu0 0
      %1086 = vmatprep.subr.bf16.mxu0 0
      %1087 = vmatpush1.bf16.msra.mxu0 0
      %1088 = vmatprep.subr.bf16.mxu0 0
      %1089 = vmatpush1.bf16.msra.mxu0 0
      %1090 = vmatprep.mubr.bf16.mxu0 0
      %1091 = vmatmul.mubr.bf16.gmra.mrb[0].mxu0 %v1056
      %v1092 = vpop.f32.mrb[0].mxu0
      %v1093 = vadd.f32 0.0, %v1092
      %v1094 = vpop.f32.mrb[0].mxu0
      %v1095 = vpop.f32.mrb[0].mxu0
      %v1096 = vadd.f32 0.0, %v1095
      %v1097 = vpop.f32.mrb[0].mxu0
      %1098 = vdwg.mxu0
      %v1099 = vpack.c.bf16 %v1096, %v1093
      %s1100 = scalar_lea.vmem %s5, 64
      %v1101 = vld [vmem:[%s1100] sm:$0xf]
      %v1102 = vld [vmem:[%s1100 + $0x4] sm:$0xf]
      %v1103 = vld [vmem:[%s1100 + $0x8] sm:$0xf]
      %v1104 = vld [vmem:[%s1100 + $0xc] sm:$0xf]
      %v1109 = vunpack.c.l.b16 %v1101
      %v1110 = vunpack.c.l.b16 %v1102
      %v1111 = vunpack.c.l.b16 %v1103
      %v1112 = vunpack.c.l.b16 %v1104
      %v1113 = vpack.c.b16 %v1110, %v1109
      %v1114 = vpack.c.b16 %v1112, %v1111
      %v1118 = vsel %vm714, %v1099, 0
      %1120 = vmatprep.subr.bf16.mxu0 0
      %1121 = vmatpush1.bf16.msra.mxu0 %v1113
      %1122 = vmatprep.subr.bf16.mxu0 0
      %1123 = vmatpush1.bf16.msra.mxu0 %v1114
      %1124 = vmatprep.subr.bf16.mxu0 0
      %1125 = vmatpush1.bf16.msra.mxu0 0
      %1126 = vmatprep.subr.bf16.mxu0 0
      %1127 = vmatpush1.bf16.msra.mxu0 0
      %1128 = vmatprep.subr.bf16.mxu0 0
      %1129 = vmatpush1.bf16.msra.mxu0 0
      %1130 = vmatprep.subr.bf16.mxu0 0
      %1131 = vmatpush1.bf16.msra.mxu0 0
      %1132 = vmatprep.subr.bf16.mxu0 0
      %1133 = vmatpush1.bf16.msra.mxu0 0
      %1134 = vmatprep.subr.bf16.mxu0 0
      %1135 = vmatpush1.bf16.msra.mxu0 0
      %1136 = vmatprep.subr.bf16.mxu0 0
      %1137 = vmatpush1.bf16.msra.mxu0 0
      %1138 = vmatprep.subr.bf16.mxu0 0
      %1139 = vmatpush1.bf16.msra.mxu0 0
      %1140 = vmatprep.subr.bf16.mxu0 0
      %1141 = vmatpush1.bf16.msra.mxu0 0
      %1142 = vmatprep.subr.bf16.mxu0 0
      %1143 = vmatpush1.bf16.msra.mxu0 0
      %1144 = vmatprep.subr.bf16.mxu0 0
      %1145 = vmatpush1.bf16.msra.mxu0 0
      %1146 = vmatprep.subr.bf16.mxu0 0
      %1147 = vmatpush1.bf16.msra.mxu0 0
      %1148 = vmatprep.subr.bf16.mxu0 0
      %1149 = vmatpush1.bf16.msra.mxu0 0
      %1150 = vmatprep.subr.bf16.mxu0 0
      %1151 = vmatpush1.bf16.msra.mxu0 0
      %1152 = vmatprep.mubr.bf16.mxu0 0
      %1153 = vmatmul.mubr.bf16.gmra.mrb[0].mxu0 %v1118
      %v1154 = vpop.f32.mrb[0].mxu0
      %v1155 = vadd.f32 0.0, %v1154
      %v1156 = vpop.f32.mrb[0].mxu0
      %v1157 = vpop.f32.mrb[0].mxu0
      %v1158 = vadd.f32 0.0, %v1157
      %v1159 = vpop.f32.mrb[0].mxu0
      %1160 = vdwg.mxu0
      %v1161 = vadd.f32 %v1045, %v1155
      %v1162 = vadd.f32 %v1046, %v1158
      %s1163 = scalar_lea.vmem %s1, 40
      %v1164 = vld [vmem:[%s1163] sm:$0xf]
      %v1165 = vld [vmem:[%s1163 + $0x4] sm:$0xf]
      %v1168 = vunpack.c.l.b16 %v1164
      %v1169 = vunpack.c.l.b16 %v1165
      %v1170 = vpack.c.b16 %v1169, %v1168
      %v1172 = vsel %vm594, %v1170, 0
      %1174 = vmatprep.subr.bf16.mxu0 0
      %1175 = vmatpush1.bf16.msra.mxu0 %v583
      %1176 = vmatprep.subr.bf16.mxu0 0
      %1177 = vmatpush1.bf16.msra.mxu0 %v584
      %1178 = vmatprep.subr.bf16.mxu0 0
      %1179 = vmatpush1.bf16.msra.mxu0 %v585
      %1180 = vmatprep.subr.bf16.mxu0 0
      %1181 = vmatpush1.bf16.msra.mxu0 %v586
      %1182 = vmatprep.subr.bf16.mxu0 0
      %1183 = vmatpush1.bf16.msra.mxu0 0
      %1184 = vmatprep.subr.bf16.mxu0 0
      %1185 = vmatpush1.bf16.msra.mxu0 0
      %1186 = vmatprep.subr.bf16.mxu0 0
      %1187 = vmatpush1.bf16.msra.mxu0 0
      %1188 = vmatprep.subr.bf16.mxu0 0
      %1189 = vmatpush1.bf16.msra.mxu0 0
      %1190 = vmatprep.subr.bf16.mxu0 0
      %1191 = vmatpush1.bf16.msra.mxu0 0
      %1192 = vmatprep.subr.bf16.mxu0 0
      %1193 = vmatpush1.bf16.msra.mxu0 0
      %1194 = vmatprep.subr.bf16.mxu0 0
      %1195 = vmatpush1.bf16.msra.mxu0 0
      %1196 = vmatprep.subr.bf16.mxu0 0
      %1197 = vmatpush1.bf16.msra.mxu0 0
      %1198 = vmatprep.subr.bf16.mxu0 0
      %1199 = vmatpush1.bf16.msra.mxu0 0
      %1200 = vmatprep.subr.bf16.mxu0 0
      %1201 = vmatpush1.bf16.msra.mxu0 0
      %1202 = vmatprep.subr.bf16.mxu0 0
      %1203 = vmatpush1.bf16.msra.mxu0 0
      %1204 = vmatprep.subr.bf16.mxu0 0
      %1205 = vmatpush1.bf16.msra.mxu0 0
      %1206 = vmatprep.mubr.bf16.mxu0 0
      %1207 = vmatmul.mubr.bf16.gmra.mrb[0].mxu0 %v1172
      %v1208 = vpop.f32.mrb[0].mxu0
      %v1209 = vadd.f32 0.0, %v1208
      %v1210 = vpop.f32.mrb[0].mxu0
      %v1211 = vpop.f32.mrb[0].mxu0
      %v1212 = vadd.f32 0.0, %v1211
      %v1213 = vpop.f32.mrb[0].mxu0
      %1214 = vdwg.mxu0
      %v1215 = vpack.c.bf16 %v1212, %v1209
      %s1216 = scalar_lea.vmem %s5, 80
      %v1217 = vld [vmem:[%s1216] sm:$0xf]
      %v1218 = vld [vmem:[%s1216 + $0x4] sm:$0xf]
      %v1219 = vld [vmem:[%s1216 + $0x8] sm:$0xf]
      %v1220 = vld [vmem:[%s1216 + $0xc] sm:$0xf]
      %v1225 = vunpack.c.l.b16 %v1217
      %v1226 = vunpack.c.l.b16 %v1218
      %v1227 = vunpack.c.l.b16 %v1219
      %v1228 = vunpack.c.l.b16 %v1220
      %v1229 = vpack.c.b16 %v1226, %v1225
      %v1230 = vpack.c.b16 %v1228, %v1227
      %v1234 = vsel %vm714, %v1215, 0
      %1236 = vmatprep.subr.bf16.mxu0 0
      %1237 = vmatpush1.bf16.msra.mxu0 %v1229
      %1238 = vmatprep.subr.bf16.mxu0 0
      %1239 = vmatpush1.bf16.msra.mxu0 %v1230
      %1240 = vmatprep.subr.bf16.mxu0 0
      %1241 = vmatpush1.bf16.msra.mxu0 0
      %1242 = vmatprep.subr.bf16.mxu0 0
      %1243 = vmatpush1.bf16.msra.mxu0 0
      %1244 = vmatprep.subr.bf16.mxu0 0
      %1245 = vmatpush1.bf16.msra.mxu0 0
      %1246 = vmatprep.subr.bf16.mxu0 0
      %1247 = vmatpush1.bf16.msra.mxu0 0
      %1248 = vmatprep.subr.bf16.mxu0 0
      %1249 = vmatpush1.bf16.msra.mxu0 0
      %1250 = vmatprep.subr.bf16.mxu0 0
      %1251 = vmatpush1.bf16.msra.mxu0 0
      %1252 = vmatprep.subr.bf16.mxu0 0
      %1253 = vmatpush1.bf16.msra.mxu0 0
      %1254 = vmatprep.subr.bf16.mxu0 0
      %1255 = vmatpush1.bf16.msra.mxu0 0
      %1256 = vmatprep.subr.bf16.mxu0 0
      %1257 = vmatpush1.bf16.msra.mxu0 0
      %1258 = vmatprep.subr.bf16.mxu0 0
      %1259 = vmatpush1.bf16.msra.mxu0 0
      %1260 = vmatprep.subr.bf16.mxu0 0
      %1261 = vmatpush1.bf16.msra.mxu0 0
      %1262 = vmatprep.subr.bf16.mxu0 0
      %1263 = vmatpush1.bf16.msra.mxu0 0
      %1264 = vmatprep.subr.bf16.mxu0 0
      %1265 = vmatpush1.bf16.msra.mxu0 0
      %1266 = vmatprep.subr.bf16.mxu0 0
      %1267 = vmatpush1.bf16.msra.mxu0 0
      %1268 = vmatprep.mubr.bf16.mxu0 0
      %1269 = vmatmul.mubr.bf16.gmra.mrb[0].mxu0 %v1234
      %v1270 = vpop.f32.mrb[0].mxu0
      %v1271 = vadd.f32 0.0, %v1270
      %v1272 = vpop.f32.mrb[0].mxu0
      %v1273 = vpop.f32.mrb[0].mxu0
      %v1274 = vadd.f32 0.0, %v1273
      %v1275 = vpop.f32.mrb[0].mxu0
      %1276 = vdwg.mxu0
      %v1277 = vadd.f32 %v1161, %v1271
      %v1278 = vadd.f32 %v1162, %v1274
      %s1279 = scalar_lea.vmem %s1, 48
      %v1280 = vld [vmem:[%s1279] sm:$0xf]
      %v1281 = vld [vmem:[%s1279 + $0x4] sm:$0xf]
      %v1284 = vunpack.c.l.b16 %v1280
      %v1285 = vunpack.c.l.b16 %v1281
      %v1286 = vpack.c.b16 %v1285, %v1284
      %v1288 = vsel %vm594, %v1286, 0
      %1290 = vmatprep.subr.bf16.mxu0 0
      %1291 = vmatpush1.bf16.msra.mxu0 %v583
      %1292 = vmatprep.subr.bf16.mxu0 0
      %1293 = vmatpush1.bf16.msra.mxu0 %v584
      %1294 = vmatprep.subr.bf16.mxu0 0
      %1295 = vmatpush1.bf16.msra.mxu0 %v585
      %1296 = vmatprep.subr.bf16.mxu0 0
      %1297 = vmatpush1.bf16.msra.mxu0 %v586
      %1298 = vmatprep.subr.bf16.mxu0 0
      %1299 = vmatpush1.bf16.msra.mxu0 0
      %1300 = vmatprep.subr.bf16.mxu0 0
      %1301 = vmatpush1.bf16.msra.mxu0 0
      %1302 = vmatprep.subr.bf16.mxu0 0
      %1303 = vmatpush1.bf16.msra.mxu0 0
      %1304 = vmatprep.subr.bf16.mxu0 0
      %1305 = vmatpush1.bf16.msra.mxu0 0
      %1306 = vmatprep.subr.bf16.mxu0 0
      %1307 = vmatpush1.bf16.msra.mxu0 0
      %1308 = vmatprep.subr.bf16.mxu0 0
      %1309 = vmatpush1.bf16.msra.mxu0 0
      %1310 = vmatprep.subr.bf16.mxu0 0
      %1311 = vmatpush1.bf16.msra.mxu0 0
      %1312 = vmatprep.subr.bf16.mxu0 0
      %1313 = vmatpush1.bf16.msra.mxu0 0
      %1314 = vmatprep.subr.bf16.mxu0 0
      %1315 = vmatpush1.bf16.msra.mxu0 0
      %1316 = vmatprep.subr.bf16.mxu0 0
      %1317 = vmatpush1.bf16.msra.mxu0 0
      %1318 = vmatprep.subr.bf16.mxu0 0
      %1319 = vmatpush1.bf16.msra.mxu0 0
      %1320 = vmatprep.subr.bf16.mxu0 0
      %1321 = vmatpush1.bf16.msra.mxu0 0
      %1322 = vmatprep.mubr.bf16.mxu0 0
      %1323 = vmatmul.mubr.bf16.gmra.mrb[0].mxu0 %v1288
      %v1324 = vpop.f32.mrb[0].mxu0
      %v1325 = vadd.f32 0.0, %v1324
      %v1326 = vpop.f32.mrb[0].mxu0
      %v1327 = vpop.f32.mrb[0].mxu0
      %v1328 = vadd.f32 0.0, %v1327
      %v1329 = vpop.f32.mrb[0].mxu0
      %1330 = vdwg.mxu0
      %v1331 = vpack.c.bf16 %v1328, %v1325
      %s1332 = scalar_lea.vmem %s5, 96
      %v1333 = vld [vmem:[%s1332] sm:$0xf]
      %v1334 = vld [vmem:[%s1332 + $0x4] sm:$0xf]
      %v1335 = vld [vmem:[%s1332 + $0x8] sm:$0xf]
      %v1336 = vld [vmem:[%s1332 + $0xc] sm:$0xf]
      %v1341 = vunpack.c.l.b16 %v1333
      %v1342 = vunpack.c.l.b16 %v1334
      %v1343 = vunpack.c.l.b16 %v1335
      %v1344 = vunpack.c.l.b16 %v1336
      %v1345 = vpack.c.b16 %v1342, %v1341
      %v1346 = vpack.c.b16 %v1344, %v1343
      %v1350 = vsel %vm714, %v1331, 0
      %1352 = vmatprep.subr.bf16.mxu0 0
      %1353 = vmatpush1.bf16.msra.mxu0 %v1345
      %1354 = vmatprep.subr.bf16.mxu0 0
      %1355 = vmatpush1.bf16.msra.mxu0 %v1346
      %1356 = vmatprep.subr.bf16.mxu0 0
      %1357 = vmatpush1.bf16.msra.mxu0 0
      %1358 = vmatprep.subr.bf16.mxu0 0
      %1359 = vmatpush1.bf16.msra.mxu0 0
      %1360 = vmatprep.subr.bf16.mxu0 0
      %1361 = vmatpush1.bf16.msra.mxu0 0
      %1362 = vmatprep.subr.bf16.mxu0 0
      %1363 = vmatpush1.bf16.msra.mxu0 0
      %1364 = vmatprep.subr.bf16.mxu0 0
      %1365 = vmatpush1.bf16.msra.mxu0 0
      %1366 = vmatprep.subr.bf16.mxu0 0
      %1367 = vmatpush1.bf16.msra.mxu0 0
      %1368 = vmatprep.subr.bf16.mxu0 0
      %1369 = vmatpush1.bf16.msra.mxu0 0
      %1370 = vmatprep.subr.bf16.mxu0 0
      %1371 = vmatpush1.bf16.msra.mxu0 0
      %1372 = vmatprep.subr.bf16.mxu0 0
      %1373 = vmatpush1.bf16.msra.mxu0 0
      %1374 = vmatprep.subr.bf16.mxu0 0
      %1375 = vmatpush1.bf16.msra.mxu0 0
      %1376 = vmatprep.subr.bf16.mxu0 0
      %1377 = vmatpush1.bf16.msra.mxu0 0
      %1378 = vmatprep.subr.bf16.mxu0 0
      %1379 = vmatpush1.bf16.msra.mxu0 0
      %1380 = vmatprep.subr.bf16.mxu0 0
      %1381 = vmatpush1.bf16.msra.mxu0 0
      %1382 = vmatprep.subr.bf16.mxu0 0
      %1383 = vmatpush1.bf16.msra.mxu0 0
      %1384 = vmatprep.mubr.bf16.mxu0 0
      %1385 = vmatmul.mubr.bf16.gmra.mrb[0].mxu0 %v1350
      %v1386 = vpop.f32.mrb[0].mxu0
      %v1387 = vadd.f32 0.0, %v1386
      %v1388 = vpop.f32.mrb[0].mxu0
      %v1389 = vpop.f32.mrb[0].mxu0
      %v1390 = vadd.f32 0.0, %v1389
      %v1391 = vpop.f32.mrb[0].mxu0
      %1392 = vdwg.mxu0
      %v1393 = vadd.f32 %v1277, %v1387
      %v1394 = vadd.f32 %v1278, %v1390
      %s1395 = scalar_lea.vmem %s1, 56
      %v1396 = vld [vmem:[%s1395] sm:$0xf]
      %v1397 = vld [vmem:[%s1395 + $0x4] sm:$0xf]
      %v1400 = vunpack.c.l.b16 %v1396
      %v1401 = vunpack.c.l.b16 %v1397
      %v1402 = vpack.c.b16 %v1401, %v1400
      %v1404 = vsel %vm594, %v1402, 0
      %1406 = vmatprep.subr.bf16.mxu0 0
      %1407 = vmatpush1.bf16.msra.mxu0 %v583
      %1408 = vmatprep.subr.bf16.mxu0 0
      %1409 = vmatpush1.bf16.msra.mxu0 %v584
      %1410 = vmatprep.subr.bf16.mxu0 0
      %1411 = vmatpush1.bf16.msra.mxu0 %v585
      %1412 = vmatprep.subr.bf16.mxu0 0
      %1413 = vmatpush1.bf16.msra.mxu0 %v586
      %1414 = vmatprep.subr.bf16.mxu0 0
      %1415 = vmatpush1.bf16.msra.mxu0 0
      %1416 = vmatprep.subr.bf16.mxu0 0
      %1417 = vmatpush1.bf16.msra.mxu0 0
      %1418 = vmatprep.subr.bf16.mxu0 0
      %1419 = vmatpush1.bf16.msra.mxu0 0
      %1420 = vmatprep.subr.bf16.mxu0 0
      %1421 = vmatpush1.bf16.msra.mxu0 0
      %1422 = vmatprep.subr.bf16.mxu0 0
      %1423 = vmatpush1.bf16.msra.mxu0 0
      %1424 = vmatprep.subr.bf16.mxu0 0
      %1425 = vmatpush1.bf16.msra.mxu0 0
      %1426 = vmatprep.subr.bf16.mxu0 0
      %1427 = vmatpush1.bf16.msra.mxu0 0
      %1428 = vmatprep.subr.bf16.mxu0 0
      %1429 = vmatpush1.bf16.msra.mxu0 0
      %1430 = vmatprep.subr.bf16.mxu0 0
      %1431 = vmatpush1.bf16.msra.mxu0 0
      %1432 = vmatprep.subr.bf16.mxu0 0
      %1433 = vmatpush1.bf16.msra.mxu0 0
      %1434 = vmatprep.subr.bf16.mxu0 0
      %1435 = vmatpush1.bf16.msra.mxu0 0
      %1436 = vmatprep.subr.bf16.mxu0 0
      %1437 = vmatpush1.bf16.msra.mxu0 0
      %1438 = vmatprep.mubr.bf16.mxu0 0
      %1439 = vmatmul.mubr.bf16.gmra.mrb[0].mxu0 %v1404
      %v1440 = vpop.f32.mrb[0].mxu0
      %v1441 = vadd.f32 0.0, %v1440
      %v1442 = vpop.f32.mrb[0].mxu0
      %v1443 = vpop.f32.mrb[0].mxu0
      %v1444 = vadd.f32 0.0, %v1443
      %v1445 = vpop.f32.mrb[0].mxu0
      %1446 = vdwg.mxu0
      %v1447 = vpack.c.bf16 %v1444, %v1441
      %s1448 = scalar_lea.vmem %s5, 112
      %v1449 = vld [vmem:[%s1448] sm:$0xf]
      %v1450 = vld [vmem:[%s1448 + $0x4] sm:$0xf]
      %v1451 = vld [vmem:[%s1448 + $0x8] sm:$0xf]
      %v1452 = vld [vmem:[%s1448 + $0xc] sm:$0xf]
      %v1457 = vunpack.c.l.b16 %v1449
      %v1458 = vunpack.c.l.b16 %v1450
      %v1459 = vunpack.c.l.b16 %v1451
      %v1460 = vunpack.c.l.b16 %v1452
      %v1461 = vpack.c.b16 %v1458, %v1457
      %v1462 = vpack.c.b16 %v1460, %v1459
      %v1466 = vsel %vm714, %v1447, 0
      %1468 = vmatprep.subr.bf16.mxu0 0
      %1469 = vmatpush1.bf16.msra.mxu0 %v1461
      %1470 = vmatprep.subr.bf16.mxu0 0
      %1471 = vmatpush1.bf16.msra.mxu0 %v1462
      %1472 = vmatprep.subr.bf16.mxu0 0
      %1473 = vmatpush1.bf16.msra.mxu0 0
      %1474 = vmatprep.subr.bf16.mxu0 0
      %1475 = vmatpush1.bf16.msra.mxu0 0
      %1476 = vmatprep.subr.bf16.mxu0 0
      %1477 = vmatpush1.bf16.msra.mxu0 0
      %1478 = vmatprep.subr.bf16.mxu0 0
      %1479 = vmatpush1.bf16.msra.mxu0 0
      %1480 = vmatprep.subr.bf16.mxu0 0
      %1481 = vmatpush1.bf16.msra.mxu0 0
      %1482 = vmatprep.subr.bf16.mxu0 0
      %1483 = vmatpush1.bf16.msra.mxu0 0
      %1484 = vmatprep.subr.bf16.mxu0 0
      %1485 = vmatpush1.bf16.msra.mxu0 0
      %1486 = vmatprep.subr.bf16.mxu0 0
      %1487 = vmatpush1.bf16.msra.mxu0 0
      %1488 = vmatprep.subr.bf16.mxu0 0
      %1489 = vmatpush1.bf16.msra.mxu0 0
      %1490 = vmatprep.subr.bf16.mxu0 0
      %1491 = vmatpush1.bf16.msra.mxu0 0
      %1492 = vmatprep.subr.bf16.mxu0 0
      %1493 = vmatpush1.bf16.msra.mxu0 0
      %1494 = vmatprep.subr.bf16.mxu0 0
      %1495 = vmatpush1.bf16.msra.mxu0 0
      %1496 = vmatprep.subr.bf16.mxu0 0
      %1497 = vmatpush1.bf16.msra.mxu0 0
      %1498 = vmatprep.subr.bf16.mxu0 0
      %1499 = vmatpush1.bf16.msra.mxu0 0
      %1500 = vmatprep.mubr.bf16.mxu0 0
      %1501 = vmatmul.mubr.bf16.gmra.mrb[0].mxu0 %v1466
      %v1502 = vpop.f32.mrb[0].mxu0
      %v1503 = vadd.f32 0.0, %v1502
      %v1504 = vpop.f32.mrb[0].mxu0
      %v1505 = vpop.f32.mrb[0].mxu0
      %v1506 = vadd.f32 0.0, %v1505
      %v1507 = vpop.f32.mrb[0].mxu0
      %1508 = vdwg.mxu0
      %v1509 = vadd.f32 %v1393, %v1503
      %v1510 = vadd.f32 %v1394, %v1506
      %s1511 = scalar_lea.vmem %s1, 64
      %v1512 = vld [vmem:[%s1511] sm:$0xf]
      %v1513 = vld [vmem:[%s1511 + $0x4] sm:$0xf]
      %v1516 = vunpack.c.l.b16 %v1512
      %v1517 = vunpack.c.l.b16 %v1513
      %v1518 = vpack.c.b16 %v1517, %v1516
      %v1520 = vsel %vm594, %v1518, 0
      %1522 = vmatprep.subr.bf16.mxu0 0
      %1523 = vmatpush1.bf16.msra.mxu0 %v583
      %1524 = vmatprep.subr.bf16.mxu0 0
      %1525 = vmatpush1.bf16.msra.mxu0 %v584
      %1526 = vmatprep.subr.bf16.mxu0 0
      %1527 = vmatpush1.bf16.msra.mxu0 %v585
      %1528 = vmatprep.subr.bf16.mxu0 0
      %1529 = vmatpush1.bf16.msra.mxu0 %v586
      %1530 = vmatprep.subr.bf16.mxu0 0
      %1531 = vmatpush1.bf16.msra.mxu0 0
      %1532 = vmatprep.subr.bf16.mxu0 0
      %1533 = vmatpush1.bf16.msra.mxu0 0
      %1534 = vmatprep.subr.bf16.mxu0 0
      %1535 = vmatpush1.bf16.msra.mxu0 0
      %1536 = vmatprep.subr.bf16.mxu0 0
      %1537 = vmatpush1.bf16.msra.mxu0 0
      %1538 = vmatprep.subr.bf16.mxu0 0
      %1539 = vmatpush1.bf16.msra.mxu0 0
      %1540 = vmatprep.subr.bf16.mxu0 0
      %1541 = vmatpush1.bf16.msra.mxu0 0
      %1542 = vmatprep.subr.bf16.mxu0 0
      %1543 = vmatpush1.bf16.msra.mxu0 0
      %1544 = vmatprep.subr.bf16.mxu0 0
      %1545 = vmatpush1.bf16.msra.mxu0 0
      %1546 = vmatprep.subr.bf16.mxu0 0
      %1547 = vmatpush1.bf16.msra.mxu0 0
      %1548 = vmatprep.subr.bf16.mxu0 0
      %1549 = vmatpush1.bf16.msra.mxu0 0
      %1550 = vmatprep.subr.bf16.mxu0 0
      %1551 = vmatpush1.bf16.msra.mxu0 0
      %1552 = vmatprep.subr.bf16.mxu0 0
      %1553 = vmatpush1.bf16.msra.mxu0 0
      %1554 = vmatprep.mubr.bf16.mxu0 0
      %1555 = vmatmul.mubr.bf16.gmra.mrb[0].mxu0 %v1520
      %v1556 = vpop.f32.mrb[0].mxu0
      %v1557 = vadd.f32 0.0, %v1556
      %v1558 = vpop.f32.mrb[0].mxu0
      %v1559 = vpop.f32.mrb[0].mxu0
      %v1560 = vadd.f32 0.0, %v1559
      %v1561 = vpop.f32.mrb[0].mxu0
      %1562 = vdwg.mxu0
      %v1563 = vpack.c.bf16 %v1560, %v1557
      %s1564 = scalar_lea.vmem %s5, 128
      %v1565 = vld [vmem:[%s1564] sm:$0xf]
      %v1566 = vld [vmem:[%s1564 + $0x4] sm:$0xf]
      %v1567 = vld [vmem:[%s1564 + $0x8] sm:$0xf]
      %v1568 = vld [vmem:[%s1564 + $0xc] sm:$0xf]
      %v1573 = vunpack.c.l.b16 %v1565
      %v1574 = vunpack.c.l.b16 %v1566
      %v1575 = vunpack.c.l.b16 %v1567
      %v1576 = vunpack.c.l.b16 %v1568
      %v1577 = vpack.c.b16 %v1574, %v1573
      %v1578 = vpack.c.b16 %v1576, %v1575
      %v1582 = vsel %vm714, %v1563, 0
      %1584 = vmatprep.subr.bf16.mxu0 0
      %1585 = vmatpush1.bf16.msra.mxu0 %v1577
      %1586 = vmatprep.subr.bf16.mxu0 0
      %1587 = vmatpush1.bf16.msra.mxu0 %v1578
      %1588 = vmatprep.subr.bf16.mxu0 0
      %1589 = vmatpush1.bf16.msra.mxu0 0
      %1590 = vmatprep.subr.bf16.mxu0 0
      %1591 = vmatpush1.bf16.msra.mxu0 0
      %1592 = vmatprep.subr.bf16.mxu0 0
      %1593 = vmatpush1.bf16.msra.mxu0 0
      %1594 = vmatprep.subr.bf16.mxu0 0
      %1595 = vmatpush1.bf16.msra.mxu0 0
      %1596 = vmatprep.subr.bf16.mxu0 0
      %1597 = vmatpush1.bf16.msra.mxu0 0
      %1598 = vmatprep.subr.bf16.mxu0 0
      %1599 = vmatpush1.bf16.msra.mxu0 0
      %1600 = vmatprep.subr.bf16.mxu0 0
      %1601 = vmatpush1.bf16.msra.mxu0 0
      %1602 = vmatprep.subr.bf16.mxu0 0
      %1603 = vmatpush1.bf16.msra.mxu0 0
      %1604 = vmatprep.subr.bf16.mxu0 0
      %1605 = vmatpush1.bf16.msra.mxu0 0
      %1606 = vmatprep.subr.bf16.mxu0 0
      %1607 = vmatpush1.bf16.msra.mxu0 0
      %1608 = vmatprep.subr.bf16.mxu0 0
      %1609 = vmatpush1.bf16.msra.mxu0 0
      %1610 = vmatprep.subr.bf16.mxu0 0
      %1611 = vmatpush1.bf16.msra.mxu0 0
      %1612 = vmatprep.subr.bf16.mxu0 0
      %1613 = vmatpush1.bf16.msra.mxu0 0
      %1614 = vmatprep.subr.bf16.mxu0 0
      %1615 = vmatpush1.bf16.msra.mxu0 0
      %1616 = vmatprep.mubr.bf16.mxu0 0
      %1617 = vmatmul.mubr.bf16.gmra.mrb[0].mxu0 %v1582
      %v1618 = vpop.f32.mrb[0].mxu0
      %v1619 = vadd.f32 0.0, %v1618
      %v1620 = vpop.f32.mrb[0].mxu0
      %v1621 = vpop.f32.mrb[0].mxu0
      %v1622 = vadd.f32 0.0, %v1621
      %v1623 = vpop.f32.mrb[0].mxu0
      %1624 = vdwg.mxu0
      %v1625 = vadd.f32 %v1509, %v1619
      %v1626 = vadd.f32 %v1510, %v1622
      %v1627 = vld [vmem:[%s9] sm:$0x1]
      %v1629 = vlaneseq
      %v1630 = vshrl.u32 %v1629, 7
      %v1631 = vsub.s32 0, %v1630
      %v1632 = vrot.slane %v1627, %v1631
      %v1634 = vadd.f32 %v1625, %v1632
      %v1635 = vadd.f32 %v1626, %v1632
      %v1636 = vpack.c.bf16 %v1635, %v1634
      %v1637 = vld [vmem:[%s2] sm:$0xf]
      %vm1638 = vcmask 130048
      %v1640 = vsel %vm1638, %v1637, 0
      %1642 = vmatprep.subr.bf16.mxu0 0
      %1643 = vmatpush1.bf16.msra.mxu0 %v1636
      %1644 = vmatprep.subr.bf16.mxu0 0
      %1645 = vmatpush1.bf16.msra.mxu0 0
      %1646 = vmatprep.subr.bf16.mxu0 0
      %1647 = vmatpush1.bf16.msra.mxu0 0
      %1648 = vmatprep.subr.bf16.mxu0 0
      %1649 = vmatpush1.bf16.msra.mxu0 0
      %1650 = vmatprep.subr.bf16.mxu0 0
      %1651 = vmatpush1.bf16.msra.mxu0 0
      %1652 = vmatprep.subr.bf16.mxu0 0
      %1653 = vmatpush1.bf16.msra.mxu0 0
      %1654 = vmatprep.subr.bf16.mxu0 0
      %1655 = vmatpush1.bf16.msra.mxu0 0
      %1656 = vmatprep.subr.bf16.mxu0 0
      %1657 = vmatpush1.bf16.msra.mxu0 0
      %1658 = vmatprep.subr.bf16.mxu0 0
      %1659 = vmatpush1.bf16.msra.mxu0 0
      %1660 = vmatprep.subr.bf16.mxu0 0
      %1661 = vmatpush1.bf16.msra.mxu0 0
      %1662 = vmatprep.subr.bf16.mxu0 0
      %1663 = vmatpush1.bf16.msra.mxu0 0
      %1664 = vmatprep.subr.bf16.mxu0 0
      %1665 = vmatpush1.bf16.msra.mxu0 0
      %1666 = vmatprep.subr.bf16.mxu0 0
      %1667 = vmatpush1.bf16.msra.mxu0 0
      %1668 = vmatprep.subr.bf16.mxu0 0
      %1669 = vmatpush1.bf16.msra.mxu0 0
      %1670 = vmatprep.subr.bf16.mxu0 0
      %1671 = vmatpush1.bf16.msra.mxu0 0
      %1672 = vmatprep.subr.bf16.mxu0 0
      %1673 = vmatpush1.bf16.msra.mxu0 0
      %1674 = vmatprep.mubr.bf16.mxu0 0
      %1675 = vmatmul.mubr.bf16.gmra.mrb[0].mxu0 %v1640
      %v1676 = vpop.f32.mrb[0].mxu0
      %v1677 = vadd.f32 0.0, %v1676
      %v1678 = vpop.f32.mrb[0].mxu0
      %v1679 = vpop.f32.mrb[0].mxu0
      %v1680 = vpop.f32.mrb[0].mxu0
      %1681 = vdwg.mxu0
      %v1682 = vpack.c.bf16 %v1677, %v1677
      %v1683 = vld [vmem:[%s6] sm:$0xf]
      %v1684 = vld [vmem:[%s6 + $0x4] sm:$0xf]
      %v1685 = vld [vmem:[%s6 + $0x8] sm:$0xf]
      %v1686 = vld [vmem:[%s6 + $0xc] sm:$0xf]
      %s1687 = scalar_lea.vmem %s2, 4
      %v1688 = vld [vmem:[%s1687] sm:$0xf]
      %v1690 = vsel %vm1638, %v1688, 0
      %1692 = vmatprep.subr.bf16.mxu0 0
      %1693 = vmatpush1.bf16.msra.mxu0 %v1636
      %1694 = vmatprep.subr.bf16.mxu0 0
      %1695 = vmatpush1.bf16.msra.mxu0 0
      %1696 = vmatprep.subr.bf16.mxu0 0
      %1697 = vmatpush1.bf16.msra.mxu0 0
      %1698 = vmatprep.subr.bf16.mxu0 0
      %1699 = vmatpush1.bf16.msra.mxu0 0
      %1700 = vmatprep.subr.bf16.mxu0 0
      %1701 = vmatpush1.bf16.msra.mxu0 0
      %1702 = vmatprep.subr.bf16.mxu0 0
      %1703 = vmatpush1.bf16.msra.mxu0 0
      %1704 = vmatprep.subr.bf16.mxu0 0
      %1705 = vmatpush1.bf16.msra.mxu0 0
      %1706 = vmatprep.subr.bf16.mxu0 0
      %1707 = vmatpush1.bf16.msra.mxu0 0
      %1708 = vmatprep.subr.bf16.mxu0 0
      %1709 = vmatpush1.bf16.msra.mxu0 0
      %1710 = vmatprep.subr.bf16.mxu0 0
      %1711 = vmatpush1.bf16.msra.mxu0 0
      %1712 = vmatprep.subr.bf16.mxu0 0
      %1713 = vmatpush1.bf16.msra.mxu0 0
      %1714 = vmatprep.subr.bf16.mxu0 0
      %1715 = vmatpush1.bf16.msra.mxu0 0
      %1716 = vmatprep.subr.bf16.mxu0 0
      %1717 = vmatpush1.bf16.msra.mxu0 0
      %1718 = vmatprep.subr.bf16.mxu0 0
      %1719 = vmatpush1.bf16.msra.mxu0 0
      %1720 = vmatprep.subr.bf16.mxu0 0
      %1721 = vmatpush1.bf16.msra.mxu0 0
      %1722 = vmatprep.subr.bf16.mxu0 0
      %1723 = vmatpush1.bf16.msra.mxu0 0
      %1724 = vmatprep.mubr.bf16.mxu0 0
      %1725 = vmatmul.mubr.bf16.gmra.mrb[0].mxu0 %v1690
      %v1726 = vpop.f32.mrb[0].mxu0
      %v1727 = vadd.f32 0.0, %v1726
      %v1728 = vpop.f32.mrb[0].mxu0
      %v1729 = vpop.f32.mrb[0].mxu0
      %v1730 = vpop.f32.mrb[0].mxu0
      %1731 = vdwg.mxu0
      %v1732 = vpack.c.bf16 %v1727, %v1727
      %s1733 = scalar_lea.vmem %s6, 16
      %v1734 = vld [vmem:[%s1733] sm:$0xf]
      %v1735 = vld [vmem:[%s1733 + $0x4] sm:$0xf]
      %v1736 = vld [vmem:[%s1733 + $0x8] sm:$0xf]
      %v1737 = vld [vmem:[%s1733 + $0xc] sm:$0xf]
      %v1742 = vunpack.c.l.b16 %v1734
      %v1743 = vunpack.c.l.b16 %v1735
      %v1744 = vunpack.c.l.b16 %v1736
      %v1745 = vunpack.c.l.b16 %v1737
      %v1746 = vpack.c.b16 %v1743, %v1742
      %v1747 = vpack.c.b16 %v1745, %v1744
      %v1751 = vsel %vm714, %v1732, 0
      %1753 = vmatprep.subr.bf16.mxu0 0
      %1754 = vmatpush1.bf16.msra.mxu0 %v1746
      %1755 = vmatprep.subr.bf16.mxu0 0
      %1756 = vmatpush1.bf16.msra.mxu0 %v1747
      %1757 = vmatprep.subr.bf16.mxu0 0
      %1758 = vmatpush1.bf16.msra.mxu0 0
      %1759 = vmatprep.subr.bf16.mxu0 0
      %1760 = vmatpush1.bf16.msra.mxu0 0
      %1761 = vmatprep.subr.bf16.mxu0 0
      %1762 = vmatpush1.bf16.msra.mxu0 0
      %1763 = vmatprep.subr.bf16.mxu0 0
      %1764 = vmatpush1.bf16.msra.mxu0 0
      %1765 = vmatprep.subr.bf16.mxu0 0
      %1766 = vmatpush1.bf16.msra.mxu0 0
      %1767 = vmatprep.subr.bf16.mxu0 0
      %1768 = vmatpush1.bf16.msra.mxu0 0
      %1769 = vmatprep.subr.bf16.mxu0 0
      %1770 = vmatpush1.bf16.msra.mxu0 0
      %1771 = vmatprep.subr.bf16.mxu0 0
      %1772 = vmatpush1.bf16.msra.mxu0 0
      %1773 = vmatprep.subr.bf16.mxu0 0
      %1774 = vmatpush1.bf16.msra.mxu0 0
      %1775 = vmatprep.subr.bf16.mxu0 0
      %1776 = vmatpush1.bf16.msra.mxu0 0
      %1777 = vmatprep.subr.bf16.mxu0 0
      %1778 = vmatpush1.bf16.msra.mxu0 0
      %1779 = vmatprep.subr.bf16.mxu0 0
      %1780 = vmatpush1.bf16.msra.mxu0 0
      %1781 = vmatprep.subr.bf16.mxu0 0
      %1782 = vmatpush1.bf16.msra.mxu0 0
      %1783 = vmatprep.subr.bf16.mxu0 0
      %1784 = vmatpush1.bf16.msra.mxu0 0
      %1785 = vmatprep.mubr.bf16.mxu0 0
      %1786 = vmatmul.mubr.bf16.gmra.mrb[0].mxu0 %v1751
      %v1787 = vpop.f32.mrb[0].mxu0
      %v1788 = vadd.f32 0.0, %v1787
      %v1789 = vpop.f32.mrb[0].mxu0
      %v1790 = vpop.f32.mrb[0].mxu0
      %v1791 = vpop.f32.mrb[0].mxu0
      %1792 = vdwg.mxu0
      %v1797 = vunpack.c.l.b16 %v1683
      %v1798 = vunpack.c.l.b16 %v1684
      %v1799 = vunpack.c.l.b16 %v1685
      %v1800 = vunpack.c.l.b16 %v1686
      %v1801 = vpack.c.b16 %v1798, %v1797
      %v1802 = vpack.c.b16 %v1800, %v1799
      %v1806 = vsel %vm714, %v1682, 0
      %1808 = vmatprep.subr.bf16.mxu0 0
      %1809 = vmatpush1.bf16.msra.mxu0 %v1801
      %1810 = vmatprep.subr.bf16.mxu0 0
      %1811 = vmatpush1.bf16.msra.mxu0 %v1802
      %1812 = vmatprep.subr.bf16.mxu0 0
      %1813 = vmatpush1.bf16.msra.mxu0 0
      %1814 = vmatprep.subr.bf16.mxu0 0
      %1815 = vmatpush1.bf16.msra.mxu0 0
      %1816 = vmatprep.subr.bf16.mxu0 0
      %1817 = vmatpush1.bf16.msra.mxu0 0
      %1818 = vmatprep.subr.bf16.mxu0 0
      %1819 = vmatpush1.bf16.msra.mxu0 0
      %1820 = vmatprep.subr.bf16.mxu0 0
      %1821 = vmatpush1.bf16.msra.mxu0 0
      %1822 = vmatprep.subr.bf16.mxu0 0
      %1823 = vmatpush1.bf16.msra.mxu0 0
      %1824 = vmatprep.subr.bf16.mxu0 0
      %1825 = vmatpush1.bf16.msra.mxu0 0
      %1826 = vmatprep.subr.bf16.mxu0 0
      %1827 = vmatpush1.bf16.msra.mxu0 0
      %1828 = vmatprep.subr.bf16.mxu0 0
      %1829 = vmatpush1.bf16.msra.mxu0 0
      %1830 = vmatprep.subr.bf16.mxu0 0
      %1831 = vmatpush1.bf16.msra.mxu0 0
      %1832 = vmatprep.subr.bf16.mxu0 0
      %1833 = vmatpush1.bf16.msra.mxu0 0
      %1834 = vmatprep.subr.bf16.mxu0 0
      %1835 = vmatpush1.bf16.msra.mxu0 0
      %1836 = vmatprep.subr.bf16.mxu0 0
      %1837 = vmatpush1.bf16.msra.mxu0 0
      %1838 = vmatprep.subr.bf16.mxu0 0
      %1839 = vmatpush1.bf16.msra.mxu0 0
      %1840 = vmatprep.mubr.bf16.mxu0 0
      %1841 = vmatmul.mubr.bf16.gmra.mrb[0].mxu0 %v1806
      %v1842 = vpop.f32.mrb[0].mxu0
      %v1843 = vadd.f32 %v1788, %v1842
      %v1844 = vpop.f32.mrb[0].mxu0
      %v1845 = vpop.f32.mrb[0].mxu0
      %v1846 = vpop.f32.mrb[0].mxu0
      %1847 = vdwg.mxu0
      %s1848 = scalar_lea.vmem %s2, 8
      %v1849 = vld [vmem:[%s1848] sm:$0xf]
      %v1851 = vsel %vm1638, %v1849, 0
      %1853 = vmatprep.subr.bf16.mxu0 0
      %1854 = vmatpush1.bf16.msra.mxu0 %v1636
      %1855 = vmatprep.subr.bf16.mxu0 0
      %1856 = vmatpush1.bf16.msra.mxu0 0
      %1857 = vmatprep.subr.bf16.mxu0 0
      %1858 = vmatpush1.bf16.msra.mxu0 0
      %1859 = vmatprep.subr.bf16.mxu0 0
      %1860 = vmatpush1.bf16.msra.mxu0 0
      %1861 = vmatprep.subr.bf16.mxu0 0
      %1862 = vmatpush1.bf16.msra.mxu0 0
      %1863 = vmatprep.subr.bf16.mxu0 0
      %1864 = vmatpush1.bf16.msra.mxu0 0
      %1865 = vmatprep.subr.bf16.mxu0 0
      %1866 = vmatpush1.bf16.msra.mxu0 0
      %1867 = vmatprep.subr.bf16.mxu0 0
      %1868 = vmatpush1.bf16.msra.mxu0 0
      %1869 = vmatprep.subr.bf16.mxu0 0
      %1870 = vmatpush1.bf16.msra.mxu0 0
      %1871 = vmatprep.subr.bf16.mxu0 0
      %1872 = vmatpush1.bf16.msra.mxu0 0
      %1873 = vmatprep.subr.bf16.mxu0 0
      %1874 = vmatpush1.bf16.msra.mxu0 0
      %1875 = vmatprep.subr.bf16.mxu0 0
      %1876 = vmatpush1.bf16.msra.mxu0 0
      %1877 = vmatprep.subr.bf16.mxu0 0
      %1878 = vmatpush1.bf16.msra.mxu0 0
      %1879 = vmatprep.subr.bf16.mxu0 0
      %1880 = vmatpush1.bf16.msra.mxu0 0
      %1881 = vmatprep.subr.bf16.mxu0 0
      %1882 = vmatpush1.bf16.msra.mxu0 0
      %1883 = vmatprep.subr.bf16.mxu0 0
      %1884 = vmatpush1.bf16.msra.mxu0 0
      %1885 = vmatprep.mubr.bf16.mxu0 0
      %1886 = vmatmul.mubr.bf16.gmra.mrb[0].mxu0 %v1851
      %v1887 = vpop.f32.mrb[0].mxu0
      %v1888 = vadd.f32 0.0, %v1887
      %v1889 = vpop.f32.mrb[0].mxu0
      %v1890 = vpop.f32.mrb[0].mxu0
      %v1891 = vpop.f32.mrb[0].mxu0
      %1892 = vdwg.mxu0
      %v1893 = vpack.c.bf16 %v1888, %v1888
      %s1894 = scalar_lea.vmem %s6, 32
      %v1895 = vld [vmem:[%s1894] sm:$0xf]
      %v1896 = vld [vmem:[%s1894 + $0x4] sm:$0xf]
      %v1897 = vld [vmem:[%s1894 + $0x8] sm:$0xf]
      %v1898 = vld [vmem:[%s1894 + $0xc] sm:$0xf]
      %v1903 = vunpack.c.l.b16 %v1895
      %v1904 = vunpack.c.l.b16 %v1896
      %v1905 = vunpack.c.l.b16 %v1897
      %v1906 = vunpack.c.l.b16 %v1898
      %v1907 = vpack.c.b16 %v1904, %v1903
      %v1908 = vpack.c.b16 %v1906, %v1905
      %v1912 = vsel %vm714, %v1893, 0
      %1914 = vmatprep.subr.bf16.mxu0 0
      %1915 = vmatpush1.bf16.msra.mxu0 %v1907
      %1916 = vmatprep.subr.bf16.mxu0 0
      %1917 = vmatpush1.bf16.msra.mxu0 %v1908
      %1918 = vmatprep.subr.bf16.mxu0 0
      %1919 = vmatpush1.bf16.msra.mxu0 0
      %1920 = vmatprep.subr.bf16.mxu0 0
      %1921 = vmatpush1.bf16.msra.mxu0 0
      %1922 = vmatprep.subr.bf16.mxu0 0
      %1923 = vmatpush1.bf16.msra.mxu0 0
      %1924 = vmatprep.subr.bf16.mxu0 0
      %1925 = vmatpush1.bf16.msra.mxu0 0
      %1926 = vmatprep.subr.bf16.mxu0 0
      %1927 = vmatpush1.bf16.msra.mxu0 0
      %1928 = vmatprep.subr.bf16.mxu0 0
      %1929 = vmatpush1.bf16.msra.mxu0 0
      %1930 = vmatprep.subr.bf16.mxu0 0
      %1931 = vmatpush1.bf16.msra.mxu0 0
      %1932 = vmatprep.subr.bf16.mxu0 0
      %1933 = vmatpush1.bf16.msra.mxu0 0
      %1934 = vmatprep.subr.bf16.mxu0 0
      %1935 = vmatpush1.bf16.msra.mxu0 0
      %1936 = vmatprep.subr.bf16.mxu0 0
      %1937 = vmatpush1.bf16.msra.mxu0 0
      %1938 = vmatprep.subr.bf16.mxu0 0
      %1939 = vmatpush1.bf16.msra.mxu0 0
      %1940 = vmatprep.subr.bf16.mxu0 0
      %1941 = vmatpush1.bf16.msra.mxu0 0
      %1942 = vmatprep.subr.bf16.mxu0 0
      %1943 = vmatpush1.bf16.msra.mxu0 0
      %1944 = vmatprep.subr.bf16.mxu0 0
      %1945 = vmatpush1.bf16.msra.mxu0 0
      %1946 = vmatprep.mubr.bf16.mxu0 0
      %1947 = vmatmul.mubr.bf16.gmra.mrb[0].mxu0 %v1912
      %v1948 = vpop.f32.mrb[0].mxu0
      %v1949 = vadd.f32 0.0, %v1948
      %v1950 = vpop.f32.mrb[0].mxu0
      %v1951 = vpop.f32.mrb[0].mxu0
      %v1952 = vpop.f32.mrb[0].mxu0
      %1953 = vdwg.mxu0
      %v1954 = vadd.f32 %v1843, %v1949
      %s1955 = scalar_lea.vmem %s2, 12
      %v1956 = vld [vmem:[%s1955] sm:$0xf]
      %v1958 = vsel %vm1638, %v1956, 0
      %1960 = vmatprep.subr.bf16.mxu0 0
      %1961 = vmatpush1.bf16.msra.mxu0 %v1636
      %1962 = vmatprep.subr.bf16.mxu0 0
      %1963 = vmatpush1.bf16.msra.mxu0 0
      %1964 = vmatprep.subr.bf16.mxu0 0
      %1965 = vmatpush1.bf16.msra.mxu0 0
      %1966 = vmatprep.subr.bf16.mxu0 0
      %1967 = vmatpush1.bf16.msra.mxu0 0
      %1968 = vmatprep.subr.bf16.mxu0 0
      %1969 = vmatpush1.bf16.msra.mxu0 0
      %1970 = vmatprep.subr.bf16.mxu0 0
      %1971 = vmatpush1.bf16.msra.mxu0 0
      %1972 = vmatprep.subr.bf16.mxu0 0
      %1973 = vmatpush1.bf16.msra.mxu0 0
      %1974 = vmatprep.subr.bf16.mxu0 0
      %1975 = vmatpush1.bf16.msra.mxu0 0
      %1976 = vmatprep.subr.bf16.mxu0 0
      %1977 = vmatpush1.bf16.msra.mxu0 0
      %1978 = vmatprep.subr.bf16.mxu0 0
      %1979 = vmatpush1.bf16.msra.mxu0 0
      %1980 = vmatprep.subr.bf16.mxu0 0
      %1981 = vmatpush1.bf16.msra.mxu0 0
      %1982 = vmatprep.subr.bf16.mxu0 0
      %1983 = vmatpush1.bf16.msra.mxu0 0
      %1984 = vmatprep.subr.bf16.mxu0 0
      %1985 = vmatpush1.bf16.msra.mxu0 0
      %1986 = vmatprep.subr.bf16.mxu0 0
      %1987 = vmatpush1.bf16.msra.mxu0 0
      %1988 = vmatprep.subr.bf16.mxu0 0
      %1989 = vmatpush1.bf16.msra.mxu0 0
      %1990 = vmatprep.subr.bf16.mxu0 0
      %1991 = vmatpush1.bf16.msra.mxu0 0
      %1992 = vmatprep.mubr.bf16.mxu0 0
      %1993 = vmatmul.mubr.bf16.gmra.mrb[0].mxu0 %v1958
      %v1994 = vpop.f32.mrb[0].mxu0
      %v1995 = vadd.f32 0.0, %v1994
      %v1996 = vpop.f32.mrb[0].mxu0
      %v1997 = vpop.f32.mrb[0].mxu0
      %v1998 = vpop.f32.mrb[0].mxu0
      %1999 = vdwg.mxu0
      %v2000 = vpack.c.bf16 %v1995, %v1995
      %s2001 = scalar_lea.vmem %s6, 48
      %v2002 = vld [vmem:[%s2001] sm:$0xf]
      %v2003 = vld [vmem:[%s2001 + $0x4] sm:$0xf]
      %v2004 = vld [vmem:[%s2001 + $0x8] sm:$0xf]
      %v2005 = vld [vmem:[%s2001 + $0xc] sm:$0xf]
      %v2010 = vunpack.c.l.b16 %v2002
      %v2011 = vunpack.c.l.b16 %v2003
      %v2012 = vunpack.c.l.b16 %v2004
      %v2013 = vunpack.c.l.b16 %v2005
      %v2014 = vpack.c.b16 %v2011, %v2010
      %v2015 = vpack.c.b16 %v2013, %v2012
      %v2019 = vsel %vm714, %v2000, 0
      %2021 = vmatprep.subr.bf16.mxu0 0
      %2022 = vmatpush1.bf16.msra.mxu0 %v2014
      %2023 = vmatprep.subr.bf16.mxu0 0
      %2024 = vmatpush1.bf16.msra.mxu0 %v2015
      %2025 = vmatprep.subr.bf16.mxu0 0
      %2026 = vmatpush1.bf16.msra.mxu0 0
      %2027 = vmatprep.subr.bf16.mxu0 0
      %2028 = vmatpush1.bf16.msra.mxu0 0
      %2029 = vmatprep.subr.bf16.mxu0 0
      %2030 = vmatpush1.bf16.msra.mxu0 0
      %2031 = vmatprep.subr.bf16.mxu0 0
      %2032 = vmatpush1.bf16.msra.mxu0 0
      %2033 = vmatprep.subr.bf16.mxu0 0
      %2034 = vmatpush1.bf16.msra.mxu0 0
      %2035 = vmatprep.subr.bf16.mxu0 0
      %2036 = vmatpush1.bf16.msra.mxu0 0
      %2037 = vmatprep.subr.bf16.mxu0 0
      %2038 = vmatpush1.bf16.msra.mxu0 0
      %2039 = vmatprep.subr.bf16.mxu0 0
      %2040 = vmatpush1.bf16.msra.mxu0 0
      %2041 = vmatprep.subr.bf16.mxu0 0
      %2042 = vmatpush1.bf16.msra.mxu0 0
      %2043 = vmatprep.subr.bf16.mxu0 0
      %2044 = vmatpush1.bf16.msra.mxu0 0
      %2045 = vmatprep.subr.bf16.mxu0 0
      %2046 = vmatpush1.bf16.msra.mxu0 0
      %2047 = vmatprep.subr.bf16.mxu0 0
      %2048 = vmatpush1.bf16.msra.mxu0 0
      %2049 = vmatprep.subr.bf16.mxu0 0
      %2050 = vmatpush1.bf16.msra.mxu0 0
      %2051 = vmatprep.subr.bf16.mxu0 0
      %2052 = vmatpush1.bf16.msra.mxu0 0
      %2053 = vmatprep.mubr.bf16.mxu0 0
      %2054 = vmatmul.mubr.bf16.gmra.mrb[0].mxu0 %v2019
      %v2055 = vpop.f32.mrb[0].mxu0
      %v2056 = vadd.f32 0.0, %v2055
      %v2057 = vpop.f32.mrb[0].mxu0
      %v2058 = vpop.f32.mrb[0].mxu0
      %v2059 = vpop.f32.mrb[0].mxu0
      %2060 = vdwg.mxu0
      %v2061 = vadd.f32 %v1954, %v2056
      %s2062 = scalar_lea.vmem %s2, 16
      %v2063 = vld [vmem:[%s2062] sm:$0xf]
      %v2065 = vsel %vm1638, %v2063, 0
      %2067 = vmatprep.subr.bf16.mxu0 0
      %2068 = vmatpush1.bf16.msra.mxu0 %v1636
      %2069 = vmatprep.subr.bf16.mxu0 0
      %2070 = vmatpush1.bf16.msra.mxu0 0
      %2071 = vmatprep.subr.bf16.mxu0 0
      %2072 = vmatpush1.bf16.msra.mxu0 0
      %2073 = vmatprep.subr.bf16.mxu0 0
      %2074 = vmatpush1.bf16.msra.mxu0 0
      %2075 = vmatprep.subr.bf16.mxu0 0
      %2076 = vmatpush1.bf16.msra.mxu0 0
      %2077 = vmatprep.subr.bf16.mxu0 0
      %2078 = vmatpush1.bf16.msra.mxu0 0
      %2079 = vmatprep.subr.bf16.mxu0 0
      %2080 = vmatpush1.bf16.msra.mxu0 0
      %2081 = vmatprep.subr.bf16.mxu0 0
      %2082 = vmatpush1.bf16.msra.mxu0 0
      %2083 = vmatprep.subr.bf16.mxu0 0
      %2084 = vmatpush1.bf16.msra.mxu0 0
      %2085 = vmatprep.subr.bf16.mxu0 0
      %2086 = vmatpush1.bf16.msra.mxu0 0
      %2087 = vmatprep.subr.bf16.mxu0 0
      %2088 = vmatpush1.bf16.msra.mxu0 0
      %2089 = vmatprep.subr.bf16.mxu0 0
      %2090 = vmatpush1.bf16.msra.mxu0 0
      %2091 = vmatprep.subr.bf16.mxu0 0
      %2092 = vmatpush1.bf16.msra.mxu0 0
      %2093 = vmatprep.subr.bf16.mxu0 0
      %2094 = vmatpush1.bf16.msra.mxu0 0
      %2095 = vmatprep.subr.bf16.mxu0 0
      %2096 = vmatpush1.bf16.msra.mxu0 0
      %2097 = vmatprep.subr.bf16.mxu0 0
      %2098 = vmatpush1.bf16.msra.mxu0 0
      %2099 = vmatprep.mubr.bf16.mxu0 0
      %2100 = vmatmul.mubr.bf16.gmra.mrb[0].mxu0 %v2065
      %v2101 = vpop.f32.mrb[0].mxu0
      %v2102 = vadd.f32 0.0, %v2101
      %v2103 = vpop.f32.mrb[0].mxu0
      %v2104 = vpop.f32.mrb[0].mxu0
      %v2105 = vpop.f32.mrb[0].mxu0
      %2106 = vdwg.mxu0
      %v2107 = vpack.c.bf16 %v2102, %v2102
      %s2108 = scalar_lea.vmem %s6, 64
      %v2109 = vld [vmem:[%s2108] sm:$0xf]
      %v2110 = vld [vmem:[%s2108 + $0x4] sm:$0xf]
      %v2111 = vld [vmem:[%s2108 + $0x8] sm:$0xf]
      %v2112 = vld [vmem:[%s2108 + $0xc] sm:$0xf]
      %v2117 = vunpack.c.l.b16 %v2109
      %v2118 = vunpack.c.l.b16 %v2110
      %v2119 = vunpack.c.l.b16 %v2111
      %v2120 = vunpack.c.l.b16 %v2112
      %v2121 = vpack.c.b16 %v2118, %v2117
      %v2122 = vpack.c.b16 %v2120, %v2119
      %v2126 = vsel %vm714, %v2107, 0
      %2128 = vmatprep.subr.bf16.mxu0 0
      %2129 = vmatpush1.bf16.msra.mxu0 %v2121
      %2130 = vmatprep.subr.bf16.mxu0 0
      %2131 = vmatpush1.bf16.msra.mxu0 %v2122
      %2132 = vmatprep.subr.bf16.mxu0 0
      %2133 = vmatpush1.bf16.msra.mxu0 0
      %2134 = vmatprep.subr.bf16.mxu0 0
      %2135 = vmatpush1.bf16.msra.mxu0 0
      %2136 = vmatprep.subr.bf16.mxu0 0
      %2137 = vmatpush1.bf16.msra.mxu0 0
      %2138 = vmatprep.subr.bf16.mxu0 0
      %2139 = vmatpush1.bf16.msra.mxu0 0
      %2140 = vmatprep.subr.bf16.mxu0 0
      %2141 = vmatpush1.bf16.msra.mxu0 0
      %2142 = vmatprep.subr.bf16.mxu0 0
      %2143 = vmatpush1.bf16.msra.mxu0 0
      %2144 = vmatprep.subr.bf16.mxu0 0
      %2145 = vmatpush1.bf16.msra.mxu0 0
      %2146 = vmatprep.subr.bf16.mxu0 0
      %2147 = vmatpush1.bf16.msra.mxu0 0
      %2148 = vmatprep.subr.bf16.mxu0 0
      %2149 = vmatpush1.bf16.msra.mxu0 0
      %2150 = vmatprep.subr.bf16.mxu0 0
      %2151 = vmatpush1.bf16.msra.mxu0 0
      %2152 = vmatprep.subr.bf16.mxu0 0
      %2153 = vmatpush1.bf16.msra.mxu0 0
      %2154 = vmatprep.subr.bf16.mxu0 0
      %2155 = vmatpush1.bf16.msra.mxu0 0
      %2156 = vmatprep.subr.bf16.mxu0 0
      %2157 = vmatpush1.bf16.msra.mxu0 0
      %2158 = vmatprep.subr.bf16.mxu0 0
      %2159 = vmatpush1.bf16.msra.mxu0 0
      %2160 = vmatprep.mubr.bf16.mxu0 0
      %2161 = vmatmul.mubr.bf16.gmra.mrb[0].mxu0 %v2126
      %v2162 = vpop.f32.mrb[0].mxu0
      %v2163 = vadd.f32 0.0, %v2162
      %v2164 = vpop.f32.mrb[0].mxu0
      %v2165 = vpop.f32.mrb[0].mxu0
      %v2166 = vpop.f32.mrb[0].mxu0
      %2167 = vdwg.mxu0
      %v2168 = vadd.f32 %v2061, %v2163
      %s2169 = scalar_lea.vmem %s2, 20
      %v2170 = vld [vmem:[%s2169] sm:$0xf]
      %v2172 = vsel %vm1638, %v2170, 0
      %2174 = vmatprep.subr.bf16.mxu0 0
      %2175 = vmatpush1.bf16.msra.mxu0 %v1636
      %2176 = vmatprep.subr.bf16.mxu0 0
      %2177 = vmatpush1.bf16.msra.mxu0 0
      %2178 = vmatprep.subr.bf16.mxu0 0
      %2179 = vmatpush1.bf16.msra.mxu0 0
      %2180 = vmatprep.subr.bf16.mxu0 0
      %2181 = vmatpush1.bf16.msra.mxu0 0
      %2182 = vmatprep.subr.bf16.mxu0 0
      %2183 = vmatpush1.bf16.msra.mxu0 0
      %2184 = vmatprep.subr.bf16.mxu0 0
      %2185 = vmatpush1.bf16.msra.mxu0 0
      %2186 = vmatprep.subr.bf16.mxu0 0
      %2187 = vmatpush1.bf16.msra.mxu0 0
      %2188 = vmatprep.subr.bf16.mxu0 0
      %2189 = vmatpush1.bf16.msra.mxu0 0
      %2190 = vmatprep.subr.bf16.mxu0 0
      %2191 = vmatpush1.bf16.msra.mxu0 0
      %2192 = vmatprep.subr.bf16.mxu0 0
      %2193 = vmatpush1.bf16.msra.mxu0 0
      %2194 = vmatprep.subr.bf16.mxu0 0
      %2195 = vmatpush1.bf16.msra.mxu0 0
      %2196 = vmatprep.subr.bf16.mxu0 0
      %2197 = vmatpush1.bf16.msra.mxu0 0
      %2198 = vmatprep.subr.bf16.mxu0 0
      %2199 = vmatpush1.bf16.msra.mxu0 0
      %2200 = vmatprep.subr.bf16.mxu0 0
      %2201 = vmatpush1.bf16.msra.mxu0 0
      %2202 = vmatprep.subr.bf16.mxu0 0
      %2203 = vmatpush1.bf16.msra.mxu0 0
      %2204 = vmatprep.subr.bf16.mxu0 0
      %2205 = vmatpush1.bf16.msra.mxu0 0
      %2206 = vmatprep.mubr.bf16.mxu0 0
      %2207 = vmatmul.mubr.bf16.gmra.mrb[0].mxu0 %v2172
      %v2208 = vpop.f32.mrb[0].mxu0
      %v2209 = vadd.f32 0.0, %v2208
      %v2210 = vpop.f32.mrb[0].mxu0
      %v2211 = vpop.f32.mrb[0].mxu0
      %v2212 = vpop.f32.mrb[0].mxu0
      %2213 = vdwg.mxu0
      %v2214 = vpack.c.bf16 %v2209, %v2209
      %s2215 = scalar_lea.vmem %s6, 80
      %v2216 = vld [vmem:[%s2215] sm:$0xf]
      %v2217 = vld [vmem:[%s2215 + $0x4] sm:$0xf]
      %v2218 = vld [vmem:[%s2215 + $0x8] sm:$0xf]
      %v2219 = vld [vmem:[%s2215 + $0xc] sm:$0xf]
      %v2224 = vunpack.c.l.b16 %v2216
      %v2225 = vunpack.c.l.b16 %v2217
      %v2226 = vunpack.c.l.b16 %v2218
      %v2227 = vunpack.c.l.b16 %v2219
      %v2228 = vpack.c.b16 %v2225, %v2224
      %v2229 = vpack.c.b16 %v2227, %v2226
      %v2233 = vsel %vm714, %v2214, 0
      %2235 = vmatprep.subr.bf16.mxu0 0
      %2236 = vmatpush1.bf16.msra.mxu0 %v2228
      %2237 = vmatprep.subr.bf16.mxu0 0
      %2238 = vmatpush1.bf16.msra.mxu0 %v2229
      %2239 = vmatprep.subr.bf16.mxu0 0
      %2240 = vmatpush1.bf16.msra.mxu0 0
      %2241 = vmatprep.subr.bf16.mxu0 0
      %2242 = vmatpush1.bf16.msra.mxu0 0
      %2243 = vmatprep.subr.bf16.mxu0 0
      %2244 = vmatpush1.bf16.msra.mxu0 0
      %2245 = vmatprep.subr.bf16.mxu0 0
      %2246 = vmatpush1.bf16.msra.mxu0 0
      %2247 = vmatprep.subr.bf16.mxu0 0
      %2248 = vmatpush1.bf16.msra.mxu0 0
      %2249 = vmatprep.subr.bf16.mxu0 0
      %2250 = vmatpush1.bf16.msra.mxu0 0
      %2251 = vmatprep.subr.bf16.mxu0 0
      %2252 = vmatpush1.bf16.msra.mxu0 0
      %2253 = vmatprep.subr.bf16.mxu0 0
      %2254 = vmatpush1.bf16.msra.mxu0 0
      %2255 = vmatprep.subr.bf16.mxu0 0
      %2256 = vmatpush1.bf16.msra.mxu0 0
      %2257 = vmatprep.subr.bf16.mxu0 0
      %2258 = vmatpush1.bf16.msra.mxu0 0
      %2259 = vmatprep.subr.bf16.mxu0 0
      %2260 = vmatpush1.bf16.msra.mxu0 0
      %2261 = vmatprep.subr.bf16.mxu0 0
      %2262 = vmatpush1.bf16.msra.mxu0 0
      %2263 = vmatprep.subr.bf16.mxu0 0
      %2264 = vmatpush1.bf16.msra.mxu0 0
      %2265 = vmatprep.subr.bf16.mxu0 0
      %2266 = vmatpush1.bf16.msra.mxu0 0
      %2267 = vmatprep.mubr.bf16.mxu0 0
      %2268 = vmatmul.mubr.bf16.gmra.mrb[0].mxu0 %v2233
      %v2269 = vpop.f32.mrb[0].mxu0
      %v2270 = vadd.f32 0.0, %v2269
      %v2271 = vpop.f32.mrb[0].mxu0
      %v2272 = vpop.f32.mrb[0].mxu0
      %v2273 = vpop.f32.mrb[0].mxu0
      %2274 = vdwg.mxu0
      %v2275 = vadd.f32 %v2168, %v2270
      %s2276 = scalar_lea.vmem %s2, 24
      %v2277 = vld [vmem:[%s2276] sm:$0xf]
      %v2279 = vsel %vm1638, %v2277, 0
      %2281 = vmatprep.subr.bf16.mxu0 0
      %2282 = vmatpush1.bf16.msra.mxu0 %v1636
      %2283 = vmatprep.subr.bf16.mxu0 0
      %2284 = vmatpush1.bf16.msra.mxu0 0
      %2285 = vmatprep.subr.bf16.mxu0 0
      %2286 = vmatpush1.bf16.msra.mxu0 0
      %2287 = vmatprep.subr.bf16.mxu0 0
      %2288 = vmatpush1.bf16.msra.mxu0 0
      %2289 = vmatprep.subr.bf16.mxu0 0
      %2290 = vmatpush1.bf16.msra.mxu0 0
      %2291 = vmatprep.subr.bf16.mxu0 0
      %2292 = vmatpush1.bf16.msra.mxu0 0
      %2293 = vmatprep.subr.bf16.mxu0 0
      %2294 = vmatpush1.bf16.msra.mxu0 0
      %2295 = vmatprep.subr.bf16.mxu0 0
      %2296 = vmatpush1.bf16.msra.mxu0 0
      %2297 = vmatprep.subr.bf16.mxu0 0
      %2298 = vmatpush1.bf16.msra.mxu0 0
      %2299 = vmatprep.subr.bf16.mxu0 0
      %2300 = vmatpush1.bf16.msra.mxu0 0
      %2301 = vmatprep.subr.bf16.mxu0 0
      %2302 = vmatpush1.bf16.msra.mxu0 0
      %2303 = vmatprep.subr.bf16.mxu0 0
      %2304 = vmatpush1.bf16.msra.mxu0 0
      %2305 = vmatprep.subr.bf16.mxu0 0
      %2306 = vmatpush1.bf16.msra.mxu0 0
      %2307 = vmatprep.subr.bf16.mxu0 0
      %2308 = vmatpush1.bf16.msra.mxu0 0
      %2309 = vmatprep.subr.bf16.mxu0 0
      %2310 = vmatpush1.bf16.msra.mxu0 0
      %2311 = vmatprep.subr.bf16.mxu0 0
      %2312 = vmatpush1.bf16.msra.mxu0 0
      %2313 = vmatprep.mubr.bf16.mxu0 0
      %2314 = vmatmul.mubr.bf16.gmra.mrb[0].mxu0 %v2279
      %v2315 = vpop.f32.mrb[0].mxu0
      %v2316 = vadd.f32 0.0, %v2315
      %v2317 = vpop.f32.mrb[0].mxu0
      %v2318 = vpop.f32.mrb[0].mxu0
      %v2319 = vpop.f32.mrb[0].mxu0
      %2320 = vdwg.mxu0
      %v2321 = vpack.c.bf16 %v2316, %v2316
      %s2322 = scalar_lea.vmem %s6, 96
      %v2323 = vld [vmem:[%s2322] sm:$0xf]
      %v2324 = vld [vmem:[%s2322 + $0x4] sm:$0xf]
      %v2325 = vld [vmem:[%s2322 + $0x8] sm:$0xf]
      %v2326 = vld [vmem:[%s2322 + $0xc] sm:$0xf]
      %v2331 = vunpack.c.l.b16 %v2323
      %v2332 = vunpack.c.l.b16 %v2324
      %v2333 = vunpack.c.l.b16 %v2325
      %v2334 = vunpack.c.l.b16 %v2326
      %v2335 = vpack.c.b16 %v2332, %v2331
      %v2336 = vpack.c.b16 %v2334, %v2333
      %v2340 = vsel %vm714, %v2321, 0
      %2342 = vmatprep.subr.bf16.mxu0 0
      %2343 = vmatpush1.bf16.msra.mxu0 %v2335
      %2344 = vmatprep.subr.bf16.mxu0 0
      %2345 = vmatpush1.bf16.msra.mxu0 %v2336
      %2346 = vmatprep.subr.bf16.mxu0 0
      %2347 = vmatpush1.bf16.msra.mxu0 0
      %2348 = vmatprep.subr.bf16.mxu0 0
      %2349 = vmatpush1.bf16.msra.mxu0 0
      %2350 = vmatprep.subr.bf16.mxu0 0
      %2351 = vmatpush1.bf16.msra.mxu0 0
      %2352 = vmatprep.subr.bf16.mxu0 0
      %2353 = vmatpush1.bf16.msra.mxu0 0
      %2354 = vmatprep.subr.bf16.mxu0 0
      %2355 = vmatpush1.bf16.msra.mxu0 0
      %2356 = vmatprep.subr.bf16.mxu0 0
      %2357 = vmatpush1.bf16.msra.mxu0 0
      %2358 = vmatprep.subr.bf16.mxu0 0
      %2359 = vmatpush1.bf16.msra.mxu0 0
      %2360 = vmatprep.subr.bf16.mxu0 0
      %2361 = vmatpush1.bf16.msra.mxu0 0
      %2362 = vmatprep.subr.bf16.mxu0 0
      %2363 = vmatpush1.bf16.msra.mxu0 0
      %2364 = vmatprep.subr.bf16.mxu0 0
      %2365 = vmatpush1.bf16.msra.mxu0 0
      %2366 = vmatprep.subr.bf16.mxu0 0
      %2367 = vmatpush1.bf16.msra.mxu0 0
      %2368 = vmatprep.subr.bf16.mxu0 0
      %2369 = vmatpush1.bf16.msra.mxu0 0
      %2370 = vmatprep.subr.bf16.mxu0 0
      %2371 = vmatpush1.bf16.msra.mxu0 0
      %2372 = vmatprep.subr.bf16.mxu0 0
      %2373 = vmatpush1.bf16.msra.mxu0 0
      %2374 = vmatprep.mubr.bf16.mxu0 0
      %2375 = vmatmul.mubr.bf16.gmra.mrb[0].mxu0 %v2340
      %v2376 = vpop.f32.mrb[0].mxu0
      %v2377 = vadd.f32 0.0, %v2376
      %v2378 = vpop.f32.mrb[0].mxu0
      %v2379 = vpop.f32.mrb[0].mxu0
      %v2380 = vpop.f32.mrb[0].mxu0
      %2381 = vdwg.mxu0
      %v2382 = vadd.f32 %v2275, %v2377
      %s2383 = scalar_lea.vmem %s2, 28
      %v2384 = vld [vmem:[%s2383] sm:$0xf]
      %v2386 = vsel %vm1638, %v2384, 0
      %2388 = vmatprep.subr.bf16.mxu0 0
      %2389 = vmatpush1.bf16.msra.mxu0 %v1636
      %2390 = vmatprep.subr.bf16.mxu0 0
      %2391 = vmatpush1.bf16.msra.mxu0 0
      %2392 = vmatprep.subr.bf16.mxu0 0
      %2393 = vmatpush1.bf16.msra.mxu0 0
      %2394 = vmatprep.subr.bf16.mxu0 0
      %2395 = vmatpush1.bf16.msra.mxu0 0
      %2396 = vmatprep.subr.bf16.mxu0 0
      %2397 = vmatpush1.bf16.msra.mxu0 0
      %2398 = vmatprep.subr.bf16.mxu0 0
      %2399 = vmatpush1.bf16.msra.mxu0 0
      %2400 = vmatprep.subr.bf16.mxu0 0
      %2401 = vmatpush1.bf16.msra.mxu0 0
      %2402 = vmatprep.subr.bf16.mxu0 0
      %2403 = vmatpush1.bf16.msra.mxu0 0
      %2404 = vmatprep.subr.bf16.mxu0 0
      %2405 = vmatpush1.bf16.msra.mxu0 0
      %2406 = vmatprep.subr.bf16.mxu0 0
      %2407 = vmatpush1.bf16.msra.mxu0 0
      %2408 = vmatprep.subr.bf16.mxu0 0
      %2409 = vmatpush1.bf16.msra.mxu0 0
      %2410 = vmatprep.subr.bf16.mxu0 0
      %2411 = vmatpush1.bf16.msra.mxu0 0
      %2412 = vmatprep.subr.bf16.mxu0 0
      %2413 = vmatpush1.bf16.msra.mxu0 0
      %2414 = vmatprep.subr.bf16.mxu0 0
      %2415 = vmatpush1.bf16.msra.mxu0 0
      %2416 = vmatprep.subr.bf16.mxu0 0
      %2417 = vmatpush1.bf16.msra.mxu0 0
      %2418 = vmatprep.subr.bf16.mxu0 0
      %2419 = vmatpush1.bf16.msra.mxu0 0
      %2420 = vmatprep.mubr.bf16.mxu0 0
      %2421 = vmatmul.mubr.bf16.gmra.mrb[0].mxu0 %v2386
      %v2422 = vpop.f32.mrb[0].mxu0
      %v2423 = vadd.f32 0.0, %v2422
      %v2424 = vpop.f32.mrb[0].mxu0
      %v2425 = vpop.f32.mrb[0].mxu0
      %v2426 = vpop.f32.mrb[0].mxu0
      %2427 = vdwg.mxu0
      %v2428 = vpack.c.bf16 %v2423, %v2423
      %s2429 = scalar_lea.vmem %s6, 112
      %v2430 = vld [vmem:[%s2429] sm:$0xf]
      %v2431 = vld [vmem:[%s2429 + $0x4] sm:$0xf]
      %v2432 = vld [vmem:[%s2429 + $0x8] sm:$0xf]
      %v2433 = vld [vmem:[%s2429 + $0xc] sm:$0xf]
      %v2438 = vunpack.c.l.b16 %v2430
      %v2439 = vunpack.c.l.b16 %v2431
      %v2440 = vunpack.c.l.b16 %v2432
      %v2441 = vunpack.c.l.b16 %v2433
      %v2442 = vpack.c.b16 %v2439, %v2438
      %v2443 = vpack.c.b16 %v2441, %v2440
      %v2447 = vsel %vm714, %v2428, 0
      %2449 = vmatprep.subr.bf16.mxu0 0
      %2450 = vmatpush1.bf16.msra.mxu0 %v2442
      %2451 = vmatprep.subr.bf16.mxu0 0
      %2452 = vmatpush1.bf16.msra.mxu0 %v2443
      %2453 = vmatprep.subr.bf16.mxu0 0
      %2454 = vmatpush1.bf16.msra.mxu0 0
      %2455 = vmatprep.subr.bf16.mxu0 0
      %2456 = vmatpush1.bf16.msra.mxu0 0
      %2457 = vmatprep.subr.bf16.mxu0 0
      %2458 = vmatpush1.bf16.msra.mxu0 0
      %2459 = vmatprep.subr.bf16.mxu0 0
      %2460 = vmatpush1.bf16.msra.mxu0 0
      %2461 = vmatprep.subr.bf16.mxu0 0
      %2462 = vmatpush1.bf16.msra.mxu0 0
      %2463 = vmatprep.subr.bf16.mxu0 0
      %2464 = vmatpush1.bf16.msra.mxu0 0
      %2465 = vmatprep.subr.bf16.mxu0 0
      %2466 = vmatpush1.bf16.msra.mxu0 0
      %2467 = vmatprep.subr.bf16.mxu0 0
      %2468 = vmatpush1.bf16.msra.mxu0 0
      %2469 = vmatprep.subr.bf16.mxu0 0
      %2470 = vmatpush1.bf16.msra.mxu0 0
      %2471 = vmatprep.subr.bf16.mxu0 0
      %2472 = vmatpush1.bf16.msra.mxu0 0
      %2473 = vmatprep.subr.bf16.mxu0 0
      %2474 = vmatpush1.bf16.msra.mxu0 0
      %2475 = vmatprep.subr.bf16.mxu0 0
      %2476 = vmatpush1.bf16.msra.mxu0 0
      %2477 = vmatprep.subr.bf16.mxu0 0
      %2478 = vmatpush1.bf16.msra.mxu0 0
      %2479 = vmatprep.subr.bf16.mxu0 0
      %2480 = vmatpush1.bf16.msra.mxu0 0
      %2481 = vmatprep.mubr.bf16.mxu0 0
      %2482 = vmatmul.mubr.bf16.gmra.mrb[0].mxu0 %v2447
      %v2483 = vpop.f32.mrb[0].mxu0
      %v2484 = vadd.f32 0.0, %v2483
      %v2485 = vpop.f32.mrb[0].mxu0
      %v2486 = vpop.f32.mrb[0].mxu0
      %v2487 = vpop.f32.mrb[0].mxu0
      %2488 = vdwg.mxu0
      %v2489 = vadd.f32 %v2382, %v2484
      %s2490 = scalar_lea.vmem %s2, 32
      %v2491 = vld [vmem:[%s2490] sm:$0xf]
      %v2493 = vsel %vm1638, %v2491, 0
      %2495 = vmatprep.subr.bf16.mxu0 0
      %2496 = vmatpush1.bf16.msra.mxu0 %v1636
      %2497 = vmatprep.subr.bf16.mxu0 0
      %2498 = vmatpush1.bf16.msra.mxu0 0
      %2499 = vmatprep.subr.bf16.mxu0 0
      %2500 = vmatpush1.bf16.msra.mxu0 0
      %2501 = vmatprep.subr.bf16.mxu0 0
      %2502 = vmatpush1.bf16.msra.mxu0 0
      %2503 = vmatprep.subr.bf16.mxu0 0
      %2504 = vmatpush1.bf16.msra.mxu0 0
      %2505 = vmatprep.subr.bf16.mxu0 0
      %2506 = vmatpush1.bf16.msra.mxu0 0
      %2507 = vmatprep.subr.bf16.mxu0 0
      %2508 = vmatpush1.bf16.msra.mxu0 0
      %2509 = vmatprep.subr.bf16.mxu0 0
      %2510 = vmatpush1.bf16.msra.mxu0 0
      %2511 = vmatprep.subr.bf16.mxu0 0
      %2512 = vmatpush1.bf16.msra.mxu0 0
      %2513 = vmatprep.subr.bf16.mxu0 0
      %2514 = vmatpush1.bf16.msra.mxu0 0
      %2515 = vmatprep.subr.bf16.mxu0 0
      %2516 = vmatpush1.bf16.msra.mxu0 0
      %2517 = vmatprep.subr.bf16.mxu0 0
      %2518 = vmatpush1.bf16.msra.mxu0 0
      %2519 = vmatprep.subr.bf16.mxu0 0
      %2520 = vmatpush1.bf16.msra.mxu0 0
      %2521 = vmatprep.subr.bf16.mxu0 0
      %2522 = vmatpush1.bf16.msra.mxu0 0
      %2523 = vmatprep.subr.bf16.mxu0 0
      %2524 = vmatpush1.bf16.msra.mxu0 0
      %2525 = vmatprep.subr.bf16.mxu0 0
      %2526 = vmatpush1.bf16.msra.mxu0 0
      %2527 = vmatprep.mubr.bf16.mxu0 0
      %2528 = vmatmul.mubr.bf16.gmra.mrb[0].mxu0 %v2493
      %v2529 = vpop.f32.mrb[0].mxu0
      %v2530 = vadd.f32 0.0, %v2529
      %v2531 = vpop.f32.mrb[0].mxu0
      %v2532 = vpop.f32.mrb[0].mxu0
      %v2533 = vpop.f32.mrb[0].mxu0
      %2534 = vdwg.mxu0
      %v2535 = vpack.c.bf16 %v2530, %v2530
      %s2536 = scalar_lea.vmem %s6, 128
      %v2537 = vld [vmem:[%s2536] sm:$0xf]
      %v2538 = vld [vmem:[%s2536 + $0x4] sm:$0xf]
      %v2539 = vld [vmem:[%s2536 + $0x8] sm:$0xf]
      %v2540 = vld [vmem:[%s2536 + $0xc] sm:$0xf]
      %v2545 = vunpack.c.l.b16 %v2537
      %v2546 = vunpack.c.l.b16 %v2538
      %v2547 = vunpack.c.l.b16 %v2539
      %v2548 = vunpack.c.l.b16 %v2540
      %v2549 = vpack.c.b16 %v2546, %v2545
      %v2550 = vpack.c.b16 %v2548, %v2547
      %v2554 = vsel %vm714, %v2535, 0
      %2556 = vmatprep.subr.bf16.mxu0 0
      %2557 = vmatpush1.bf16.msra.mxu0 %v2549
      %2558 = vmatprep.subr.bf16.mxu0 0
      %2559 = vmatpush1.bf16.msra.mxu0 %v2550
      %2560 = vmatprep.subr.bf16.mxu0 0
      %2561 = vmatpush1.bf16.msra.mxu0 0
      %2562 = vmatprep.subr.bf16.mxu0 0
      %2563 = vmatpush1.bf16.msra.mxu0 0
      %2564 = vmatprep.subr.bf16.mxu0 0
      %2565 = vmatpush1.bf16.msra.mxu0 0
      %2566 = vmatprep.subr.bf16.mxu0 0
      %2567 = vmatpush1.bf16.msra.mxu0 0
      %2568 = vmatprep.subr.bf16.mxu0 0
      %2569 = vmatpush1.bf16.msra.mxu0 0
      %2570 = vmatprep.subr.bf16.mxu0 0
      %2571 = vmatpush1.bf16.msra.mxu0 0
      %2572 = vmatprep.subr.bf16.mxu0 0
      %2573 = vmatpush1.bf16.msra.mxu0 0
      %2574 = vmatprep.subr.bf16.mxu0 0
      %2575 = vmatpush1.bf16.msra.mxu0 0
      %2576 = vmatprep.subr.bf16.mxu0 0
      %2577 = vmatpush1.bf16.msra.mxu0 0
      %2578 = vmatprep.subr.bf16.mxu0 0
      %2579 = vmatpush1.bf16.msra.mxu0 0
      %2580 = vmatprep.subr.bf16.mxu0 0
      %2581 = vmatpush1.bf16.msra.mxu0 0
      %2582 = vmatprep.subr.bf16.mxu0 0
      %2583 = vmatpush1.bf16.msra.mxu0 0
      %2584 = vmatprep.subr.bf16.mxu0 0
      %2585 = vmatpush1.bf16.msra.mxu0 0
      %2586 = vmatprep.subr.bf16.mxu0 0
      %2587 = vmatpush1.bf16.msra.mxu0 0
      %2588 = vmatprep.mubr.bf16.mxu0 0
      %2589 = vmatmul.mubr.bf16.gmra.mrb[0].mxu0 %v2554
      %v2590 = vpop.f32.mrb[0].mxu0
      %v2591 = vadd.f32 0.0, %v2590
      %v2592 = vpop.f32.mrb[0].mxu0
      %v2593 = vpop.f32.mrb[0].mxu0
      %v2594 = vpop.f32.mrb[0].mxu0
      %2595 = vdwg.mxu0
      %v2596 = vadd.f32 %v2489, %v2591
      %v2597 = vld [vmem:[%s10] sm:$0x1]
      %v2599 = vlaneseq
      %v2600 = vshrl.u32 %v2599, 7
      %v2601 = vsub.s32 0, %v2600
      %v2602 = vrot.slane %v2597, %v2601
      %v2604 = vadd.f32 %v2596, %v2602
      %v2605 = vpack.c.bf16 %v2604, %v2604
      %v2606 = vld [vmem:[%s3] sm:$0xf]
      %vm2607 = vcmask 64512
      %v2609 = vsel %vm2607, %v2606, 0
      %vm2611 = vcmask 1043456
      %v2613 = vsel %vm2611, %v2605, 0
      %2615 = vmatprep.subr.bf16.mxu0 0
      %2616 = vmatpush1.bf16.msra.mxu0 %v2613
      %2617 = vmatprep.subr.bf16.mxu0 0
      %2618 = vmatpush1.bf16.msra.mxu0 0
      %2619 = vmatprep.subr.bf16.mxu0 0
      %2620 = vmatpush1.bf16.msra.mxu0 0
      %2621 = vmatprep.subr.bf16.mxu0 0
      %2622 = vmatpush1.bf16.msra.mxu0 0
      %2623 = vmatprep.subr.bf16.mxu0 0
      %2624 = vmatpush1.bf16.msra.mxu0 0
      %2625 = vmatprep.subr.bf16.mxu0 0
      %2626 = vmatpush1.bf16.msra.mxu0 0
      %2627 = vmatprep.subr.bf16.mxu0 0
      %2628 = vmatpush1.bf16.msra.mxu0 0
      %2629 = vmatprep.subr.bf16.mxu0 0
      %2630 = vmatpush1.bf16.msra.mxu0 0
      %2631 = vmatprep.subr.bf16.mxu0 0
      %2632 = vmatpush1.bf16.msra.mxu0 0
      %2633 = vmatprep.subr.bf16.mxu0 0
      %2634 = vmatpush1.bf16.msra.mxu0 0
      %2635 = vmatprep.subr.bf16.mxu0 0
      %2636 = vmatpush1.bf16.msra.mxu0 0
      %2637 = vmatprep.subr.bf16.mxu0 0
      %2638 = vmatpush1.bf16.msra.mxu0 0
      %2639 = vmatprep.subr.bf16.mxu0 0
      %2640 = vmatpush1.bf16.msra.mxu0 0
      %2641 = vmatprep.subr.bf16.mxu0 0
      %2642 = vmatpush1.bf16.msra.mxu0 0
      %2643 = vmatprep.subr.bf16.mxu0 0
      %2644 = vmatpush1.bf16.msra.mxu0 0
      %2645 = vmatprep.subr.bf16.mxu0 0
      %2646 = vmatpush1.bf16.msra.mxu0 0
      %2647 = vmatprep.mubr.bf16.mxu0 0
      %2648 = vmatmul.mubr.bf16.gmra.mrb[0].mxu0 %v2609
      %v2649 = vpop.f32.mrb[0].mxu0
      %v2650 = vadd.f32 0.0, %v2649
      %v2651 = vpop.f32.mrb[0].mxu0
      %v2652 = vpop.f32.mrb[0].mxu0
      %v2653 = vpop.f32.mrb[0].mxu0
      %2654 = vdwg.mxu0
      %v2655 = vpack.c.bf16 %v2650, %v2650
      %v2656 = vld [vmem:[%s7] sm:$0xf]
      %v2657 = vld [vmem:[%s7 + $0x4] sm:$0xf]
      %v2658 = vld [vmem:[%s7 + $0x8] sm:$0xf]
      %v2659 = vld [vmem:[%s7 + $0xc] sm:$0xf]
      %s2660 = scalar_lea.vmem %s3, 4
      %v2661 = vld [vmem:[%s2660] sm:$0xf]
      %v2663 = vsel %vm2607, %v2661, 0
      %2665 = vmatprep.subr.bf16.mxu0 0
      %2666 = vmatpush1.bf16.msra.mxu0 %v2613
      %2667 = vmatprep.subr.bf16.mxu0 0
      %2668 = vmatpush1.bf16.msra.mxu0 0
      %2669 = vmatprep.subr.bf16.mxu0 0
      %2670 = vmatpush1.bf16.msra.mxu0 0
      %2671 = vmatprep.subr.bf16.mxu0 0
      %2672 = vmatpush1.bf16.msra.mxu0 0
      %2673 = vmatprep.subr.bf16.mxu0 0
      %2674 = vmatpush1.bf16.msra.mxu0 0
      %2675 = vmatprep.subr.bf16.mxu0 0
      %2676 = vmatpush1.bf16.msra.mxu0 0
      %2677 = vmatprep.subr.bf16.mxu0 0
      %2678 = vmatpush1.bf16.msra.mxu0 0
      %2679 = vmatprep.subr.bf16.mxu0 0
      %2680 = vmatpush1.bf16.msra.mxu0 0
      %2681 = vmatprep.subr.bf16.mxu0 0
      %2682 = vmatpush1.bf16.msra.mxu0 0
      %2683 = vmatprep.subr.bf16.mxu0 0
      %2684 = vmatpush1.bf16.msra.mxu0 0
      %2685 = vmatprep.subr.bf16.mxu0 0
      %2686 = vmatpush1.bf16.msra.mxu0 0
      %2687 = vmatprep.subr.bf16.mxu0 0
      %2688 = vmatpush1.bf16.msra.mxu0 0
      %2689 = vmatprep.subr.bf16.mxu0 0
      %2690 = vmatpush1.bf16.msra.mxu0 0
      %2691 = vmatprep.subr.bf16.mxu0 0
      %2692 = vmatpush1.bf16.msra.mxu0 0
      %2693 = vmatprep.subr.bf16.mxu0 0
      %2694 = vmatpush1.bf16.msra.mxu0 0
      %2695 = vmatprep.subr.bf16.mxu0 0
      %2696 = vmatpush1.bf16.msra.mxu0 0
      %2697 = vmatprep.mubr.bf16.mxu0 0
      %2698 = vmatmul.mubr.bf16.gmra.mrb[0].mxu0 %v2663
      %v2699 = vpop.f32.mrb[0].mxu0
      %v2700 = vadd.f32 0.0, %v2699
      %v2701 = vpop.f32.mrb[0].mxu0
      %v2702 = vpop.f32.mrb[0].mxu0
      %v2703 = vpop.f32.mrb[0].mxu0
      %2704 = vdwg.mxu0
      %v2705 = vpack.c.bf16 %v2700, %v2700
      %s2706 = scalar_lea.vmem %s7, 16
      %v2707 = vld [vmem:[%s2706] sm:$0xf]
      %v2708 = vld [vmem:[%s2706 + $0x4] sm:$0xf]
      %v2709 = vld [vmem:[%s2706 + $0x8] sm:$0xf]
      %v2710 = vld [vmem:[%s2706 + $0xc] sm:$0xf]
      %v2715 = vunpack.c.l.b16 %v2707
      %v2716 = vunpack.c.l.b16 %v2708
      %v2717 = vunpack.c.l.b16 %v2709
      %v2718 = vunpack.c.l.b16 %v2710
      %v2719 = vpack.c.b16 %v2716, %v2715
      %v2720 = vpack.c.b16 %v2718, %v2717
      %v2724 = vsel %vm714, %v2705, 0
      %2726 = vmatprep.subr.bf16.mxu0 0
      %2727 = vmatpush1.bf16.msra.mxu0 %v2719
      %2728 = vmatprep.subr.bf16.mxu0 0
      %2729 = vmatpush1.bf16.msra.mxu0 %v2720
      %2730 = vmatprep.subr.bf16.mxu0 0
      %2731 = vmatpush1.bf16.msra.mxu0 0
      %2732 = vmatprep.subr.bf16.mxu0 0
      %2733 = vmatpush1.bf16.msra.mxu0 0
      %2734 = vmatprep.subr.bf16.mxu0 0
      %2735 = vmatpush1.bf16.msra.mxu0 0
      %2736 = vmatprep.subr.bf16.mxu0 0
      %2737 = vmatpush1.bf16.msra.mxu0 0
      %2738 = vmatprep.subr.bf16.mxu0 0
      %2739 = vmatpush1.bf16.msra.mxu0 0
      %2740 = vmatprep.subr.bf16.mxu0 0
      %2741 = vmatpush1.bf16.msra.mxu0 0
      %2742 = vmatprep.subr.bf16.mxu0 0
      %2743 = vmatpush1.bf16.msra.mxu0 0
      %2744 = vmatprep.subr.bf16.mxu0 0
      %2745 = vmatpush1.bf16.msra.mxu0 0
      %2746 = vmatprep.subr.bf16.mxu0 0
      %2747 = vmatpush1.bf16.msra.mxu0 0
      %2748 = vmatprep.subr.bf16.mxu0 0
      %2749 = vmatpush1.bf16.msra.mxu0 0
      %2750 = vmatprep.subr.bf16.mxu0 0
      %2751 = vmatpush1.bf16.msra.mxu0 0
      %2752 = vmatprep.subr.bf16.mxu0 0
      %2753 = vmatpush1.bf16.msra.mxu0 0
      %2754 = vmatprep.subr.bf16.mxu0 0
      %2755 = vmatpush1.bf16.msra.mxu0 0
      %2756 = vmatprep.subr.bf16.mxu0 0
      %2757 = vmatpush1.bf16.msra.mxu0 0
      %2758 = vmatprep.mubr.bf16.mxu0 0
      %2759 = vmatmul.mubr.bf16.gmra.mrb[0].mxu0 %v2724
      %v2760 = vpop.f32.mrb[0].mxu0
      %v2761 = vadd.f32 0.0, %v2760
      %v2762 = vpop.f32.mrb[0].mxu0
      %v2763 = vpop.f32.mrb[0].mxu0
      %v2764 = vpop.f32.mrb[0].mxu0
      %2765 = vdwg.mxu0
      %v2770 = vunpack.c.l.b16 %v2656
      %v2771 = vunpack.c.l.b16 %v2657
      %v2772 = vunpack.c.l.b16 %v2658
      %v2773 = vunpack.c.l.b16 %v2659
      %v2774 = vpack.c.b16 %v2771, %v2770
      %v2775 = vpack.c.b16 %v2773, %v2772
      %v2779 = vsel %vm714, %v2655, 0
      %2781 = vmatprep.subr.bf16.mxu0 0
      %2782 = vmatpush1.bf16.msra.mxu0 %v2774
      %2783 = vmatprep.subr.bf16.mxu0 0
      %2784 = vmatpush1.bf16.msra.mxu0 %v2775
      %2785 = vmatprep.subr.bf16.mxu0 0
      %2786 = vmatpush1.bf16.msra.mxu0 0
      %2787 = vmatprep.subr.bf16.mxu0 0
      %2788 = vmatpush1.bf16.msra.mxu0 0
      %2789 = vmatprep.subr.bf16.mxu0 0
      %2790 = vmatpush1.bf16.msra.mxu0 0
      %2791 = vmatprep.subr.bf16.mxu0 0
      %2792 = vmatpush1.bf16.msra.mxu0 0
      %2793 = vmatprep.subr.bf16.mxu0 0
      %2794 = vmatpush1.bf16.msra.mxu0 0
      %2795 = vmatprep.subr.bf16.mxu0 0
      %2796 = vmatpush1.bf16.msra.mxu0 0
      %2797 = vmatprep.subr.bf16.mxu0 0
      %2798 = vmatpush1.bf16.msra.mxu0 0
      %2799 = vmatprep.subr.bf16.mxu0 0
      %2800 = vmatpush1.bf16.msra.mxu0 0
      %2801 = vmatprep.subr.bf16.mxu0 0
      %2802 = vmatpush1.bf16.msra.mxu0 0
      %2803 = vmatprep.subr.bf16.mxu0 0
      %2804 = vmatpush1.bf16.msra.mxu0 0
      %2805 = vmatprep.subr.bf16.mxu0 0
      %2806 = vmatpush1.bf16.msra.mxu0 0
      %2807 = vmatprep.subr.bf16.mxu0 0
      %2808 = vmatpush1.bf16.msra.mxu0 0
      %2809 = vmatprep.subr.bf16.mxu0 0
      %2810 = vmatpush1.bf16.msra.mxu0 0
      %2811 = vmatprep.subr.bf16.mxu0 0
      %2812 = vmatpush1.bf16.msra.mxu0 0
      %2813 = vmatprep.mubr.bf16.mxu0 0
      %2814 = vmatmul.mubr.bf16.gmra.mrb[0].mxu0 %v2779
      %v2815 = vpop.f32.mrb[0].mxu0
      %v2816 = vadd.f32 %v2761, %v2815
      %v2817 = vpop.f32.mrb[0].mxu0
      %v2818 = vpop.f32.mrb[0].mxu0
      %v2819 = vpop.f32.mrb[0].mxu0
      %2820 = vdwg.mxu0
      %s2821 = scalar_lea.vmem %s3, 8
      %v2822 = vld [vmem:[%s2821] sm:$0xf]
      %v2824 = vsel %vm2607, %v2822, 0
      %2826 = vmatprep.subr.bf16.mxu0 0
      %2827 = vmatpush1.bf16.msra.mxu0 %v2613
      %2828 = vmatprep.subr.bf16.mxu0 0
      %2829 = vmatpush1.bf16.msra.mxu0 0
      %2830 = vmatprep.subr.bf16.mxu0 0
      %2831 = vmatpush1.bf16.msra.mxu0 0
      %2832 = vmatprep.subr.bf16.mxu0 0
      %2833 = vmatpush1.bf16.msra.mxu0 0
      %2834 = vmatprep.subr.bf16.mxu0 0
      %2835 = vmatpush1.bf16.msra.mxu0 0
      %2836 = vmatprep.subr.bf16.mxu0 0
      %2837 = vmatpush1.bf16.msra.mxu0 0
      %2838 = vmatprep.subr.bf16.mxu0 0
      %2839 = vmatpush1.bf16.msra.mxu0 0
      %2840 = vmatprep.subr.bf16.mxu0 0
      %2841 = vmatpush1.bf16.msra.mxu0 0
      %2842 = vmatprep.subr.bf16.mxu0 0
      %2843 = vmatpush1.bf16.msra.mxu0 0
      %2844 = vmatprep.subr.bf16.mxu0 0
      %2845 = vmatpush1.bf16.msra.mxu0 0
      %2846 = vmatprep.subr.bf16.mxu0 0
      %2847 = vmatpush1.bf16.msra.mxu0 0
      %2848 = vmatprep.subr.bf16.mxu0 0
      %2849 = vmatpush1.bf16.msra.mxu0 0
      %2850 = vmatprep.subr.bf16.mxu0 0
      %2851 = vmatpush1.bf16.msra.mxu0 0
      %2852 = vmatprep.subr.bf16.mxu0 0
      %2853 = vmatpush1.bf16.msra.mxu0 0
      %2854 = vmatprep.subr.bf16.mxu0 0
      %2855 = vmatpush1.bf16.msra.mxu0 0
      %2856 = vmatprep.subr.bf16.mxu0 0
      %2857 = vmatpush1.bf16.msra.mxu0 0
      %2858 = vmatprep.mubr.bf16.mxu0 0
      %2859 = vmatmul.mubr.bf16.gmra.mrb[0].mxu0 %v2824
      %v2860 = vpop.f32.mrb[0].mxu0
      %v2861 = vadd.f32 0.0, %v2860
      %v2862 = vpop.f32.mrb[0].mxu0
      %v2863 = vpop.f32.mrb[0].mxu0
      %v2864 = vpop.f32.mrb[0].mxu0
      %2865 = vdwg.mxu0
      %v2866 = vpack.c.bf16 %v2861, %v2861
      %s2867 = scalar_lea.vmem %s7, 32
      %v2868 = vld [vmem:[%s2867] sm:$0xf]
      %v2869 = vld [vmem:[%s2867 + $0x4] sm:$0xf]
      %v2870 = vld [vmem:[%s2867 + $0x8] sm:$0xf]
      %v2871 = vld [vmem:[%s2867 + $0xc] sm:$0xf]
      %v2876 = vunpack.c.l.b16 %v2868
      %v2877 = vunpack.c.l.b16 %v2869
      %v2878 = vunpack.c.l.b16 %v2870
      %v2879 = vunpack.c.l.b16 %v2871
      %v2880 = vpack.c.b16 %v2877, %v2876
      %v2881 = vpack.c.b16 %v2879, %v2878
      %v2885 = vsel %vm714, %v2866, 0
      %2887 = vmatprep.subr.bf16.mxu0 0
      %2888 = vmatpush1.bf16.msra.mxu0 %v2880
      %2889 = vmatprep.subr.bf16.mxu0 0
      %2890 = vmatpush1.bf16.msra.mxu0 %v2881
      %2891 = vmatprep.subr.bf16.mxu0 0
      %2892 = vmatpush1.bf16.msra.mxu0 0
      %2893 = vmatprep.subr.bf16.mxu0 0
      %2894 = vmatpush1.bf16.msra.mxu0 0
      %2895 = vmatprep.subr.bf16.mxu0 0
      %2896 = vmatpush1.bf16.msra.mxu0 0
      %2897 = vmatprep.subr.bf16.mxu0 0
      %2898 = vmatpush1.bf16.msra.mxu0 0
      %2899 = vmatprep.subr.bf16.mxu0 0
      %2900 = vmatpush1.bf16.msra.mxu0 0
      %2901 = vmatprep.subr.bf16.mxu0 0
      %2902 = vmatpush1.bf16.msra.mxu0 0
      %2903 = vmatprep.subr.bf16.mxu0 0
      %2904 = vmatpush1.bf16.msra.mxu0 0
      %2905 = vmatprep.subr.bf16.mxu0 0
      %2906 = vmatpush1.bf16.msra.mxu0 0
      %2907 = vmatprep.subr.bf16.mxu0 0
      %2908 = vmatpush1.bf16.msra.mxu0 0
      %2909 = vmatprep.subr.bf16.mxu0 0
      %2910 = vmatpush1.bf16.msra.mxu0 0
      %2911 = vmatprep.subr.bf16.mxu0 0
      %2912 = vmatpush1.bf16.msra.mxu0 0
      %2913 = vmatprep.subr.bf16.mxu0 0
      %2914 = vmatpush1.bf16.msra.mxu0 0
      %2915 = vmatprep.subr.bf16.mxu0 0
      %2916 = vmatpush1.bf16.msra.mxu0 0
      %2917 = vmatprep.subr.bf16.mxu0 0
      %2918 = vmatpush1.bf16.msra.mxu0 0
      %2919 = vmatprep.mubr.bf16.mxu0 0
      %2920 = vmatmul.mubr.bf16.gmra.mrb[0].mxu0 %v2885
      %v2921 = vpop.f32.mrb[0].mxu0
      %v2922 = vadd.f32 0.0, %v2921
      %v2923 = vpop.f32.mrb[0].mxu0
      %v2924 = vpop.f32.mrb[0].mxu0
      %v2925 = vpop.f32.mrb[0].mxu0
      %2926 = vdwg.mxu0
      %v2927 = vadd.f32 %v2816, %v2922
      %s2928 = scalar_lea.vmem %s3, 12
      %v2929 = vld [vmem:[%s2928] sm:$0xf]
      %v2931 = vsel %vm2607, %v2929, 0
      %2933 = vmatprep.subr.bf16.mxu0 0
      %2934 = vmatpush1.bf16.msra.mxu0 %v2613
      %2935 = vmatprep.subr.bf16.mxu0 0
      %2936 = vmatpush1.bf16.msra.mxu0 0
      %2937 = vmatprep.subr.bf16.mxu0 0
      %2938 = vmatpush1.bf16.msra.mxu0 0
      %2939 = vmatprep.subr.bf16.mxu0 0
      %2940 = vmatpush1.bf16.msra.mxu0 0
      %2941 = vmatprep.subr.bf16.mxu0 0
      %2942 = vmatpush1.bf16.msra.mxu0 0
      %2943 = vmatprep.subr.bf16.mxu0 0
      %2944 = vmatpush1.bf16.msra.mxu0 0
      %2945 = vmatprep.subr.bf16.mxu0 0
      %2946 = vmatpush1.bf16.msra.mxu0 0
      %2947 = vmatprep.subr.bf16.mxu0 0
      %2948 = vmatpush1.bf16.msra.mxu0 0
      %2949 = vmatprep.subr.bf16.mxu0 0
      %2950 = vmatpush1.bf16.msra.mxu0 0
      %2951 = vmatprep.subr.bf16.mxu0 0
      %2952 = vmatpush1.bf16.msra.mxu0 0
      %2953 = vmatprep.subr.bf16.mxu0 0
      %2954 = vmatpush1.bf16.msra.mxu0 0
      %2955 = vmatprep.subr.bf16.mxu0 0
      %2956 = vmatpush1.bf16.msra.mxu0 0
      %2957 = vmatprep.subr.bf16.mxu0 0
      %2958 = vmatpush1.bf16.msra.mxu0 0
      %2959 = vmatprep.subr.bf16.mxu0 0
      %2960 = vmatpush1.bf16.msra.mxu0 0
      %2961 = vmatprep.subr.bf16.mxu0 0
      %2962 = vmatpush1.bf16.msra.mxu0 0
      %2963 = vmatprep.subr.bf16.mxu0 0
      %2964 = vmatpush1.bf16.msra.mxu0 0
      %2965 = vmatprep.mubr.bf16.mxu0 0
      %2966 = vmatmul.mubr.bf16.gmra.mrb[0].mxu0 %v2931
      %v2967 = vpop.f32.mrb[0].mxu0
      %v2968 = vadd.f32 0.0, %v2967
      %v2969 = vpop.f32.mrb[0].mxu0
      %v2970 = vpop.f32.mrb[0].mxu0
      %v2971 = vpop.f32.mrb[0].mxu0
      %2972 = vdwg.mxu0
      %v2973 = vpack.c.bf16 %v2968, %v2968
      %s2974 = scalar_lea.vmem %s7, 48
      %v2975 = vld [vmem:[%s2974] sm:$0xf]
      %v2976 = vld [vmem:[%s2974 + $0x4] sm:$0xf]
      %v2977 = vld [vmem:[%s2974 + $0x8] sm:$0xf]
      %v2978 = vld [vmem:[%s2974 + $0xc] sm:$0xf]
      %v2983 = vunpack.c.l.b16 %v2975
      %v2984 = vunpack.c.l.b16 %v2976
      %v2985 = vunpack.c.l.b16 %v2977
      %v2986 = vunpack.c.l.b16 %v2978
      %v2987 = vpack.c.b16 %v2984, %v2983
      %v2988 = vpack.c.b16 %v2986, %v2985
      %v2992 = vsel %vm714, %v2973, 0
      %2994 = vmatprep.subr.bf16.mxu0 0
      %2995 = vmatpush1.bf16.msra.mxu0 %v2987
      %2996 = vmatprep.subr.bf16.mxu0 0
      %2997 = vmatpush1.bf16.msra.mxu0 %v2988
      %2998 = vmatprep.subr.bf16.mxu0 0
      %2999 = vmatpush1.bf16.msra.mxu0 0
      %3000 = vmatprep.subr.bf16.mxu0 0
      %3001 = vmatpush1.bf16.msra.mxu0 0
      %3002 = vmatprep.subr.bf16.mxu0 0
      %3003 = vmatpush1.bf16.msra.mxu0 0
      %3004 = vmatprep.subr.bf16.mxu0 0
      %3005 = vmatpush1.bf16.msra.mxu0 0
      %3006 = vmatprep.subr.bf16.mxu0 0
      %3007 = vmatpush1.bf16.msra.mxu0 0
      %3008 = vmatprep.subr.bf16.mxu0 0
      %3009 = vmatpush1.bf16.msra.mxu0 0
      %3010 = vmatprep.subr.bf16.mxu0 0
      %3011 = vmatpush1.bf16.msra.mxu0 0
      %3012 = vmatprep.subr.bf16.mxu0 0
      %3013 = vmatpush1.bf16.msra.mxu0 0
      %3014 = vmatprep.subr.bf16.mxu0 0
      %3015 = vmatpush1.bf16.msra.mxu0 0
      %3016 = vmatprep.subr.bf16.mxu0 0
      %3017 = vmatpush1.bf16.msra.mxu0 0
      %3018 = vmatprep.subr.bf16.mxu0 0
      %3019 = vmatpush1.bf16.msra.mxu0 0
      %3020 = vmatprep.subr.bf16.mxu0 0
      %3021 = vmatpush1.bf16.msra.mxu0 0
      %3022 = vmatprep.subr.bf16.mxu0 0
      %3023 = vmatpush1.bf16.msra.mxu0 0
      %3024 = vmatprep.subr.bf16.mxu0 0
      %3025 = vmatpush1.bf16.msra.mxu0 0
      %3026 = vmatprep.mubr.bf16.mxu0 0
      %3027 = vmatmul.mubr.bf16.gmra.mrb[0].mxu0 %v2992
      %v3028 = vpop.f32.mrb[0].mxu0
      %v3029 = vadd.f32 0.0, %v3028
      %v3030 = vpop.f32.mrb[0].mxu0
      %v3031 = vpop.f32.mrb[0].mxu0
      %v3032 = vpop.f32.mrb[0].mxu0
      %3033 = vdwg.mxu0
      %v3034 = vadd.f32 %v2927, %v3029
      %s3035 = scalar_lea.vmem %s3, 16
      %v3036 = vld [vmem:[%s3035] sm:$0xf]
      %v3038 = vsel %vm2607, %v3036, 0
      %3040 = vmatprep.subr.bf16.mxu0 0
      %3041 = vmatpush1.bf16.msra.mxu0 %v2613
      %3042 = vmatprep.subr.bf16.mxu0 0
      %3043 = vmatpush1.bf16.msra.mxu0 0
      %3044 = vmatprep.subr.bf16.mxu0 0
      %3045 = vmatpush1.bf16.msra.mxu0 0
      %3046 = vmatprep.subr.bf16.mxu0 0
      %3047 = vmatpush1.bf16.msra.mxu0 0
      %3048 = vmatprep.subr.bf16.mxu0 0
      %3049 = vmatpush1.bf16.msra.mxu0 0
      %3050 = vmatprep.subr.bf16.mxu0 0
      %3051 = vmatpush1.bf16.msra.mxu0 0
      %3052 = vmatprep.subr.bf16.mxu0 0
      %3053 = vmatpush1.bf16.msra.mxu0 0
      %3054 = vmatprep.subr.bf16.mxu0 0
      %3055 = vmatpush1.bf16.msra.mxu0 0
      %3056 = vmatprep.subr.bf16.mxu0 0
      %3057 = vmatpush1.bf16.msra.mxu0 0
      %3058 = vmatprep.subr.bf16.mxu0 0
      %3059 = vmatpush1.bf16.msra.mxu0 0
      %3060 = vmatprep.subr.bf16.mxu0 0
      %3061 = vmatpush1.bf16.msra.mxu0 0
      %3062 = vmatprep.subr.bf16.mxu0 0
      %3063 = vmatpush1.bf16.msra.mxu0 0
      %3064 = vmatprep.subr.bf16.mxu0 0
      %3065 = vmatpush1.bf16.msra.mxu0 0
      %3066 = vmatprep.subr.bf16.mxu0 0
      %3067 = vmatpush1.bf16.msra.mxu0 0
      %3068 = vmatprep.subr.bf16.mxu0 0
      %3069 = vmatpush1.bf16.msra.mxu0 0
      %3070 = vmatprep.subr.bf16.mxu0 0
      %3071 = vmatpush1.bf16.msra.mxu0 0
      %3072 = vmatprep.mubr.bf16.mxu0 0
      %3073 = vmatmul.mubr.bf16.gmra.mrb[0].mxu0 %v3038
      %v3074 = vpop.f32.mrb[0].mxu0
      %v3075 = vadd.f32 0.0, %v3074
      %v3076 = vpop.f32.mrb[0].mxu0
      %v3077 = vpop.f32.mrb[0].mxu0
      %v3078 = vpop.f32.mrb[0].mxu0
      %3079 = vdwg.mxu0
      %v3080 = vpack.c.bf16 %v3075, %v3075
      %s3081 = scalar_lea.vmem %s7, 64
      %v3082 = vld [vmem:[%s3081] sm:$0xf]
      %v3083 = vld [vmem:[%s3081 + $0x4] sm:$0xf]
      %v3084 = vld [vmem:[%s3081 + $0x8] sm:$0xf]
      %v3085 = vld [vmem:[%s3081 + $0xc] sm:$0xf]
      %v3090 = vunpack.c.l.b16 %v3082
      %v3091 = vunpack.c.l.b16 %v3083
      %v3092 = vunpack.c.l.b16 %v3084
      %v3093 = vunpack.c.l.b16 %v3085
      %v3094 = vpack.c.b16 %v3091, %v3090
      %v3095 = vpack.c.b16 %v3093, %v3092
      %v3099 = vsel %vm714, %v3080, 0
      %3101 = vmatprep.subr.bf16.mxu0 0
      %3102 = vmatpush1.bf16.msra.mxu0 %v3094
      %3103 = vmatprep.subr.bf16.mxu0 0
      %3104 = vmatpush1.bf16.msra.mxu0 %v3095
      %3105 = vmatprep.subr.bf16.mxu0 0
      %3106 = vmatpush1.bf16.msra.mxu0 0
      %3107 = vmatprep.subr.bf16.mxu0 0
      %3108 = vmatpush1.bf16.msra.mxu0 0
      %3109 = vmatprep.subr.bf16.mxu0 0
      %3110 = vmatpush1.bf16.msra.mxu0 0
      %3111 = vmatprep.subr.bf16.mxu0 0
      %3112 = vmatpush1.bf16.msra.mxu0 0
      %3113 = vmatprep.subr.bf16.mxu0 0
      %3114 = vmatpush1.bf16.msra.mxu0 0
      %3115 = vmatprep.subr.bf16.mxu0 0
      %3116 = vmatpush1.bf16.msra.mxu0 0
      %3117 = vmatprep.subr.bf16.mxu0 0
      %3118 = vmatpush1.bf16.msra.mxu0 0
      %3119 = vmatprep.subr.bf16.mxu0 0
      %3120 = vmatpush1.bf16.msra.mxu0 0
      %3121 = vmatprep.subr.bf16.mxu0 0
      %3122 = vmatpush1.bf16.msra.mxu0 0
      %3123 = vmatprep.subr.bf16.mxu0 0
      %3124 = vmatpush1.bf16.msra.mxu0 0
      %3125 = vmatprep.subr.bf16.mxu0 0
      %3126 = vmatpush1.bf16.msra.mxu0 0
      %3127 = vmatprep.subr.bf16.mxu0 0
      %3128 = vmatpush1.bf16.msra.mxu0 0
      %3129 = vmatprep.subr.bf16.mxu0 0
      %3130 = vmatpush1.bf16.msra.mxu0 0
      %3131 = vmatprep.subr.bf16.mxu0 0
      %3132 = vmatpush1.bf16.msra.mxu0 0
      %3133 = vmatprep.mubr.bf16.mxu0 0
      %3134 = vmatmul.mubr.bf16.gmra.mrb[0].mxu0 %v3099
      %v3135 = vpop.f32.mrb[0].mxu0
      %v3136 = vadd.f32 0.0, %v3135
      %v3137 = vpop.f32.mrb[0].mxu0
      %v3138 = vpop.f32.mrb[0].mxu0
      %v3139 = vpop.f32.mrb[0].mxu0
      %3140 = vdwg.mxu0
      %v3141 = vadd.f32 %v3034, %v3136
      %s3142 = scalar_lea.vmem %s3, 20
      %v3143 = vld [vmem:[%s3142] sm:$0xf]
      %v3145 = vsel %vm2607, %v3143, 0
      %3147 = vmatprep.subr.bf16.mxu0 0
      %3148 = vmatpush1.bf16.msra.mxu0 %v2613
      %3149 = vmatprep.subr.bf16.mxu0 0
      %3150 = vmatpush1.bf16.msra.mxu0 0
      %3151 = vmatprep.subr.bf16.mxu0 0
      %3152 = vmatpush1.bf16.msra.mxu0 0
      %3153 = vmatprep.subr.bf16.mxu0 0
      %3154 = vmatpush1.bf16.msra.mxu0 0
      %3155 = vmatprep.subr.bf16.mxu0 0
      %3156 = vmatpush1.bf16.msra.mxu0 0
      %3157 = vmatprep.subr.bf16.mxu0 0
      %3158 = vmatpush1.bf16.msra.mxu0 0
      %3159 = vmatprep.subr.bf16.mxu0 0
      %3160 = vmatpush1.bf16.msra.mxu0 0
      %3161 = vmatprep.subr.bf16.mxu0 0
      %3162 = vmatpush1.bf16.msra.mxu0 0
      %3163 = vmatprep.subr.bf16.mxu0 0
      %3164 = vmatpush1.bf16.msra.mxu0 0
      %3165 = vmatprep.subr.bf16.mxu0 0
      %3166 = vmatpush1.bf16.msra.mxu0 0
      %3167 = vmatprep.subr.bf16.mxu0 0
      %3168 = vmatpush1.bf16.msra.mxu0 0
      %3169 = vmatprep.subr.bf16.mxu0 0
      %3170 = vmatpush1.bf16.msra.mxu0 0
      %3171 = vmatprep.subr.bf16.mxu0 0
      %3172 = vmatpush1.bf16.msra.mxu0 0
      %3173 = vmatprep.subr.bf16.mxu0 0
      %3174 = vmatpush1.bf16.msra.mxu0 0
      %3175 = vmatprep.subr.bf16.mxu0 0
      %3176 = vmatpush1.bf16.msra.mxu0 0
      %3177 = vmatprep.subr.bf16.mxu0 0
      %3178 = vmatpush1.bf16.msra.mxu0 0
      %3179 = vmatprep.mubr.bf16.mxu0 0
      %3180 = vmatmul.mubr.bf16.gmra.mrb[0].mxu0 %v3145
      %v3181 = vpop.f32.mrb[0].mxu0
      %v3182 = vadd.f32 0.0, %v3181
      %v3183 = vpop.f32.mrb[0].mxu0
      %v3184 = vpop.f32.mrb[0].mxu0
      %v3185 = vpop.f32.mrb[0].mxu0
      %3186 = vdwg.mxu0
      %v3187 = vpack.c.bf16 %v3182, %v3182
      %s3188 = scalar_lea.vmem %s7, 80
      %v3189 = vld [vmem:[%s3188] sm:$0xf]
      %v3190 = vld [vmem:[%s3188 + $0x4] sm:$0xf]
      %v3191 = vld [vmem:[%s3188 + $0x8] sm:$0xf]
      %v3192 = vld [vmem:[%s3188 + $0xc] sm:$0xf]
      %v3197 = vunpack.c.l.b16 %v3189
      %v3198 = vunpack.c.l.b16 %v3190
      %v3199 = vunpack.c.l.b16 %v3191
      %v3200 = vunpack.c.l.b16 %v3192
      %v3201 = vpack.c.b16 %v3198, %v3197
      %v3202 = vpack.c.b16 %v3200, %v3199
      %v3206 = vsel %vm714, %v3187, 0
      %3208 = vmatprep.subr.bf16.mxu0 0
      %3209 = vmatpush1.bf16.msra.mxu0 %v3201
      %3210 = vmatprep.subr.bf16.mxu0 0
      %3211 = vmatpush1.bf16.msra.mxu0 %v3202
      %3212 = vmatprep.subr.bf16.mxu0 0
      %3213 = vmatpush1.bf16.msra.mxu0 0
      %3214 = vmatprep.subr.bf16.mxu0 0
      %3215 = vmatpush1.bf16.msra.mxu0 0
      %3216 = vmatprep.subr.bf16.mxu0 0
      %3217 = vmatpush1.bf16.msra.mxu0 0
      %3218 = vmatprep.subr.bf16.mxu0 0
      %3219 = vmatpush1.bf16.msra.mxu0 0
      %3220 = vmatprep.subr.bf16.mxu0 0
      %3221 = vmatpush1.bf16.msra.mxu0 0
      %3222 = vmatprep.subr.bf16.mxu0 0
      %3223 = vmatpush1.bf16.msra.mxu0 0
      %3224 = vmatprep.subr.bf16.mxu0 0
      %3225 = vmatpush1.bf16.msra.mxu0 0
      %3226 = vmatprep.subr.bf16.mxu0 0
      %3227 = vmatpush1.bf16.msra.mxu0 0
      %3228 = vmatprep.subr.bf16.mxu0 0
      %3229 = vmatpush1.bf16.msra.mxu0 0
      %3230 = vmatprep.subr.bf16.mxu0 0
      %3231 = vmatpush1.bf16.msra.mxu0 0
      %3232 = vmatprep.subr.bf16.mxu0 0
      %3233 = vmatpush1.bf16.msra.mxu0 0
      %3234 = vmatprep.subr.bf16.mxu0 0
      %3235 = vmatpush1.bf16.msra.mxu0 0
      %3236 = vmatprep.subr.bf16.mxu0 0
      %3237 = vmatpush1.bf16.msra.mxu0 0
      %3238 = vmatprep.subr.bf16.mxu0 0
      %3239 = vmatpush1.bf16.msra.mxu0 0
      %3240 = vmatprep.mubr.bf16.mxu0 0
      %3241 = vmatmul.mubr.bf16.gmra.mrb[0].mxu0 %v3206
      %v3242 = vpop.f32.mrb[0].mxu0
      %v3243 = vadd.f32 0.0, %v3242
      %v3244 = vpop.f32.mrb[0].mxu0
      %v3245 = vpop.f32.mrb[0].mxu0
      %v3246 = vpop.f32.mrb[0].mxu0
      %3247 = vdwg.mxu0
      %v3248 = vadd.f32 %v3141, %v3243
      %s3249 = scalar_lea.vmem %s3, 24
      %v3250 = vld [vmem:[%s3249] sm:$0xf]
      %v3252 = vsel %vm2607, %v3250, 0
      %3254 = vmatprep.subr.bf16.mxu0 0
      %3255 = vmatpush1.bf16.msra.mxu0 %v2613
      %3256 = vmatprep.subr.bf16.mxu0 0
      %3257 = vmatpush1.bf16.msra.mxu0 0
      %3258 = vmatprep.subr.bf16.mxu0 0
      %3259 = vmatpush1.bf16.msra.mxu0 0
      %3260 = vmatprep.subr.bf16.mxu0 0
      %3261 = vmatpush1.bf16.msra.mxu0 0
      %3262 = vmatprep.subr.bf16.mxu0 0
      %3263 = vmatpush1.bf16.msra.mxu0 0
      %3264 = vmatprep.subr.bf16.mxu0 0
      %3265 = vmatpush1.bf16.msra.mxu0 0
      %3266 = vmatprep.subr.bf16.mxu0 0
      %3267 = vmatpush1.bf16.msra.mxu0 0
      %3268 = vmatprep.subr.bf16.mxu0 0
      %3269 = vmatpush1.bf16.msra.mxu0 0
      %3270 = vmatprep.subr.bf16.mxu0 0
      %3271 = vmatpush1.bf16.msra.mxu0 0
      %3272 = vmatprep.subr.bf16.mxu0 0
      %3273 = vmatpush1.bf16.msra.mxu0 0
      %3274 = vmatprep.subr.bf16.mxu0 0
      %3275 = vmatpush1.bf16.msra.mxu0 0
      %3276 = vmatprep.subr.bf16.mxu0 0
      %3277 = vmatpush1.bf16.msra.mxu0 0
      %3278 = vmatprep.subr.bf16.mxu0 0
      %3279 = vmatpush1.bf16.msra.mxu0 0
      %3280 = vmatprep.subr.bf16.mxu0 0
      %3281 = vmatpush1.bf16.msra.mxu0 0
      %3282 = vmatprep.subr.bf16.mxu0 0
      %3283 = vmatpush1.bf16.msra.mxu0 0
      %3284 = vmatprep.subr.bf16.mxu0 0
      %3285 = vmatpush1.bf16.msra.mxu0 0
      %3286 = vmatprep.mubr.bf16.mxu0 0
      %3287 = vmatmul.mubr.bf16.gmra.mrb[0].mxu0 %v3252
      %v3288 = vpop.f32.mrb[0].mxu0
      %v3289 = vadd.f32 0.0, %v3288
      %v3290 = vpop.f32.mrb[0].mxu0
      %v3291 = vpop.f32.mrb[0].mxu0
      %v3292 = vpop.f32.mrb[0].mxu0
      %3293 = vdwg.mxu0
      %v3294 = vpack.c.bf16 %v3289, %v3289
      %s3295 = scalar_lea.vmem %s7, 96
      %v3296 = vld [vmem:[%s3295] sm:$0xf]
      %v3297 = vld [vmem:[%s3295 + $0x4] sm:$0xf]
      %v3298 = vld [vmem:[%s3295 + $0x8] sm:$0xf]
      %v3299 = vld [vmem:[%s3295 + $0xc] sm:$0xf]
      %v3304 = vunpack.c.l.b16 %v3296
      %v3305 = vunpack.c.l.b16 %v3297
      %v3306 = vunpack.c.l.b16 %v3298
      %v3307 = vunpack.c.l.b16 %v3299
      %v3308 = vpack.c.b16 %v3305, %v3304
      %v3309 = vpack.c.b16 %v3307, %v3306
      %v3313 = vsel %vm714, %v3294, 0
      %3315 = vmatprep.subr.bf16.mxu0 0
      %3316 = vmatpush1.bf16.msra.mxu0 %v3308
      %3317 = vmatprep.subr.bf16.mxu0 0
      %3318 = vmatpush1.bf16.msra.mxu0 %v3309
      %3319 = vmatprep.subr.bf16.mxu0 0
      %3320 = vmatpush1.bf16.msra.mxu0 0
      %3321 = vmatprep.subr.bf16.mxu0 0
      %3322 = vmatpush1.bf16.msra.mxu0 0
      %3323 = vmatprep.subr.bf16.mxu0 0
      %3324 = vmatpush1.bf16.msra.mxu0 0
      %3325 = vmatprep.subr.bf16.mxu0 0
      %3326 = vmatpush1.bf16.msra.mxu0 0
      %3327 = vmatprep.subr.bf16.mxu0 0
      %3328 = vmatpush1.bf16.msra.mxu0 0
      %3329 = vmatprep.subr.bf16.mxu0 0
      %3330 = vmatpush1.bf16.msra.mxu0 0
      %3331 = vmatprep.subr.bf16.mxu0 0
      %3332 = vmatpush1.bf16.msra.mxu0 0
      %3333 = vmatprep.subr.bf16.mxu0 0
      %3334 = vmatpush1.bf16.msra.mxu0 0
      %3335 = vmatprep.subr.bf16.mxu0 0
      %3336 = vmatpush1.bf16.msra.mxu0 0
      %3337 = vmatprep.subr.bf16.mxu0 0
      %3338 = vmatpush1.bf16.msra.mxu0 0
      %3339 = vmatprep.subr.bf16.mxu0 0
      %3340 = vmatpush1.bf16.msra.mxu0 0
      %3341 = vmatprep.subr.bf16.mxu0 0
      %3342 = vmatpush1.bf16.msra.mxu0 0
      %3343 = vmatprep.subr.bf16.mxu0 0
      %3344 = vmatpush1.bf16.msra.mxu0 0
      %3345 = vmatprep.subr.bf16.mxu0 0
      %3346 = vmatpush1.bf16.msra.mxu0 0
      %3347 = vmatprep.mubr.bf16.mxu0 0
      %3348 = vmatmul.mubr.bf16.gmra.mrb[0].mxu0 %v3313
      %v3349 = vpop.f32.mrb[0].mxu0
      %v3350 = vadd.f32 0.0, %v3349
      %v3351 = vpop.f32.mrb[0].mxu0
      %v3352 = vpop.f32.mrb[0].mxu0
      %v3353 = vpop.f32.mrb[0].mxu0
      %3354 = vdwg.mxu0
      %v3355 = vadd.f32 %v3248, %v3350
      %s3356 = scalar_lea.vmem %s3, 28
      %v3357 = vld [vmem:[%s3356] sm:$0xf]
      %v3359 = vsel %vm2607, %v3357, 0
      %3361 = vmatprep.subr.bf16.mxu0 0
      %3362 = vmatpush1.bf16.msra.mxu0 %v2613
      %3363 = vmatprep.subr.bf16.mxu0 0
      %3364 = vmatpush1.bf16.msra.mxu0 0
      %3365 = vmatprep.subr.bf16.mxu0 0
      %3366 = vmatpush1.bf16.msra.mxu0 0
      %3367 = vmatprep.subr.bf16.mxu0 0
      %3368 = vmatpush1.bf16.msra.mxu0 0
      %3369 = vmatprep.subr.bf16.mxu0 0
      %3370 = vmatpush1.bf16.msra.mxu0 0
      %3371 = vmatprep.subr.bf16.mxu0 0
      %3372 = vmatpush1.bf16.msra.mxu0 0
      %3373 = vmatprep.subr.bf16.mxu0 0
      %3374 = vmatpush1.bf16.msra.mxu0 0
      %3375 = vmatprep.subr.bf16.mxu0 0
      %3376 = vmatpush1.bf16.msra.mxu0 0
      %3377 = vmatprep.subr.bf16.mxu0 0
      %3378 = vmatpush1.bf16.msra.mxu0 0
      %3379 = vmatprep.subr.bf16.mxu0 0
      %3380 = vmatpush1.bf16.msra.mxu0 0
      %3381 = vmatprep.subr.bf16.mxu0 0
      %3382 = vmatpush1.bf16.msra.mxu0 0
      %3383 = vmatprep.subr.bf16.mxu0 0
      %3384 = vmatpush1.bf16.msra.mxu0 0
      %3385 = vmatprep.subr.bf16.mxu0 0
      %3386 = vmatpush1.bf16.msra.mxu0 0
      %3387 = vmatprep.subr.bf16.mxu0 0
      %3388 = vmatpush1.bf16.msra.mxu0 0
      %3389 = vmatprep.subr.bf16.mxu0 0
      %3390 = vmatpush1.bf16.msra.mxu0 0
      %3391 = vmatprep.subr.bf16.mxu0 0
      %3392 = vmatpush1.bf16.msra.mxu0 0
      %3393 = vmatprep.mubr.bf16.mxu0 0
      %3394 = vmatmul.mubr.bf16.gmra.mrb[0].mxu0 %v3359
      %v3395 = vpop.f32.mrb[0].mxu0
      %v3396 = vadd.f32 0.0, %v3395
      %v3397 = vpop.f32.mrb[0].mxu0
      %v3398 = vpop.f32.mrb[0].mxu0
      %v3399 = vpop.f32.mrb[0].mxu0
      %3400 = vdwg.mxu0
      %v3401 = vpack.c.bf16 %v3396, %v3396
      %s3402 = scalar_lea.vmem %s7, 112
      %v3403 = vld [vmem:[%s3402] sm:$0xf]
      %v3404 = vld [vmem:[%s3402 + $0x4] sm:$0xf]
      %v3405 = vld [vmem:[%s3402 + $0x8] sm:$0xf]
      %v3406 = vld [vmem:[%s3402 + $0xc] sm:$0xf]
      %v3411 = vunpack.c.l.b16 %v3403
      %v3412 = vunpack.c.l.b16 %v3404
      %v3413 = vunpack.c.l.b16 %v3405
      %v3414 = vunpack.c.l.b16 %v3406
      %v3415 = vpack.c.b16 %v3412, %v3411
      %v3416 = vpack.c.b16 %v3414, %v3413
      %v3420 = vsel %vm714, %v3401, 0
      %3422 = vmatprep.subr.bf16.mxu0 0
      %3423 = vmatpush1.bf16.msra.mxu0 %v3415
      %3424 = vmatprep.subr.bf16.mxu0 0
      %3425 = vmatpush1.bf16.msra.mxu0 %v3416
      %3426 = vmatprep.subr.bf16.mxu0 0
      %3427 = vmatpush1.bf16.msra.mxu0 0
      %3428 = vmatprep.subr.bf16.mxu0 0
      %3429 = vmatpush1.bf16.msra.mxu0 0
      %3430 = vmatprep.subr.bf16.mxu0 0
      %3431 = vmatpush1.bf16.msra.mxu0 0
      %3432 = vmatprep.subr.bf16.mxu0 0
      %3433 = vmatpush1.bf16.msra.mxu0 0
      %3434 = vmatprep.subr.bf16.mxu0 0
      %3435 = vmatpush1.bf16.msra.mxu0 0
      %3436 = vmatprep.subr.bf16.mxu0 0
      %3437 = vmatpush1.bf16.msra.mxu0 0
      %3438 = vmatprep.subr.bf16.mxu0 0
      %3439 = vmatpush1.bf16.msra.mxu0 0
      %3440 = vmatprep.subr.bf16.mxu0 0
      %3441 = vmatpush1.bf16.msra.mxu0 0
      %3442 = vmatprep.subr.bf16.mxu0 0
      %3443 = vmatpush1.bf16.msra.mxu0 0
      %3444 = vmatprep.subr.bf16.mxu0 0
      %3445 = vmatpush1.bf16.msra.mxu0 0
      %3446 = vmatprep.subr.bf16.mxu0 0
      %3447 = vmatpush1.bf16.msra.mxu0 0
      %3448 = vmatprep.subr.bf16.mxu0 0
      %3449 = vmatpush1.bf16.msra.mxu0 0
      %3450 = vmatprep.subr.bf16.mxu0 0
      %3451 = vmatpush1.bf16.msra.mxu0 0
      %3452 = vmatprep.subr.bf16.mxu0 0
      %3453 = vmatpush1.bf16.msra.mxu0 0
      %3454 = vmatprep.mubr.bf16.mxu0 0
      %3455 = vmatmul.mubr.bf16.gmra.mrb[0].mxu0 %v3420
      %v3456 = vpop.f32.mrb[0].mxu0
      %v3457 = vadd.f32 0.0, %v3456
      %v3458 = vpop.f32.mrb[0].mxu0
      %v3459 = vpop.f32.mrb[0].mxu0
      %v3460 = vpop.f32.mrb[0].mxu0
      %3461 = vdwg.mxu0
      %v3462 = vadd.f32 %v3355, %v3457
      %s3463 = scalar_lea.vmem %s3, 32
      %v3464 = vld [vmem:[%s3463] sm:$0xf]
      %v3466 = vsel %vm2607, %v3464, 0
      %3468 = vmatprep.subr.bf16.mxu0 0
      %3469 = vmatpush1.bf16.msra.mxu0 %v2613
      %3470 = vmatprep.subr.bf16.mxu0 0
      %3471 = vmatpush1.bf16.msra.mxu0 0
      %3472 = vmatprep.subr.bf16.mxu0 0
      %3473 = vmatpush1.bf16.msra.mxu0 0
      %3474 = vmatprep.subr.bf16.mxu0 0
      %3475 = vmatpush1.bf16.msra.mxu0 0
      %3476 = vmatprep.subr.bf16.mxu0 0
      %3477 = vmatpush1.bf16.msra.mxu0 0
      %3478 = vmatprep.subr.bf16.mxu0 0
      %3479 = vmatpush1.bf16.msra.mxu0 0
      %3480 = vmatprep.subr.bf16.mxu0 0
      %3481 = vmatpush1.bf16.msra.mxu0 0
      %3482 = vmatprep.subr.bf16.mxu0 0
      %3483 = vmatpush1.bf16.msra.mxu0 0
      %3484 = vmatprep.subr.bf16.mxu0 0
      %3485 = vmatpush1.bf16.msra.mxu0 0
      %3486 = vmatprep.subr.bf16.mxu0 0
      %3487 = vmatpush1.bf16.msra.mxu0 0
      %3488 = vmatprep.subr.bf16.mxu0 0
      %3489 = vmatpush1.bf16.msra.mxu0 0
      %3490 = vmatprep.subr.bf16.mxu0 0
      %3491 = vmatpush1.bf16.msra.mxu0 0
      %3492 = vmatprep.subr.bf16.mxu0 0
      %3493 = vmatpush1.bf16.msra.mxu0 0
      %3494 = vmatprep.subr.bf16.mxu0 0
      %3495 = vmatpush1.bf16.msra.mxu0 0
      %3496 = vmatprep.subr.bf16.mxu0 0
      %3497 = vmatpush1.bf16.msra.mxu0 0
      %3498 = vmatprep.subr.bf16.mxu0 0
      %3499 = vmatpush1.bf16.msra.mxu0 0
      %3500 = vmatprep.mubr.bf16.mxu0 0
      %3501 = vmatmul.mubr.bf16.gmra.mrb[0].mxu0 %v3466
      %v3502 = vpop.f32.mrb[0].mxu0
      %v3503 = vadd.f32 0.0, %v3502
      %v3504 = vpop.f32.mrb[0].mxu0
      %v3505 = vpop.f32.mrb[0].mxu0
      %v3506 = vpop.f32.mrb[0].mxu0
      %3507 = vdwg.mxu0
      %v3508 = vpack.c.bf16 %v3503, %v3503
      %s3509 = scalar_lea.vmem %s7, 128
      %v3510 = vld [vmem:[%s3509] sm:$0xf]
      %v3511 = vld [vmem:[%s3509 + $0x4] sm:$0xf]
      %v3512 = vld [vmem:[%s3509 + $0x8] sm:$0xf]
      %v3513 = vld [vmem:[%s3509 + $0xc] sm:$0xf]
      %v3518 = vunpack.c.l.b16 %v3510
      %v3519 = vunpack.c.l.b16 %v3511
      %v3520 = vunpack.c.l.b16 %v3512
      %v3521 = vunpack.c.l.b16 %v3513
      %v3522 = vpack.c.b16 %v3519, %v3518
      %v3523 = vpack.c.b16 %v3521, %v3520
      %v3527 = vsel %vm714, %v3508, 0
      %3529 = vmatprep.subr.bf16.mxu0 0
      %3530 = vmatpush1.bf16.msra.mxu0 %v3522
      %3531 = vmatprep.subr.bf16.mxu0 0
      %3532 = vmatpush1.bf16.msra.mxu0 %v3523
      %3533 = vmatprep.subr.bf16.mxu0 0
      %3534 = vmatpush1.bf16.msra.mxu0 0
      %3535 = vmatprep.subr.bf16.mxu0 0
      %3536 = vmatpush1.bf16.msra.mxu0 0
      %3537 = vmatprep.subr.bf16.mxu0 0
      %3538 = vmatpush1.bf16.msra.mxu0 0
      %3539 = vmatprep.subr.bf16.mxu0 0
      %3540 = vmatpush1.bf16.msra.mxu0 0
      %3541 = vmatprep.subr.bf16.mxu0 0
      %3542 = vmatpush1.bf16.msra.mxu0 0
      %3543 = vmatprep.subr.bf16.mxu0 0
      %3544 = vmatpush1.bf16.msra.mxu0 0
      %3545 = vmatprep.subr.bf16.mxu0 0
      %3546 = vmatpush1.bf16.msra.mxu0 0
      %3547 = vmatprep.subr.bf16.mxu0 0
      %3548 = vmatpush1.bf16.msra.mxu0 0
      %3549 = vmatprep.subr.bf16.mxu0 0
      %3550 = vmatpush1.bf16.msra.mxu0 0
      %3551 = vmatprep.subr.bf16.mxu0 0
      %3552 = vmatpush1.bf16.msra.mxu0 0
      %3553 = vmatprep.subr.bf16.mxu0 0
      %3554 = vmatpush1.bf16.msra.mxu0 0
      %3555 = vmatprep.subr.bf16.mxu0 0
      %3556 = vmatpush1.bf16.msra.mxu0 0
      %3557 = vmatprep.subr.bf16.mxu0 0
      %3558 = vmatpush1.bf16.msra.mxu0 0
      %3559 = vmatprep.subr.bf16.mxu0 0
      %3560 = vmatpush1.bf16.msra.mxu0 0
      %3561 = vmatprep.mubr.bf16.mxu0 0
      %3562 = vmatmul.mubr.bf16.gmra.mrb[0].mxu0 %v3527
      %v3563 = vpop.f32.mrb[0].mxu0
      %v3564 = vadd.f32 0.0, %v3563
      %v3565 = vpop.f32.mrb[0].mxu0
      %v3566 = vpop.f32.mrb[0].mxu0
      %v3567 = vpop.f32.mrb[0].mxu0
      %3568 = vdwg.mxu0
      %v3569 = vadd.f32 %v3462, %v3564
      %v3570 = vld [vmem:[%s11] sm:$0x1]
      %v3572 = vlaneseq
      %v3573 = vshrl.u32 %v3572, 7
      %v3574 = vsub.s32 0, %v3573
      %v3575 = vrot.slane %v3570, %v3574
      %v3577 = vadd.f32 %v3569, %v3575
      %3578 = vst.msk [vmem:[%s413] sm:$0xff] %vm1638, %v3577
      %p3579 = scmp.lt.s32.totalorder %s23, 1
      %s3580 = scalar_select %p3579, %s23, 1
      %s3581 = smul.addr %s3580, 8
      %s3582 = scalar_lea.vmem %s12, %s3581
      // Predicated region
      $region69: #{forward.1} parent=67 // pred_check
        %p3583 = pneg %p298
      $region70: #{forward.1} parent=67 // pred_check_branch
        %3585 = sbr.rel (%p3583) target = $region72
      $region71: #{forward.1} parent=67 // pred_region
        _
      $region72: #{forward.1} parent=67 // pred_fallthru
        _
    $region68: #{forward.1} parent=5 // pred_fallthru
      _
    %p3586 = scmp.le.s32.totalorder 2, %s18
    // Predicated region
    $region73: #{forward.1} parent=5 // pred_check
      %p3587 = pneg %p3586
    $region74: #{forward.1} parent=5 // pred_check_branch
      %3589 = sbr.rel (%p3587) target = $region76
    $region75: #{forward.1} parent=5 // pred_region
      %s3590 = ssub.s32 %s18, 2
      // Predicated region
      $region77: #{forward.1} parent=75 // pred_check
        %p3591 = pneg %p304
      $region78: #{forward.1} parent=75 // pred_check_branch
        %3593 = sbr.rel (%p3591) target = $region80
      $region79: #{forward.1} parent=75 // pred_region
        %p3594 = scmp.lt.s32.totalorder %s24, 1
        %s3595 = scalar_select %p3594, %s24, 1
        %s3596 = smul.addr %s3595, 8
        %s3597 = scalar_lea.vmem %s12, %s3596
      $region80: #{forward.1} parent=75 // pred_fallthru
        _
    $region76: #{forward.1} parent=5 // pred_fallthru
      _
  $region6: #{forward.1} parent=0 // loop_footer
    %s22 = sadd.s32 1, %s18
  $region7: #{forward.1} parent=0 // loop_footer_branch
    %17 = sbr.rel target = $region3
  $region8: #{forward.1} parent=0 // loop_exit
    _

</llo_original>
